<compile_context>
chip_gen: v6e
topology: v6e:2x2x1
jax: 0.10.0
libtpu: 0.0.40
codegen_flags: <defaults>
</compile_context>

<pallas_src>
import functools
import math

import jax
import jax.numpy as jnp
from jax.experimental import pallas as pl
from jax.experimental.pallas import tpu as pltpu

_LN_EPS = 1e-5  # nn.LayerNorm default


def _layernorm(x, gamma, beta):
    mean = jnp.mean(x, axis=-1, keepdims=True)
    xc = x - mean
    var = jnp.mean(xc * xc, axis=-1, keepdims=True)
    return xc * jax.lax.rsqrt(var + _LN_EPS) * gamma + beta


def _gelu_tanh(x):
    # TODO(synk): F.gelu defaults to the exact erf-based GELU; the tanh
    # approximation (max abs err ~3e-4) is used so the transcendental lowers to
    # the TPU EUP inside Pallas.
    c = 0.7978845608028654  # sqrt(2/pi)
    return 0.5 * x * (1.0 + jnp.tanh(c * (x + 0.044715 * x * x * x)))


def _esm_layer_kernel(x_ref, ln1_g, ln1_b, wqkv, bqkv, wo3, bo,
                      ln2_g, ln2_b, w1, c1, w2, c2,
                      out_ref, xmid_ref, h2_ref, acc_ref, *, num_heads):
    """One pre-LN transformer layer; grid = (batch, Fh-tile)."""
    f = pl.program_id(1)
    cdt = wqkv.dtype  # compute (MXU) dtype = bfloat16

    # ----- self-attention block: runs once per batch element (first Fh step) -----
    @pl.when(f == 0)
    def _attention():
        x = x_ref[0]                                        # (L, D) f32
        L, D = x.shape
        H = num_heads
        dh = D // H

        h = _layernorm(x, ln1_g[...], ln1_b[...])
        # Fused QKV projection; the 1/sqrt(dh) scale is pre-folded into wq/bq.
        qkv = jnp.dot(h.astype(cdt), wqkv[...],
                      preferred_element_type=jnp.float32) + bqkv[...]    # (L, 3D)

        def split_heads(m):                                 # (L, D) -> (H, L, dh)
            return jnp.stack(
                [m[:, hh * dh:(hh + 1) * dh] for hh in range(H)], axis=0)

        q = split_heads(qkv[:, 0 * D:1 * D]).astype(cdt)
        k = split_heads(qkv[:, 1 * D:2 * D]).astype(cdt)
        v = split_heads(qkv[:, 2 * D:3 * D]).astype(cdt)

        # Head-batched contractions (single batched MXU call each; dh axis is
        # contracted directly -> no materialized k.T).
        s = jnp.einsum("hqd,hkd->hqk", q, k,
                       preferred_element_type=jnp.float32)               # (H, L, L)
        s = s - jnp.max(s, axis=-1, keepdims=True)
        p = jnp.exp(s)
        denom = jnp.sum(p, axis=-1, keepdims=True)                       # (H, L, 1)
        o = jnp.einsum("hqk,hkd->hqd", p.astype(cdt), v,
                       preferred_element_type=jnp.float32)               # (H, L, dh)
        # Deferred softmax normalization: O(L*dh) multiplies, reciprocal on EUP.
        o = o * pl.reciprocal(denom, approx=True)

        # Output projection: head-batched matmul against wo reshaped to
        # (H, dh, D) in the wrapper, then reduce over heads (avoids a
        # minor-axis concat / masked per-head stores).
        proj = jnp.einsum("hqd,hde->hqe", o.astype(cdt), wo3[...],
                          preferred_element_type=jnp.float32)            # (H, L, D)
        attn = jnp.sum(proj, axis=0) + bo[...]

        xmid = x + attn
        xmid_ref[...] = xmid
        h2_ref[...] = _layernorm(xmid, ln2_g[...], ln2_b[...]).astype(cdt)
        acc_ref[...] = jnp.zeros_like(acc_ref)

    # ----- feed-forward block: one Fh tile per inner grid step, f32 accumulation -----
    t = jnp.dot(h2_ref[...], w1[...], preferred_element_type=jnp.float32) + c1[...]
    t = _gelu_tanh(t)
    acc_ref[...] += jnp.dot(t.astype(cdt), w2[...],
                            preferred_element_type=jnp.float32)

    @pl.when(f == pl.num_programs(1) - 1)
    def _writeback():
        out_ref[0] = xmid_ref[...] + acc_ref[...] + c2[...]


def _prep_layer_params(p, num_heads, compute_dtype=jnp.bfloat16):
    """One-time weight prep: fuse QKV, fold the attention scale, cast MXU weights."""
    D = p["wq"].shape[0]
    assert D % num_heads == 0
    dh = D // num_heads
    scale = 1.0 / math.sqrt(dh)
    wqkv = jnp.concatenate([p["wq"] * scale, p["wk"], p["wv"]], axis=1)   # (D, 3D)
    bqkv = jnp.concatenate([p["bq"] * scale, p["bk"], p["bv"]], axis=1)   # (1, 3D)
    return {
        "ln1_g": p["ln1_g"], "ln1_b": p["ln1_b"],
        "wqkv": wqkv.astype(compute_dtype), "bqkv": bqkv,
        "wo3": p["wo"].reshape(num_heads, dh, D).astype(compute_dtype),
        "bo": p["bo"],
        "ln2_g": p["ln2_g"], "ln2_b": p["ln2_b"],
        "w1": p["w1"].astype(compute_dtype), "c1": p["c1"],
        "w2": p["w2"].astype(compute_dtype), "c2": p["c2"],
    }


def _esm_layer_pallas(x, kp, num_heads, fh_tile=512):
    B, L, D = x.shape
    Fh = kp["w1"].shape[1]
    tFh = min(fh_tile, Fh)
    assert Fh % tFh == 0, "hidden FFN dim must be divisible by the Fh tile"
    n_fh = Fh // tFh

    weight_args = (
        kp["ln1_g"], kp["ln1_b"], kp["wqkv"], kp["bqkv"], kp["wo3"], kp["bo"],
        kp["ln2_g"], kp["ln2_b"], kp["w1"], kp["c1"], kp["w2"], kp["c2"],
    )

    def const_spec(w):
        rank = w.ndim
        return pl.BlockSpec(w.shape, lambda b, f, _r=rank: (0,) * _r)

    weight_specs = [
        const_spec(kp["ln1_g"]), const_spec(kp["ln1_b"]),
        const_spec(kp["wqkv"]), const_spec(kp["bqkv"]),
        const_spec(kp["wo3"]), const_spec(kp["bo"]),
        const_spec(kp["ln2_g"]), const_spec(kp["ln2_b"]),
        pl.BlockSpec((D, tFh), lambda b, f: (0, f)),   # w1: streamed over Fh
        pl.BlockSpec((1, tFh), lambda b, f: (0, f)),   # c1: streamed over Fh
        pl.BlockSpec((tFh, D), lambda b, f: (f, 0)),   # w2: streamed over Fh
        const_spec(kp["c2"]),
    ]
    x_spec = pl.BlockSpec((1, L, D), lambda b, f: (b, 0, 0))

    flops = int(2 * B * L * D * (4 * D + 2 * L + 2 * Fh))
    transcendentals = int(B * (num_heads * L * L + L * Fh + num_heads * L))
    bytes_accessed = int(4 * 2 * B * L * D                      # x in + out (f32)
                         + 2 * (4 * D * D + 2 * D * Fh)         # bf16 weights
                         + 4 * (11 * D + Fh))                   # f32 biases/LN params

    kernel = functools.partial(_esm_layer_kernel, num_heads=num_heads)
    return pl.pallas_call(
        kernel,
        out_shape=jax.ShapeDtypeStruct((B, L, D), x.dtype),
        grid=(B, n_fh),
        in_specs=[x_spec] + weight_specs,
        out_specs=pl.BlockSpec((1, L, D), lambda b, f: (b, 0, 0)),
        scratch_shapes=[
            pltpu.VMEM((L, D), jnp.float32),        # x + attention (residual carry)
            pltpu.VMEM((L, D), kp["wqkv"].dtype),   # LN2 activations in compute dtype
            pltpu.VMEM((L, D), jnp.float32),        # FFN accumulator
        ],
        input_output_aliases={0: 0},                # x block is read/written in place
        compiler_params=pltpu.CompilerParams(
            dimension_semantics=("parallel", "arbitrary"),
            # Explicit scoped-VMEM budget (tune per generation / production shape;
            # leave headroom under 64 MiB on v7x).
            vmem_limit_bytes=32 * 1024 * 1024),
        cost_estimate=pl.CostEstimate(
            flops=flops, transcendentals=transcendentals,
            bytes_accessed=bytes_accessed),
    )(x, *weight_args)


def self_attention_module(x, layer_params, num_heads, compute_dtype=jnp.bfloat16):
    """Pallas equivalent of SelfAttentionModule.forward (x: (B, L, D) f32)."""
    # attention_mask = ones -> key_padding_mask all-False -> no masking needed.
    for p in layer_params:
        kp = _prep_layer_params(p, num_heads, compute_dtype)
        x = _esm_layer_pallas(x, kp, num_heads)
    return x


# ---------------------- pure-JAX f32 reference for checking ----------------------
def _reference_layer(x, p, num_heads):
    B, L, D = x.shape
    dh = D // num_heads
    scale = 1.0 / math.sqrt(dh)

    def ln(y, g, b):
        m = jnp.mean(y, axis=-1, keepdims=True)
        yc = y - m
        var = jnp.mean(yc * yc, axis=-1, keepdims=True)
        return yc * jax.lax.rsqrt(var + _LN_EPS) * g + b

    h = ln(x, p["ln1_g"], p["ln1_b"])
    q = (h @ p["wq"] + p["bq"]).reshape(B, L, num_heads, dh).transpose(0, 2, 1, 3) * scale
    k = (h @ p["wk"] + p["bk"]).reshape(B, L, num_heads, dh).transpose(0, 2, 1, 3)
    v = (h @ p["wv"] + p["bv"]).reshape(B, L, num_heads, dh).transpose(0, 2, 1, 3)
    s = jnp.einsum("bhqd,bhkd->bhqk", q, k)
    a = jax.nn.softmax(s, axis=-1)
    o = jnp.einsum("bhqk,bhkd->bhqd", a, v).transpose(0, 2, 1, 3).reshape(B, L, D)
    x = x + (o @ p["wo"] + p["bo"])
    h = ln(x, p["ln2_g"], p["ln2_b"])
    h = _gelu_tanh(h @ p["w1"] + p["c1"])
    return x + (h @ p["w2"] + p["c2"])


def _init_layer_params(key, D, Fh):
    ks = jax.random.split(key, 14)
    w = lambda k, shape, s=0.05: jax.random.normal(k, shape, jnp.float32) * s
    return {
        "ln1_g": 1.0 + w(ks[0], (1, D)), "ln1_b": w(ks[1], (1, D)),
        "wq": w(ks[2], (D, D)), "bq": w(ks[3], (1, D)),
        "wk": w(ks[4], (D, D)), "bk": w(ks[5], (1, D)),
        "wv": w(ks[6], (D, D)), "bv": w(ks[7], (1, D)),
        "wo": w(ks[8], (D, D)), "bo": w(ks[9], (1, D)),
        "ln2_g": 1.0 + w(ks[10], (1, D)), "ln2_b": w(ks[11], (1, D)),
        "w1": w(ks[12], (D, Fh)), "c1": jnp.zeros((1, Fh), jnp.float32),
        "w2": w(ks[13], (Fh, D)), "c2": jnp.zeros((1, D), jnp.float32),
    }


if __name__ == "__main__":
    B, L, D, H, Fh, NUM_LAYERS = 2, 8, 32, 4, 64, 2

    key = jax.random.PRNGKey(0)
    kx, *layer_keys = jax.random.split(key, NUM_LAYERS + 1)
    x = jax.random.normal(kx, (B, L, D), jnp.float32)
    layer_params = [_init_layer_params(k, D, Fh) for k in layer_keys]

    # f32 reference (computed first; the kernel aliases its input to its output).
    ref = x
    for p in layer_params:
        ref = _reference_layer(ref, p, H)
    ref = jax.block_until_ready(ref)

    fwd = jax.jit(functools.partial(self_attention_module, num_heads=H))
    out = jax.block_until_ready(fwd(x, layer_params))

    assert out.shape == (B, L, D), out.shape
    max_err = float(jnp.max(jnp.abs(out - ref)))
    # bf16 MXU path with f32 accumulation vs pure-f32 reference.
    assert max_err < 2e-2, f"mismatch vs reference, max_err={max_err}"

    print("KERNEL_OK")
</pallas_src>

<mosaic_0001>
module attributes {stable_mosaic.version = 11 : i64} {
  func.func @_esm_layer_kernel(%arg0: i32, %arg1: i32, %arg2: memref<1x8x32xf32, #tpu.memory_space<vmem>>, %arg3: memref<1x32xf32, #tpu.memory_space<vmem>>, %arg4: memref<1x32xf32, #tpu.memory_space<vmem>>, %arg5: memref<32x96xbf16, #tpu.memory_space<vmem>>, %arg6: memref<1x96xf32, #tpu.memory_space<vmem>>, %arg7: memref<4x8x32xbf16, #tpu.memory_space<vmem>>, %arg8: memref<1x32xf32, #tpu.memory_space<vmem>>, %arg9: memref<1x32xf32, #tpu.memory_space<vmem>>, %arg10: memref<1x32xf32, #tpu.memory_space<vmem>>, %arg11: memref<32x64xbf16, #tpu.memory_space<vmem>>, %arg12: memref<1x64xf32, #tpu.memory_space<vmem>>, %arg13: memref<64x32xbf16, #tpu.memory_space<vmem>>, %arg14: memref<1x32xf32, #tpu.memory_space<vmem>>, %arg15: memref<1x8x32xf32, #tpu.memory_space<vmem>>, %arg16: memref<8x32xf32, #tpu.memory_space<vmem>>, %arg17: memref<8x32xbf16, #tpu.memory_space<vmem>>, %arg18: memref<8x32xf32, #tpu.memory_space<vmem>>) attributes {dimension_semantics = [#tpu.dimension_semantics<parallel>, #tpu.dimension_semantics<arbitrary>], iteration_bounds = array<i64: 2, 1>, scalar_prefetch = 0 : i64, scratch_operands = 3 : i64, tpu.core_type = #tpu.core_type<tc>, window_params = [{transform_indices = @transform_0, window_bounds = array<i64: 1, 8, 32>}, {pipeline_mode = #tpu.pipeline_mode<synchronous>, transform_indices = @transform_1, window_bounds = array<i64: 1, 32>}, {pipeline_mode = #tpu.pipeline_mode<synchronous>, transform_indices = @transform_2, window_bounds = array<i64: 1, 32>}, {pipeline_mode = #tpu.pipeline_mode<synchronous>, transform_indices = @transform_3, window_bounds = array<i64: 32, 96>}, {pipeline_mode = #tpu.pipeline_mode<synchronous>, transform_indices = @transform_4, window_bounds = array<i64: 1, 96>}, {pipeline_mode = #tpu.pipeline_mode<synchronous>, transform_indices = @transform_5, window_bounds = array<i64: 4, 8, 32>}, {pipeline_mode = #tpu.pipeline_mode<synchronous>, transform_indices = @transform_6, window_bounds = array<i64: 1, 32>}, {pipeline_mode = #tpu.pipeline_mode<synchronous>, transform_indices = @transform_7, window_bounds = array<i64: 1, 32>}, {pipeline_mode = #tpu.pipeline_mode<synchronous>, transform_indices = @transform_8, window_bounds = array<i64: 1, 32>}, {transform_indices = @transform_9, window_bounds = array<i64: 32, 64>}, {transform_indices = @transform_10, window_bounds = array<i64: 1, 64>}, {transform_indices = @transform_11, window_bounds = array<i64: 64, 32>}, {pipeline_mode = #tpu.pipeline_mode<synchronous>, transform_indices = @transform_12, window_bounds = array<i64: 1, 32>}, {transform_indices = @transform_13, window_bounds = array<i64: 1, 8, 32>}]} {
    %c0_i32 = arith.constant 0 : i32
    %0 = arith.cmpi eq, %arg1, %c0_i32 : i32
    %1 = arith.extui %0 : i1 to i32
    %c0_i32_0 = arith.constant 0 : i32
    %2 = arith.cmpi ne, %1, %c0_i32_0 : i32
    scf.if %2 {
      %c0_19 = arith.constant 0 : index
      %c0_20 = arith.constant 0 : index
      %c0_21 = arith.constant 0 : index
      %31 = vector.load %arg2[%c0_19, %c0_20, %c0_21] : memref<1x8x32xf32, #tpu.memory_space<vmem>>, vector<1x8x32xf32>
      %32 = vector.shape_cast %31 : vector<1x8x32xf32> to vector<8x32xf32>
      %c0_22 = arith.constant 0 : index
      %c0_23 = arith.constant 0 : index
      %33 = vector.load %arg3[%c0_22, %c0_23] : memref<1x32xf32, #tpu.memory_space<vmem>>, vector<1x32xf32>
      %c0_24 = arith.constant 0 : index
      %c0_25 = arith.constant 0 : index
      %34 = vector.load %arg4[%c0_24, %c0_25] : memref<1x32xf32, #tpu.memory_space<vmem>>, vector<1x32xf32>
      %cst_26 = arith.constant dense<0.000000e+00> : vector<8xf32>
      %35 = vector.multi_reduction <add>, %32, %cst_26 [1] : vector<8x32xf32> to vector<8xf32>
      %36 = vector.shape_cast %35 : vector<8xf32> to vector<8x1xf32>
      %cst_27 = arith.constant 3.200000e+01 : f32
      %37 = vector.broadcast %cst_27 : f32 to vector<8x1xf32>
      %38 = arith.divf %36, %37 : vector<8x1xf32>
      %39 = vector.broadcast %38 : vector<8x1xf32> to vector<8x32xf32>
      %40 = arith.subf %32, %39 : vector<8x32xf32>
      %41 = arith.mulf %40, %40 : vector<8x32xf32>
      %cst_28 = arith.constant dense<0.000000e+00> : vector<8xf32>
      %42 = vector.multi_reduction <add>, %41, %cst_28 [1] : vector<8x32xf32> to vector<8xf32>
      %43 = vector.shape_cast %42 : vector<8xf32> to vector<8x1xf32>
      %cst_29 = arith.constant 3.200000e+01 : f32
      %44 = vector.broadcast %cst_29 : f32 to vector<8x1xf32>
      %45 = arith.divf %43, %44 : vector<8x1xf32>
      %cst_30 = arith.constant 9.99999974E-6 : f32
      %46 = vector.broadcast %cst_30 : f32 to vector<8x1xf32>
      %47 = arith.addf %45, %46 : vector<8x1xf32>
      %48 = math.rsqrt %47 : vector<8x1xf32>
      %49 = vector.broadcast %48 : vector<8x1xf32> to vector<8x32xf32>
      %50 = arith.mulf %40, %49 : vector<8x32xf32>
      %51 = vector.broadcast %33 : vector<1x32xf32> to vector<8x32xf32>
      %52 = arith.mulf %50, %51 : vector<8x32xf32>
      %53 = vector.broadcast %34 : vector<1x32xf32> to vector<8x32xf32>
      %54 = arith.addf %52, %53 : vector<8x32xf32>
      %55 = arith.truncf %54 : vector<8x32xf32> to vector<8x32xbf16>
      %c0_31 = arith.constant 0 : index
      %c0_32 = arith.constant 0 : index
      %56 = vector.load %arg5[%c0_31, %c0_32] : memref<32x96xbf16, #tpu.memory_space<vmem>>, vector<32x96xbf16>
      %cst_33 = arith.constant dense<0.000000e+00> : vector<8x96xf32>
      %57 = tpu.matmul %55, %56, %cst_33 {dimension_numbers = #tpu.dot_dimension_numbers<[1], [0], [0], [1], [0, 0, 1, 1], [], []>} : vector<8x32xbf16>, vector<32x96xbf16>, vector<8x96xf32> -> vector<8x96xf32>
      %c0_34 = arith.constant 0 : index
      %c0_35 = arith.constant 0 : index
      %58 = vector.load %arg6[%c0_34, %c0_35] : memref<1x96xf32, #tpu.memory_space<vmem>>, vector<1x96xf32>
      %59 = vector.broadcast %58 : vector<1x96xf32> to vector<8x96xf32>
      %60 = arith.addf %57, %59 : vector<8x96xf32>
      %61 = vector.extract_strided_slice %60 {offsets = [0, 0], sizes = [8, 32], strides = [1, 1]} : vector<8x96xf32> to vector<8x32xf32>
      %62 = vector.extract_strided_slice %61 {offsets = [0, 0], sizes = [8, 8], strides = [1, 1]} : vector<8x32xf32> to vector<8x8xf32>
      %63 = vector.extract_strided_slice %61 {offsets = [0, 8], sizes = [8, 8], strides = [1, 1]} : vector<8x32xf32> to vector<8x8xf32>
      %64 = vector.extract_strided_slice %61 {offsets = [0, 16], sizes = [8, 8], strides = [1, 1]} : vector<8x32xf32> to vector<8x8xf32>
      %65 = vector.extract_strided_slice %61 {offsets = [0, 24], sizes = [8, 8], strides = [1, 1]} : vector<8x32xf32> to vector<8x8xf32>
      %66 = vector.shape_cast %62 : vector<8x8xf32> to vector<1x8x8xf32>
      %67 = vector.shape_cast %63 : vector<8x8xf32> to vector<1x8x8xf32>
      %68 = vector.shape_cast %64 : vector<8x8xf32> to vector<1x8x8xf32>
      %69 = vector.shape_cast %65 : vector<8x8xf32> to vector<1x8x8xf32>
      %70 = tpu.concatenate %66, %67, %68, %69 in 0 : vector<1x8x8xf32>, vector<1x8x8xf32>, vector<1x8x8xf32>, vector<1x8x8xf32> -> vector<4x8x8xf32>
      %71 = arith.truncf %70 : vector<4x8x8xf32> to vector<4x8x8xbf16>
      %72 = vector.extract_strided_slice %60 {offsets = [0, 32], sizes = [8, 32], strides = [1, 1]} : vector<8x96xf32> to vector<8x32xf32>
      %73 = vector.extract_strided_slice %72 {offsets = [0, 0], sizes = [8, 8], strides = [1, 1]} : vector<8x32xf32> to vector<8x8xf32>
      %74 = vector.extract_strided_slice %72 {offsets = [0, 8], sizes = [8, 8], strides = [1, 1]} : vector<8x32xf32> to vector<8x8xf32>
      %75 = vector.extract_strided_slice %72 {offsets = [0, 16], sizes = [8, 8], strides = [1, 1]} : vector<8x32xf32> to vector<8x8xf32>
      %76 = vector.extract_strided_slice %72 {offsets = [0, 24], sizes = [8, 8], strides = [1, 1]} : vector<8x32xf32> to vector<8x8xf32>
      %77 = vector.shape_cast %73 : vector<8x8xf32> to vector<1x8x8xf32>
      %78 = vector.shape_cast %74 : vector<8x8xf32> to vector<1x8x8xf32>
      %79 = vector.shape_cast %75 : vector<8x8xf32> to vector<1x8x8xf32>
      %80 = vector.shape_cast %76 : vector<8x8xf32> to vector<1x8x8xf32>
      %81 = tpu.concatenate %77, %78, %79, %80 in 0 : vector<1x8x8xf32>, vector<1x8x8xf32>, vector<1x8x8xf32>, vector<1x8x8xf32> -> vector<4x8x8xf32>
      %82 = arith.truncf %81 : vector<4x8x8xf32> to vector<4x8x8xbf16>
      %83 = vector.extract_strided_slice %60 {offsets = [0, 64], sizes = [8, 32], strides = [1, 1]} : vector<8x96xf32> to vector<8x32xf32>
      %84 = vector.extract_strided_slice %83 {offsets = [0, 0], sizes = [8, 8], strides = [1, 1]} : vector<8x32xf32> to vector<8x8xf32>
      %85 = vector.extract_strided_slice %83 {offsets = [0, 8], sizes = [8, 8], strides = [1, 1]} : vector<8x32xf32> to vector<8x8xf32>
      %86 = vector.extract_strided_slice %83 {offsets = [0, 16], sizes = [8, 8], strides = [1, 1]} : vector<8x32xf32> to vector<8x8xf32>
      %87 = vector.extract_strided_slice %83 {offsets = [0, 24], sizes = [8, 8], strides = [1, 1]} : vector<8x32xf32> to vector<8x8xf32>
      %88 = vector.shape_cast %84 : vector<8x8xf32> to vector<1x8x8xf32>
      %89 = vector.shape_cast %85 : vector<8x8xf32> to vector<1x8x8xf32>
      %90 = vector.shape_cast %86 : vector<8x8xf32> to vector<1x8x8xf32>
      %91 = vector.shape_cast %87 : vector<8x8xf32> to vector<1x8x8xf32>
      %92 = tpu.concatenate %88, %89, %90, %91 in 0 : vector<1x8x8xf32>, vector<1x8x8xf32>, vector<1x8x8xf32>, vector<1x8x8xf32> -> vector<4x8x8xf32>
      %93 = arith.truncf %92 : vector<4x8x8xf32> to vector<4x8x8xbf16>
      "tpu.trace_start"() <{level = 10 : i32, message = "hqd,hkd->hqk"}> : () -> ()
      %cst_36 = arith.constant dense<0.000000e+00> : vector<4x8x8xf32>
      %94 = tpu.matmul %71, %82, %cst_36 {dimension_numbers = #tpu.dot_dimension_numbers<[2], [2], [1], [1], [0, 0, 0, 1, 1, 1], [0], [0]>} : vector<4x8x8xbf16>, vector<4x8x8xbf16>, vector<4x8x8xf32> -> vector<4x8x8xf32>
      "tpu.trace_stop"() : () -> ()
      %cst_37 = arith.constant dense<0xFF800000> : vector<4x8xf32>
      %95 = vector.multi_reduction <maximumf>, %94, %cst_37 [2] : vector<4x8x8xf32> to vector<4x8xf32>
      %96 = vector.shape_cast %95 : vector<4x8xf32> to vector<4x8x1xf32>
      %97 = vector.broadcast %96 : vector<4x8x1xf32> to vector<4x8x8xf32>
      %98 = arith.subf %94, %97 : vector<4x8x8xf32>
      %99 = math.exp %98 : vector<4x8x8xf32>
      %cst_38 = arith.constant dense<0.000000e+00> : vector<4x8xf32>
      %100 = vector.multi_reduction <add>, %99, %cst_38 [2] : vector<4x8x8xf32> to vector<4x8xf32>
      %101 = vector.shape_cast %100 : vector<4x8xf32> to vector<4x8x1xf32>
      %102 = arith.truncf %99 : vector<4x8x8xf32> to vector<4x8x8xbf16>
      "tpu.trace_start"() <{level = 10 : i32, message = "hqk,hkd->hqd"}> : () -> ()
      %cst_39 = arith.constant dense<0.000000e+00> : vector<4x8x8xf32>
      %103 = tpu.matmul %102, %93, %cst_39 {dimension_numbers = #tpu.dot_dimension_numbers<[2], [1], [1], [2], [0, 0, 0, 1, 1, 2], [0], [0]>} : vector<4x8x8xbf16>, vector<4x8x8xbf16>, vector<4x8x8xf32> -> vector<4x8x8xf32>
      "tpu.trace_stop"() : () -> ()
      %104 = tpu.reciprocal %101 {approx = true} : vector<4x8x1xf32> -> vector<4x8x1xf32>
      %105 = vector.broadcast %104 : vector<4x8x1xf32> to vector<4x8x8xf32>
      %106 = arith.mulf %103, %105 : vector<4x8x8xf32>
      %107 = arith.truncf %106 : vector<4x8x8xf32> to vector<4x8x8xbf16>
      %c0_40 = arith.constant 0 : index
      %c0_41 = arith.constant 0 : index
      %c0_42 = arith.constant 0 : index
      %108 = vector.load %arg7[%c0_40, %c0_41, %c0_42] : memref<4x8x32xbf16, #tpu.memory_space<vmem>>, vector<4x8x32xbf16>
      "tpu.trace_start"() <{level = 10 : i32, message = "hqd,hde->hqe"}> : () -> ()
      %cst_43 = arith.constant dense<0.000000e+00> : vector<4x8x32xf32>
      %109 = tpu.matmul %107, %108, %cst_43 {dimension_numbers = #tpu.dot_dimension_numbers<[2], [1], [1], [2], [0, 0, 0, 1, 1, 2], [0], [0]>} : vector<4x8x8xbf16>, vector<4x8x32xbf16>, vector<4x8x32xf32> -> vector<4x8x32xf32>
      "tpu.trace_stop"() : () -> ()
      %cst_44 = arith.constant dense<0.000000e+00> : vector<8x32xf32>
      %110 = vector.multi_reduction <add>, %109, %cst_44 [0] : vector<4x8x32xf32> to vector<8x32xf32>
      %c0_45 = arith.constant 0 : index
      %c0_46 = arith.constant 0 : index
      %111 = vector.load %arg8[%c0_45, %c0_46] : memref<1x32xf32, #tpu.memory_space<vmem>>, vector<1x32xf32>
      %112 = vector.broadcast %111 : vector<1x32xf32> to vector<8x32xf32>
      %113 = arith.addf %110, %112 : vector<8x32xf32>
      %114 = arith.addf %32, %113 : vector<8x32xf32>
      %c0_47 = arith.constant 0 : index
      %c0_48 = arith.constant 0 : index
      %115 = vector.load %arg16[%c0_47, %c0_48] : memref<8x32xf32, #tpu.memory_space<vmem>>, vector<8x32xf32>
      tpu.vector_store %arg16[%c0_47, %c0_48], %114 {strides = array<i32>} : memref<8x32xf32, #tpu.memory_space<vmem>>, vector<8x32xf32>,
      %c0_49 = arith.constant 0 : index
      %c0_50 = arith.constant 0 : index
      %116 = vector.load %arg9[%c0_49, %c0_50] : memref<1x32xf32, #tpu.memory_space<vmem>>, vector<1x32xf32>
      %c0_51 = arith.constant 0 : index
      %c0_52 = arith.constant 0 : index
      %117 = vector.load %arg10[%c0_51, %c0_52] : memref<1x32xf32, #tpu.memory_space<vmem>>, vector<1x32xf32>
      %cst_53 = arith.constant dense<0.000000e+00> : vector<8xf32>
      %118 = vector.multi_reduction <add>, %114, %cst_53 [1] : vector<8x32xf32> to vector<8xf32>
      %119 = vector.shape_cast %118 : vector<8xf32> to vector<8x1xf32>
      %cst_54 = arith.constant 3.200000e+01 : f32
      %120 = vector.broadcast %cst_54 : f32 to vector<8x1xf32>
      %121 = arith.divf %119, %120 : vector<8x1xf32>
      %122 = vector.broadcast %121 : vector<8x1xf32> to vector<8x32xf32>
      %123 = arith.subf %114, %122 : vector<8x32xf32>
      %124 = arith.mulf %123, %123 : vector<8x32xf32>
      %cst_55 = arith.constant dense<0.000000e+00> : vector<8xf32>
      %125 = vector.multi_reduction <add>, %124, %cst_55 [1] : vector<8x32xf32> to vector<8xf32>
      %126 = vector.shape_cast %125 : vector<8xf32> to vector<8x1xf32>
      %cst_56 = arith.constant 3.200000e+01 : f32
      %127 = vector.broadcast %cst_56 : f32 to vector<8x1xf32>
      %128 = arith.divf %126, %127 : vector<8x1xf32>
      %cst_57 = arith.constant 9.99999974E-6 : f32
      %129 = vector.broadcast %cst_57 : f32 to vector<8x1xf32>
      %130 = arith.addf %128, %129 : vector<8x1xf32>
      %131 = math.rsqrt %130 : vector<8x1xf32>
      %132 = vector.broadcast %131 : vector<8x1xf32> to vector<8x32xf32>
      %133 = arith.mulf %123, %132 : vector<8x32xf32>
      %134 = vector.broadcast %116 : vector<1x32xf32> to vector<8x32xf32>
      %135 = arith.mulf %133, %134 : vector<8x32xf32>
      %136 = vector.broadcast %117 : vector<1x32xf32> to vector<8x32xf32>
      %137 = arith.addf %135, %136 : vector<8x32xf32>
      %138 = arith.truncf %137 : vector<8x32xf32> to vector<8x32xbf16>
      %c0_58 = arith.constant 0 : index
      %c0_59 = arith.constant 0 : index
      %139 = vector.load %arg17[%c0_58, %c0_59] : memref<8x32xbf16, #tpu.memory_space<vmem>>, vector<8x32xbf16>
      tpu.vector_store %arg17[%c0_58, %c0_59], %138 {strides = array<i32>} : memref<8x32xbf16, #tpu.memory_space<vmem>>, vector<8x32xbf16>,
      %cst_60 = arith.constant 0.000000e+00 : f32
      %140 = vector.broadcast %cst_60 : f32 to vector<8x32xf32>
      %c0_61 = arith.constant 0 : index
      %c0_62 = arith.constant 0 : index
      %141 = vector.load %arg18[%c0_61, %c0_62] : memref<8x32xf32, #tpu.memory_space<vmem>>, vector<8x32xf32>
      tpu.vector_store %arg18[%c0_61, %c0_62], %140 {strides = array<i32>} : memref<8x32xf32, #tpu.memory_space<vmem>>, vector<8x32xf32>,
    } else {
    }
    %c0 = arith.constant 0 : index
    %c0_1 = arith.constant 0 : index
    %3 = vector.load %arg17[%c0, %c0_1] : memref<8x32xbf16, #tpu.memory_space<vmem>>, vector<8x32xbf16>
    %c0_2 = arith.constant 0 : index
    %c0_3 = arith.constant 0 : index
    %4 = vector.load %arg11[%c0_2, %c0_3] : memref<32x64xbf16, #tpu.memory_space<vmem>>, vector<32x64xbf16>
    %cst = arith.constant dense<0.000000e+00> : vector<8x64xf32>
    %5 = tpu.matmul %3, %4, %cst {dimension_numbers = #tpu.dot_dimension_numbers<[1], [0], [0], [1], [0, 0, 1, 1], [], []>} : vector<8x32xbf16>, vector<32x64xbf16>, vector<8x64xf32> -> vector<8x64xf32>
    %c0_4 = arith.constant 0 : index
    %c0_5 = arith.constant 0 : index
    %6 = vector.load %arg12[%c0_4, %c0_5] : memref<1x64xf32, #tpu.memory_space<vmem>>, vector<1x64xf32>
    %7 = vector.broadcast %6 : vector<1x64xf32> to vector<8x64xf32>
    %8 = arith.addf %5, %7 : vector<8x64xf32>
    %cst_6 = arith.constant 5.000000e-01 : f32
    %9 = vector.broadcast %cst_6 : f32 to vector<8x64xf32>
    %10 = arith.mulf %9, %8 : vector<8x64xf32>
    %cst_7 = arith.constant 4.471500e-02 : f32
    %11 = vector.broadcast %cst_7 : f32 to vector<8x64xf32>
    %12 = arith.mulf %11, %8 : vector<8x64xf32>
    %13 = arith.mulf %12, %8 : vector<8x64xf32>
    %14 = arith.mulf %13, %8 : vector<8x64xf32>
    %15 = arith.addf %8, %14 : vector<8x64xf32>
    %cst_8 = arith.constant 0.797884583 : f32
    %16 = vector.broadcast %cst_8 : f32 to vector<8x64xf32>
    %17 = arith.mulf %16, %15 : vector<8x64xf32>
    %18 = math.tanh %17 : vector<8x64xf32>
    %cst_9 = arith.constant 1.000000e+00 : f32
    %19 = vector.broadcast %cst_9 : f32 to vector<8x64xf32>
    %20 = arith.addf %19, %18 : vector<8x64xf32>
    %21 = arith.mulf %10, %20 : vector<8x64xf32>
    %c0_10 = arith.constant 0 : index
    %c0_11 = arith.constant 0 : index
    %22 = vector.load %arg18[%c0_10, %c0_11] : memref<8x32xf32, #tpu.memory_space<vmem>>, vector<8x32xf32>
    %23 = arith.truncf %21 : vector<8x64xf32> to vector<8x64xbf16>
    %c0_12 = arith.constant 0 : index
    %c0_13 = arith.constant 0 : index
    %24 = vector.load %arg13[%c0_12, %c0_13] : memref<64x32xbf16, #tpu.memory_space<vmem>>, vector<64x32xbf16>
    %cst_14 = arith.constant dense<0.000000e+00> : vector<8x32xf32>
    %25 = tpu.matmul %23, %24, %cst_14 {dimension_numbers = #tpu.dot_dimension_numbers<[1], [0], [0], [1], [0, 0, 1, 1], [], []>} : vector<8x64xbf16>, vector<64x32xbf16>, vector<8x32xf32> -> vector<8x32xf32>
    %26 = arith.addf %22, %25 : vector<8x32xf32>
    %c0_15 = arith.constant 0 : index
    %c0_16 = arith.constant 0 : index
    %27 = vector.load %arg18[%c0_15, %c0_16] : memref<8x32xf32, #tpu.memory_space<vmem>>, vector<8x32xf32>
    tpu.vector_store %arg18[%c0_15, %c0_16], %26 {strides = array<i32>} : memref<8x32xf32, #tpu.memory_space<vmem>>, vector<8x32xf32>,
    %c0_i32_17 = arith.constant 0 : i32
    %28 = arith.cmpi eq, %arg1, %c0_i32_17 : i32
    %29 = arith.extui %28 : i1 to i32
    %c0_i32_18 = arith.constant 0 : i32
    %30 = arith.cmpi ne, %29, %c0_i32_18 : i32
    scf.if %30 {
      %c0_19 = arith.constant 0 : index
      %c0_20 = arith.constant 0 : index
      %31 = vector.load %arg16[%c0_19, %c0_20] : memref<8x32xf32, #tpu.memory_space<vmem>>, vector<8x32xf32>
      %c0_21 = arith.constant 0 : index
      %c0_22 = arith.constant 0 : index
      %32 = vector.load %arg18[%c0_21, %c0_22] : memref<8x32xf32, #tpu.memory_space<vmem>>, vector<8x32xf32>
      %33 = arith.addf %31, %32 : vector<8x32xf32>
      %c0_23 = arith.constant 0 : index
      %c0_24 = arith.constant 0 : index
      %34 = vector.load %arg14[%c0_23, %c0_24] : memref<1x32xf32, #tpu.memory_space<vmem>>, vector<1x32xf32>
      %35 = vector.broadcast %34 : vector<1x32xf32> to vector<8x32xf32>
      %36 = arith.addf %33, %35 : vector<8x32xf32>
      %c0_25 = arith.constant 0 : index
      %c0_26 = arith.constant 0 : index
      %c0_27 = arith.constant 0 : index
      %37 = vector.load %arg15[%c0_25, %c0_26, %c0_27] : memref<1x8x32xf32, #tpu.memory_space<vmem>>, vector<1x8x32xf32>
      %38 = vector.shape_cast %37 : vector<1x8x32xf32> to vector<8x32xf32>
      %39 = vector.shape_cast %36 : vector<8x32xf32> to vector<1x8x32xf32>
      tpu.vector_store %arg15[%c0_25, %c0_26, %c0_27], %39 {strides = array<i32>} : memref<1x8x32xf32, #tpu.memory_space<vmem>>, vector<1x8x32xf32>,
    } else {
    }
    return
  }
  func.func @transform_0(%arg0: i32, %arg1: i32) -> (i32, i32, i32) {
    %c0_i32 = arith.constant 0 : i32
    %c0_i32_0 = arith.constant 0 : i32
    %c0_i32_1 = arith.constant 0 : i32
    return %arg0, %c0_i32, %c0_i32_0 : i32, i32, i32
  }
  func.func @transform_1(%arg0: i32, %arg1: i32) -> (i32, i32) {
    %c0_i32 = arith.constant 0 : i32
    %c0_i32_0 = arith.constant 0 : i32
    %c0_i32_1 = arith.constant 0 : i32
    return %c0_i32, %c0_i32_0 : i32, i32
  }
  func.func @transform_2(%arg0: i32, %arg1: i32) -> (i32, i32) {
    %c0_i32 = arith.constant 0 : i32
    %c0_i32_0 = arith.constant 0 : i32
    %c0_i32_1 = arith.constant 0 : i32
    return %c0_i32, %c0_i32_0 : i32, i32
  }
  func.func @transform_3(%arg0: i32, %arg1: i32) -> (i32, i32) {
    %c0_i32 = arith.constant 0 : i32
    %c0_i32_0 = arith.constant 0 : i32
    %c0_i32_1 = arith.constant 0 : i32
    return %c0_i32, %c0_i32_0 : i32, i32
  }
  func.func @transform_4(%arg0: i32, %arg1: i32) -> (i32, i32) {
    %c0_i32 = arith.constant 0 : i32
    %c0_i32_0 = arith.constant 0 : i32
    %c0_i32_1 = arith.constant 0 : i32
    return %c0_i32, %c0_i32_0 : i32, i32
  }
  func.func @transform_5(%arg0: i32, %arg1: i32) -> (i32, i32, i32) {
    %c0_i32 = arith.constant 0 : i32
    %c0_i32_0 = arith.constant 0 : i32
    %c0_i32_1 = arith.constant 0 : i32
    %c0_i32_2 = arith.constant 0 : i32
    return %c0_i32, %c0_i32_0, %c0_i32_1 : i32, i32, i32
  }
  func.func @transform_6(%arg0: i32, %arg1: i32) -> (i32, i32) {
    %c0_i32 = arith.constant 0 : i32
    %c0_i32_0 = arith.constant 0 : i32
    %c0_i32_1 = arith.constant 0 : i32
    return %c0_i32, %c0_i32_0 : i32, i32
  }
  func.func @transform_7(%arg0: i32, %arg1: i32) -> (i32, i32) {
    %c0_i32 = arith.constant 0 : i32
    %c0_i32_0 = arith.constant 0 : i32
    %c0_i32_1 = arith.constant 0 : i32
    return %c0_i32, %c0_i32_0 : i32, i32
  }
  func.func @transform_8(%arg0: i32, %arg1: i32) -> (i32, i32) {
    %c0_i32 = arith.constant 0 : i32
    %c0_i32_0 = arith.constant 0 : i32
    %c0_i32_1 = arith.constant 0 : i32
    return %c0_i32, %c0_i32_0 : i32, i32
  }
  func.func @transform_9(%arg0: i32, %arg1: i32) -> (i32, i32) {
    %c0_i32 = arith.constant 0 : i32
    %c0_i32_0 = arith.constant 0 : i32
    return %c0_i32, %arg1 : i32, i32
  }
  func.func @transform_10(%arg0: i32, %arg1: i32) -> (i32, i32) {
    %c0_i32 = arith.constant 0 : i32
    %c0_i32_0 = arith.constant 0 : i32
    return %c0_i32, %arg1 : i32, i32
  }
  func.func @transform_11(%arg0: i32, %arg1: i32) -> (i32, i32) {
    %c0_i32 = arith.constant 0 : i32
    %c0_i32_0 = arith.constant 0 : i32
    return %arg1, %c0_i32 : i32, i32
  }
  func.func @transform_12(%arg0: i32, %arg1: i32) -> (i32, i32) {
    %c0_i32 = arith.constant 0 : i32
    %c0_i32_0 = arith.constant 0 : i32
    %c0_i32_1 = arith.constant 0 : i32
    return %c0_i32, %c0_i32_0 : i32, i32
  }
  func.func @transform_13(%arg0: i32, %arg1: i32) -> (i32, i32, i32) {
    %c0_i32 = arith.constant 0 : i32
    %c0_i32_0 = arith.constant 0 : i32
    %c0_i32_1 = arith.constant 0 : i32
    return %arg0, %c0_i32, %c0_i32_0 : i32, i32, i32
  }
}

module attributes {stable_mosaic.version = 11 : i64} {
  func.func @_esm_layer_kernel(%arg0: i32, %arg1: i32, %arg2: memref<1x8x32xf32, #tpu.memory_space<vmem>>, %arg3: memref<1x32xf32, #tpu.memory_space<vmem>>, %arg4: memref<1x32xf32, #tpu.memory_space<vmem>>, %arg5: memref<32x96xbf16, #tpu.memory_space<vmem>>, %arg6: memref<1x96xf32, #tpu.memory_space<vmem>>, %arg7: memref<4x8x32xbf16, #tpu.memory_space<vmem>>, %arg8: memref<1x32xf32, #tpu.memory_space<vmem>>, %arg9: memref<1x32xf32, #tpu.memory_space<vmem>>, %arg10: memref<1x32xf32, #tpu.memory_space<vmem>>, %arg11: memref<32x64xbf16, #tpu.memory_space<vmem>>, %arg12: memref<1x64xf32, #tpu.memory_space<vmem>>, %arg13: memref<64x32xbf16, #tpu.memory_space<vmem>>, %arg14: memref<1x32xf32, #tpu.memory_space<vmem>>, %arg15: memref<1x8x32xf32, #tpu.memory_space<vmem>>, %arg16: memref<8x32xf32, #tpu.memory_space<vmem>>, %arg17: memref<8x32xbf16, #tpu.memory_space<vmem>>, %arg18: memref<8x32xf32, #tpu.memory_space<vmem>>) attributes {dimension_semantics = [#tpu.dimension_semantics<parallel>, #tpu.dimension_semantics<arbitrary>], iteration_bounds = array<i64: 2, 1>, scalar_prefetch = 0 : i64, scratch_operands = 3 : i64, tpu.core_type = #tpu.core_type<tc>, window_params = [{transform_indices = @transform_0, window_bounds = array<i64: 1, 8, 32>}, {pipeline_mode = #tpu.pipeline_mode<synchronous>, transform_indices = @transform_1, window_bounds = array<i64: 1, 32>}, {pipeline_mode = #tpu.pipeline_mode<synchronous>, transform_indices = @transform_2, window_bounds = array<i64: 1, 32>}, {pipeline_mode = #tpu.pipeline_mode<synchronous>, transform_indices = @transform_3, window_bounds = array<i64: 32, 96>}, {pipeline_mode = #tpu.pipeline_mode<synchronous>, transform_indices = @transform_4, window_bounds = array<i64: 1, 96>}, {pipeline_mode = #tpu.pipeline_mode<synchronous>, transform_indices = @transform_5, window_bounds = array<i64: 4, 8, 32>}, {pipeline_mode = #tpu.pipeline_mode<synchronous>, transform_indices = @transform_6, window_bounds = array<i64: 1, 32>}, {pipeline_mode = #tpu.pipeline_mode<synchronous>, transform_indices = @transform_7, window_bounds = array<i64: 1, 32>}, {pipeline_mode = #tpu.pipeline_mode<synchronous>, transform_indices = @transform_8, window_bounds = array<i64: 1, 32>}, {transform_indices = @transform_9, window_bounds = array<i64: 32, 64>}, {transform_indices = @transform_10, window_bounds = array<i64: 1, 64>}, {transform_indices = @transform_11, window_bounds = array<i64: 64, 32>}, {pipeline_mode = #tpu.pipeline_mode<synchronous>, transform_indices = @transform_12, window_bounds = array<i64: 1, 32>}, {transform_indices = @transform_13, window_bounds = array<i64: 1, 8, 32>}]} {
    %c0_i32 = arith.constant 0 : i32
    %0 = arith.cmpi eq, %arg1, %c0_i32 : i32
    %1 = arith.extui %0 : i1 to i32
    %c0_i32_0 = arith.constant 0 : i32
    %2 = arith.cmpi ne, %1, %c0_i32_0 : i32
    scf.if %2 {
      %c0_19 = arith.constant 0 : index
      %c0_20 = arith.constant 0 : index
      %c0_21 = arith.constant 0 : index
      %31 = vector.load %arg2[%c0_19, %c0_20, %c0_21] : memref<1x8x32xf32, #tpu.memory_space<vmem>>, vector<1x8x32xf32>
      %32 = vector.shape_cast %31 : vector<1x8x32xf32> to vector<8x32xf32>
      %c0_22 = arith.constant 0 : index
      %c0_23 = arith.constant 0 : index
      %33 = vector.load %arg3[%c0_22, %c0_23] : memref<1x32xf32, #tpu.memory_space<vmem>>, vector<1x32xf32>
      %c0_24 = arith.constant 0 : index
      %c0_25 = arith.constant 0 : index
      %34 = vector.load %arg4[%c0_24, %c0_25] : memref<1x32xf32, #tpu.memory_space<vmem>>, vector<1x32xf32>
      %cst_26 = arith.constant dense<0.000000e+00> : vector<8xf32>
      %35 = vector.multi_reduction <add>, %32, %cst_26 [1] : vector<8x32xf32> to vector<8xf32>
      %36 = vector.shape_cast %35 : vector<8xf32> to vector<8x1xf32>
      %cst_27 = arith.constant 3.200000e+01 : f32
      %37 = vector.broadcast %cst_27 : f32 to vector<8x1xf32>
      %38 = arith.divf %36, %37 : vector<8x1xf32>
      %39 = vector.broadcast %38 : vector<8x1xf32> to vector<8x32xf32>
      %40 = arith.subf %32, %39 : vector<8x32xf32>
      %41 = arith.mulf %40, %40 : vector<8x32xf32>
      %cst_28 = arith.constant dense<0.000000e+00> : vector<8xf32>
      %42 = vector.multi_reduction <add>, %41, %cst_28 [1] : vector<8x32xf32> to vector<8xf32>
      %43 = vector.shape_cast %42 : vector<8xf32> to vector<8x1xf32>
      %cst_29 = arith.constant 3.200000e+01 : f32
      %44 = vector.broadcast %cst_29 : f32 to vector<8x1xf32>
      %45 = arith.divf %43, %44 : vector<8x1xf32>
      %cst_30 = arith.constant 9.99999974E-6 : f32
      %46 = vector.broadcast %cst_30 : f32 to vector<8x1xf32>
      %47 = arith.addf %45, %46 : vector<8x1xf32>
      %48 = math.rsqrt %47 : vector<8x1xf32>
      %49 = vector.broadcast %48 : vector<8x1xf32> to vector<8x32xf32>
      %50 = arith.mulf %40, %49 : vector<8x32xf32>
      %51 = vector.broadcast %33 : vector<1x32xf32> to vector<8x32xf32>
      %52 = arith.mulf %50, %51 : vector<8x32xf32>
      %53 = vector.broadcast %34 : vector<1x32xf32> to vector<8x32xf32>
      %54 = arith.addf %52, %53 : vector<8x32xf32>
      %55 = arith.truncf %54 : vector<8x32xf32> to vector<8x32xbf16>
      %c0_31 = arith.constant 0 : index
      %c0_32 = arith.constant 0 : index
      %56 = vector.load %arg5[%c0_31, %c0_32] : memref<32x96xbf16, #tpu.memory_space<vmem>>, vector<32x96xbf16>
      %cst_33 = arith.constant dense<0.000000e+00> : vector<8x96xf32>
      %57 = tpu.matmul %55, %56, %cst_33 {dimension_numbers = #tpu.dot_dimension_numbers<[1], [0], [0], [1], [0, 0, 1, 1], [], []>} : vector<8x32xbf16>, vector<32x96xbf16>, vector<8x96xf32> -> vector<8x96xf32>
      %c0_34 = arith.constant 0 : index
      %c0_35 = arith.constant 0 : index
      %58 = vector.load %arg6[%c0_34, %c0_35] : memref<1x96xf32, #tpu.memory_space<vmem>>, vector<1x96xf32>
      %59 = vector.broadcast %58 : vector<1x96xf32> to vector<8x96xf32>
      %60 = arith.addf %57, %59 : vector<8x96xf32>
      %61 = vector.extract_strided_slice %60 {offsets = [0, 0], sizes = [8, 32], strides = [1, 1]} : vector<8x96xf32> to vector<8x32xf32>
      %62 = vector.extract_strided_slice %61 {offsets = [0, 0], sizes = [8, 8], strides = [1, 1]} : vector<8x32xf32> to vector<8x8xf32>
      %63 = vector.extract_strided_slice %61 {offsets = [0, 8], sizes = [8, 8], strides = [1, 1]} : vector<8x32xf32> to vector<8x8xf32>
      %64 = vector.extract_strided_slice %61 {offsets = [0, 16], sizes = [8, 8], strides = [1, 1]} : vector<8x32xf32> to vector<8x8xf32>
      %65 = vector.extract_strided_slice %61 {offsets = [0, 24], sizes = [8, 8], strides = [1, 1]} : vector<8x32xf32> to vector<8x8xf32>
      %66 = vector.shape_cast %62 : vector<8x8xf32> to vector<1x8x8xf32>
      %67 = vector.shape_cast %63 : vector<8x8xf32> to vector<1x8x8xf32>
      %68 = vector.shape_cast %64 : vector<8x8xf32> to vector<1x8x8xf32>
      %69 = vector.shape_cast %65 : vector<8x8xf32> to vector<1x8x8xf32>
      %70 = tpu.concatenate %66, %67, %68, %69 in 0 : vector<1x8x8xf32>, vector<1x8x8xf32>, vector<1x8x8xf32>, vector<1x8x8xf32> -> vector<4x8x8xf32>
      %71 = arith.truncf %70 : vector<4x8x8xf32> to vector<4x8x8xbf16>
      %72 = vector.extract_strided_slice %60 {offsets = [0, 32], sizes = [8, 32], strides = [1, 1]} : vector<8x96xf32> to vector<8x32xf32>
      %73 = vector.extract_strided_slice %72 {offsets = [0, 0], sizes = [8, 8], strides = [1, 1]} : vector<8x32xf32> to vector<8x8xf32>
      %74 = vector.extract_strided_slice %72 {offsets = [0, 8], sizes = [8, 8], strides = [1, 1]} : vector<8x32xf32> to vector<8x8xf32>
      %75 = vector.extract_strided_slice %72 {offsets = [0, 16], sizes = [8, 8], strides = [1, 1]} : vector<8x32xf32> to vector<8x8xf32>
      %76 = vector.extract_strided_slice %72 {offsets = [0, 24], sizes = [8, 8], strides = [1, 1]} : vector<8x32xf32> to vector<8x8xf32>
      %77 = vector.shape_cast %73 : vector<8x8xf32> to vector<1x8x8xf32>
      %78 = vector.shape_cast %74 : vector<8x8xf32> to vector<1x8x8xf32>
      %79 = vector.shape_cast %75 : vector<8x8xf32> to vector<1x8x8xf32>
      %80 = vector.shape_cast %76 : vector<8x8xf32> to vector<1x8x8xf32>
      %81 = tpu.concatenate %77, %78, %79, %80 in 0 : vector<1x8x8xf32>, vector<1x8x8xf32>, vector<1x8x8xf32>, vector<1x8x8xf32> -> vector<4x8x8xf32>
      %82 = arith.truncf %81 : vector<4x8x8xf32> to vector<4x8x8xbf16>
      %83 = vector.extract_strided_slice %60 {offsets = [0, 64], sizes = [8, 32], strides = [1, 1]} : vector<8x96xf32> to vector<8x32xf32>
      %84 = vector.extract_strided_slice %83 {offsets = [0, 0], sizes = [8, 8], strides = [1, 1]} : vector<8x32xf32> to vector<8x8xf32>
      %85 = vector.extract_strided_slice %83 {offsets = [0, 8], sizes = [8, 8], strides = [1, 1]} : vector<8x32xf32> to vector<8x8xf32>
      %86 = vector.extract_strided_slice %83 {offsets = [0, 16], sizes = [8, 8], strides = [1, 1]} : vector<8x32xf32> to vector<8x8xf32>
      %87 = vector.extract_strided_slice %83 {offsets = [0, 24], sizes = [8, 8], strides = [1, 1]} : vector<8x32xf32> to vector<8x8xf32>
      %88 = vector.shape_cast %84 : vector<8x8xf32> to vector<1x8x8xf32>
      %89 = vector.shape_cast %85 : vector<8x8xf32> to vector<1x8x8xf32>
      %90 = vector.shape_cast %86 : vector<8x8xf32> to vector<1x8x8xf32>
      %91 = vector.shape_cast %87 : vector<8x8xf32> to vector<1x8x8xf32>
      %92 = tpu.concatenate %88, %89, %90, %91 in 0 : vector<1x8x8xf32>, vector<1x8x8xf32>, vector<1x8x8xf32>, vector<1x8x8xf32> -> vector<4x8x8xf32>
      %93 = arith.truncf %92 : vector<4x8x8xf32> to vector<4x8x8xbf16>
      "tpu.trace_start"() <{level = 10 : i32, message = "hqd,hkd->hqk"}> : () -> ()
      %cst_36 = arith.constant dense<0.000000e+00> : vector<4x8x8xf32>
      %94 = tpu.matmul %71, %82, %cst_36 {dimension_numbers = #tpu.dot_dimension_numbers<[2], [2], [1], [1], [0, 0, 0, 1, 1, 1], [0], [0]>} : vector<4x8x8xbf16>, vector<4x8x8xbf16>, vector<4x8x8xf32> -> vector<4x8x8xf32>
      "tpu.trace_stop"() : () -> ()
      %cst_37 = arith.constant dense<0xFF800000> : vector<4x8xf32>
      %95 = vector.multi_reduction <maximumf>, %94, %cst_37 [2] : vector<4x8x8xf32> to vector<4x8xf32>
      %96 = vector.shape_cast %95 : vector<4x8xf32> to vector<4x8x1xf32>
      %97 = vector.broadcast %96 : vector<4x8x1xf32> to vector<4x8x8xf32>
      %98 = arith.subf %94, %97 : vector<4x8x8xf32>
      %99 = math.exp %98 : vector<4x8x8xf32>
      %cst_38 = arith.constant dense<0.000000e+00> : vector<4x8xf32>
      %100 = vector.multi_reduction <add>, %99, %cst_38 [2] : vector<4x8x8xf32> to vector<4x8xf32>
      %101 = vector.shape_cast %100 : vector<4x8xf32> to vector<4x8x1xf32>
      %102 = arith.truncf %99 : vector<4x8x8xf32> to vector<4x8x8xbf16>
      "tpu.trace_start"() <{level = 10 : i32, message = "hqk,hkd->hqd"}> : () -> ()
      %cst_39 = arith.constant dense<0.000000e+00> : vector<4x8x8xf32>
      %103 = tpu.matmul %102, %93, %cst_39 {dimension_numbers = #tpu.dot_dimension_numbers<[2], [1], [1], [2], [0, 0, 0, 1, 1, 2], [0], [0]>} : vector<4x8x8xbf16>, vector<4x8x8xbf16>, vector<4x8x8xf32> -> vector<4x8x8xf32>
      "tpu.trace_stop"() : () -> ()
      %104 = tpu.reciprocal %101 {approx = true} : vector<4x8x1xf32> -> vector<4x8x1xf32>
      %105 = vector.broadcast %104 : vector<4x8x1xf32> to vector<4x8x8xf32>
      %106 = arith.mulf %103, %105 : vector<4x8x8xf32>
      %107 = arith.truncf %106 : vector<4x8x8xf32> to vector<4x8x8xbf16>
      %c0_40 = arith.constant 0 : index
      %c0_41 = arith.constant 0 : index
      %c0_42 = arith.constant 0 : index
      %108 = vector.load %arg7[%c0_40, %c0_41, %c0_42] : memref<4x8x32xbf16, #tpu.memory_space<vmem>>, vector<4x8x32xbf16>
      "tpu.trace_start"() <{level = 10 : i32, message = "hqd,hde->hqe"}> : () -> ()
      %cst_43 = arith.constant dense<0.000000e+00> : vector<4x8x32xf32>
      %109 = tpu.matmul %107, %108, %cst_43 {dimension_numbers = #tpu.dot_dimension_numbers<[2], [1], [1], [2], [0, 0, 0, 1, 1, 2], [0], [0]>} : vector<4x8x8xbf16>, vector<4x8x32xbf16>, vector<4x8x32xf32> -> vector<4x8x32xf32>
      "tpu.trace_stop"() : () -> ()
      %cst_44 = arith.constant dense<0.000000e+00> : vector<8x32xf32>
      %110 = vector.multi_reduction <add>, %109, %cst_44 [0] : vector<4x8x32xf32> to vector<8x32xf32>
      %c0_45 = arith.constant 0 : index
      %c0_46 = arith.constant 0 : index
      %111 = vector.load %arg8[%c0_45, %c0_46] : memref<1x32xf32, #tpu.memory_space<vmem>>, vector<1x32xf32>
      %112 = vector.broadcast %111 : vector<1x32xf32> to vector<8x32xf32>
      %113 = arith.addf %110, %112 : vector<8x32xf32>
      %114 = arith.addf %32, %113 : vector<8x32xf32>
      %c0_47 = arith.constant 0 : index
      %c0_48 = arith.constant 0 : index
      %115 = vector.load %arg16[%c0_47, %c0_48] : memref<8x32xf32, #tpu.memory_space<vmem>>, vector<8x32xf32>
      tpu.vector_store %arg16[%c0_47, %c0_48], %114 {strides = array<i32>} : memref<8x32xf32, #tpu.memory_space<vmem>>, vector<8x32xf32>,
      %c0_49 = arith.constant 0 : index
      %c0_50 = arith.constant 0 : index
      %116 = vector.load %arg9[%c0_49, %c0_50] : memref<1x32xf32, #tpu.memory_space<vmem>>, vector<1x32xf32>
      %c0_51 = arith.constant 0 : index
      %c0_52 = arith.constant 0 : index
      %117 = vector.load %arg10[%c0_51, %c0_52] : memref<1x32xf32, #tpu.memory_space<vmem>>, vector<1x32xf32>
      %cst_53 = arith.constant dense<0.000000e+00> : vector<8xf32>
      %118 = vector.multi_reduction <add>, %114, %cst_53 [1] : vector<8x32xf32> to vector<8xf32>
      %119 = vector.shape_cast %118 : vector<8xf32> to vector<8x1xf32>
      %cst_54 = arith.constant 3.200000e+01 : f32
      %120 = vector.broadcast %cst_54 : f32 to vector<8x1xf32>
      %121 = arith.divf %119, %120 : vector<8x1xf32>
      %122 = vector.broadcast %121 : vector<8x1xf32> to vector<8x32xf32>
      %123 = arith.subf %114, %122 : vector<8x32xf32>
      %124 = arith.mulf %123, %123 : vector<8x32xf32>
      %cst_55 = arith.constant dense<0.000000e+00> : vector<8xf32>
      %125 = vector.multi_reduction <add>, %124, %cst_55 [1] : vector<8x32xf32> to vector<8xf32>
      %126 = vector.shape_cast %125 : vector<8xf32> to vector<8x1xf32>
      %cst_56 = arith.constant 3.200000e+01 : f32
      %127 = vector.broadcast %cst_56 : f32 to vector<8x1xf32>
      %128 = arith.divf %126, %127 : vector<8x1xf32>
      %cst_57 = arith.constant 9.99999974E-6 : f32
      %129 = vector.broadcast %cst_57 : f32 to vector<8x1xf32>
      %130 = arith.addf %128, %129 : vector<8x1xf32>
      %131 = math.rsqrt %130 : vector<8x1xf32>
      %132 = vector.broadcast %131 : vector<8x1xf32> to vector<8x32xf32>
      %133 = arith.mulf %123, %132 : vector<8x32xf32>
      %134 = vector.broadcast %116 : vector<1x32xf32> to vector<8x32xf32>
      %135 = arith.mulf %133, %134 : vector<8x32xf32>
      %136 = vector.broadcast %117 : vector<1x32xf32> to vector<8x32xf32>
      %137 = arith.addf %135, %136 : vector<8x32xf32>
      %138 = arith.truncf %137 : vector<8x32xf32> to vector<8x32xbf16>
      %c0_58 = arith.constant 0 : index
      %c0_59 = arith.constant 0 : index
      %139 = vector.load %arg17[%c0_58, %c0_59] : memref<8x32xbf16, #tpu.memory_space<vmem>>, vector<8x32xbf16>
      tpu.vector_store %arg17[%c0_58, %c0_59], %138 {strides = array<i32>} : memref<8x32xbf16, #tpu.memory_space<vmem>>, vector<8x32xbf16>,
      %cst_60 = arith.constant 0.000000e+00 : f32
      %140 = vector.broadcast %cst_60 : f32 to vector<8x32xf32>
      %c0_61 = arith.constant 0 : index
      %c0_62 = arith.constant 0 : index
      %141 = vector.load %arg18[%c0_61, %c0_62] : memref<8x32xf32, #tpu.memory_space<vmem>>, vector<8x32xf32>
      tpu.vector_store %arg18[%c0_61, %c0_62], %140 {strides = array<i32>} : memref<8x32xf32, #tpu.memory_space<vmem>>, vector<8x32xf32>,
    } else {
    }
    %c0 = arith.constant 0 : index
    %c0_1 = arith.constant 0 : index
    %3 = vector.load %arg17[%c0, %c0_1] : memref<8x32xbf16, #tpu.memory_space<vmem>>, vector<8x32xbf16>
    %c0_2 = arith.constant 0 : index
    %c0_3 = arith.constant 0 : index
    %4 = vector.load %arg11[%c0_2, %c0_3] : memref<32x64xbf16, #tpu.memory_space<vmem>>, vector<32x64xbf16>
    %cst = arith.constant dense<0.000000e+00> : vector<8x64xf32>
    %5 = tpu.matmul %3, %4, %cst {dimension_numbers = #tpu.dot_dimension_numbers<[1], [0], [0], [1], [0, 0, 1, 1], [], []>} : vector<8x32xbf16>, vector<32x64xbf16>, vector<8x64xf32> -> vector<8x64xf32>
    %c0_4 = arith.constant 0 : index
    %c0_5 = arith.constant 0 : index
    %6 = vector.load %arg12[%c0_4, %c0_5] : memref<1x64xf32, #tpu.memory_space<vmem>>, vector<1x64xf32>
    %7 = vector.broadcast %6 : vector<1x64xf32> to vector<8x64xf32>
    %8 = arith.addf %5, %7 : vector<8x64xf32>
    %cst_6 = arith.constant 5.000000e-01 : f32
    %9 = vector.broadcast %cst_6 : f32 to vector<8x64xf32>
    %10 = arith.mulf %9, %8 : vector<8x64xf32>
    %cst_7 = arith.constant 4.471500e-02 : f32
    %11 = vector.broadcast %cst_7 : f32 to vector<8x64xf32>
    %12 = arith.mulf %11, %8 : vector<8x64xf32>
    %13 = arith.mulf %12, %8 : vector<8x64xf32>
    %14 = arith.mulf %13, %8 : vector<8x64xf32>
    %15 = arith.addf %8, %14 : vector<8x64xf32>
    %cst_8 = arith.constant 0.797884583 : f32
    %16 = vector.broadcast %cst_8 : f32 to vector<8x64xf32>
    %17 = arith.mulf %16, %15 : vector<8x64xf32>
    %18 = math.tanh %17 : vector<8x64xf32>
    %cst_9 = arith.constant 1.000000e+00 : f32
    %19 = vector.broadcast %cst_9 : f32 to vector<8x64xf32>
    %20 = arith.addf %19, %18 : vector<8x64xf32>
    %21 = arith.mulf %10, %20 : vector<8x64xf32>
    %c0_10 = arith.constant 0 : index
    %c0_11 = arith.constant 0 : index
    %22 = vector.load %arg18[%c0_10, %c0_11] : memref<8x32xf32, #tpu.memory_space<vmem>>, vector<8x32xf32>
    %23 = arith.truncf %21 : vector<8x64xf32> to vector<8x64xbf16>
    %c0_12 = arith.constant 0 : index
    %c0_13 = arith.constant 0 : index
    %24 = vector.load %arg13[%c0_12, %c0_13] : memref<64x32xbf16, #tpu.memory_space<vmem>>, vector<64x32xbf16>
    %cst_14 = arith.constant dense<0.000000e+00> : vector<8x32xf32>
    %25 = tpu.matmul %23, %24, %cst_14 {dimension_numbers = #tpu.dot_dimension_numbers<[1], [0], [0], [1], [0, 0, 1, 1], [], []>} : vector<8x64xbf16>, vector<64x32xbf16>, vector<8x32xf32> -> vector<8x32xf32>
    %26 = arith.addf %22, %25 : vector<8x32xf32>
    %c0_15 = arith.constant 0 : index
    %c0_16 = arith.constant 0 : index
    %27 = vector.load %arg18[%c0_15, %c0_16] : memref<8x32xf32, #tpu.memory_space<vmem>>, vector<8x32xf32>
    tpu.vector_store %arg18[%c0_15, %c0_16], %26 {strides = array<i32>} : memref<8x32xf32, #tpu.memory_space<vmem>>, vector<8x32xf32>,
    %c0_i32_17 = arith.constant 0 : i32
    %28 = arith.cmpi eq, %arg1, %c0_i32_17 : i32
    %29 = arith.extui %28 : i1 to i32
    %c0_i32_18 = arith.constant 0 : i32
    %30 = arith.cmpi ne, %29, %c0_i32_18 : i32
    scf.if %30 {
      %c0_19 = arith.constant 0 : index
      %c0_20 = arith.constant 0 : index
      %31 = vector.load %arg16[%c0_19, %c0_20] : memref<8x32xf32, #tpu.memory_space<vmem>>, vector<8x32xf32>
      %c0_21 = arith.constant 0 : index
      %c0_22 = arith.constant 0 : index
      %32 = vector.load %arg18[%c0_21, %c0_22] : memref<8x32xf32, #tpu.memory_space<vmem>>, vector<8x32xf32>
      %33 = arith.addf %31, %32 : vector<8x32xf32>
      %c0_23 = arith.constant 0 : index
      %c0_24 = arith.constant 0 : index
      %34 = vector.load %arg14[%c0_23, %c0_24] : memref<1x32xf32, #tpu.memory_space<vmem>>, vector<1x32xf32>
      %35 = vector.broadcast %34 : vector<1x32xf32> to vector<8x32xf32>
      %36 = arith.addf %33, %35 : vector<8x32xf32>
      %c0_25 = arith.constant 0 : index
      %c0_26 = arith.constant 0 : index
      %c0_27 = arith.constant 0 : index
      %37 = vector.load %arg15[%c0_25, %c0_26, %c0_27] : memref<1x8x32xf32, #tpu.memory_space<vmem>>, vector<1x8x32xf32>
      %38 = vector.shape_cast %37 : vector<1x8x32xf32> to vector<8x32xf32>
      %39 = vector.shape_cast %36 : vector<8x32xf32> to vector<1x8x32xf32>
      tpu.vector_store %arg15[%c0_25, %c0_26, %c0_27], %39 {strides = array<i32>} : memref<1x8x32xf32, #tpu.memory_space<vmem>>, vector<1x8x32xf32>,
    } else {
    }
    return
  }
  func.func @transform_0(%arg0: i32, %arg1: i32) -> (i32, i32, i32) {
    %c0_i32 = arith.constant 0 : i32
    %c0_i32_0 = arith.constant 0 : i32
    %c0_i32_1 = arith.constant 0 : i32
    return %arg0, %c0_i32, %c0_i32_0 : i32, i32, i32
  }
  func.func @transform_1(%arg0: i32, %arg1: i32) -> (i32, i32) {
    %c0_i32 = arith.constant 0 : i32
    %c0_i32_0 = arith.constant 0 : i32
    %c0_i32_1 = arith.constant 0 : i32
    return %c0_i32, %c0_i32_0 : i32, i32
  }
  func.func @transform_2(%arg0: i32, %arg1: i32) -> (i32, i32) {
    %c0_i32 = arith.constant 0 : i32
    %c0_i32_0 = arith.constant 0 : i32
    %c0_i32_1 = arith.constant 0 : i32
    return %c0_i32, %c0_i32_0 : i32, i32
  }
  func.func @transform_3(%arg0: i32, %arg1: i32) -> (i32, i32) {
    %c0_i32 = arith.constant 0 : i32
    %c0_i32_0 = arith.constant 0 : i32
    %c0_i32_1 = arith.constant 0 : i32
    return %c0_i32, %c0_i32_0 : i32, i32
  }
  func.func @transform_4(%arg0: i32, %arg1: i32) -> (i32, i32) {
    %c0_i32 = arith.constant 0 : i32
    %c0_i32_0 = arith.constant 0 : i32
    %c0_i32_1 = arith.constant 0 : i32
    return %c0_i32, %c0_i32_0 : i32, i32
  }
  func.func @transform_5(%arg0: i32, %arg1: i32) -> (i32, i32, i32) {
    %c0_i32 = arith.constant 0 : i32
    %c0_i32_0 = arith.constant 0 : i32
    %c0_i32_1 = arith.constant 0 : i32
    %c0_i32_2 = arith.constant 0 : i32
    return %c0_i32, %c0_i32_0, %c0_i32_1 : i32, i32, i32
  }
  func.func @transform_6(%arg0: i32, %arg1: i32) -> (i32, i32) {
    %c0_i32 = arith.constant 0 : i32
    %c0_i32_0 = arith.constant 0 : i32
    %c0_i32_1 = arith.constant 0 : i32
    return %c0_i32, %c0_i32_0 : i32, i32
  }
  func.func @transform_7(%arg0: i32, %arg1: i32) -> (i32, i32) {
    %c0_i32 = arith.constant 0 : i32
    %c0_i32_0 = arith.constant 0 : i32
    %c0_i32_1 = arith.constant 0 : i32
    return %c0_i32, %c0_i32_0 : i32, i32
  }
  func.func @transform_8(%arg0: i32, %arg1: i32) -> (i32, i32) {
    %c0_i32 = arith.constant 0 : i32
    %c0_i32_0 = arith.constant 0 : i32
    %c0_i32_1 = arith.constant 0 : i32
    return %c0_i32, %c0_i32_0 : i32, i32
  }
  func.func @transform_9(%arg0: i32, %arg1: i32) -> (i32, i32) {
    %c0_i32 = arith.constant 0 : i32
    %c0_i32_0 = arith.constant 0 : i32
    return %c0_i32, %arg1 : i32, i32
  }
  func.func @transform_10(%arg0: i32, %arg1: i32) -> (i32, i32) {
    %c0_i32 = arith.constant 0 : i32
    %c0_i32_0 = arith.constant 0 : i32
    return %c0_i32, %arg1 : i32, i32
  }
  func.func @transform_11(%arg0: i32, %arg1: i32) -> (i32, i32) {
    %c0_i32 = arith.constant 0 : i32
    %c0_i32_0 = arith.constant 0 : i32
    return %arg1, %c0_i32 : i32, i32
  }
  func.func @transform_12(%arg0: i32, %arg1: i32) -> (i32, i32) {
    %c0_i32 = arith.constant 0 : i32
    %c0_i32_0 = arith.constant 0 : i32
    %c0_i32_1 = arith.constant 0 : i32
    return %c0_i32, %c0_i32_0 : i32, i32
  }
  func.func @transform_13(%arg0: i32, %arg1: i32) -> (i32, i32, i32) {
    %c0_i32 = arith.constant 0 : i32
    %c0_i32_0 = arith.constant 0 : i32
    %c0_i32_1 = arith.constant 0 : i32
    return %arg0, %c0_i32, %c0_i32_0 : i32, i32, i32
  }
}

</mosaic_0001>

<llo_original>
// kernel: self_attention_module.3
$region0: #{self_attention_module.3}
  #allocation0 [shape = 'u32[]', space=smem, size = 0x4, offset = 0x4, fixed_abs, tag = 'smem constant byte address 0x4 - core index']
  #allocation1 [shape = 'u32[144,128]{1,0:T(1,128)}', space=vmem, size = 0x12000, scoped, tag = 'internal scratch']
  #allocation2 [shape = 'f32[8,32]{1,0:T(8,128)}', space=vmem, size = 0x1000, scoped, tag = 'scratch operand']
  #allocation3 [shape = 'bf16[8,32]{1,0:T(8,128)(2,1)}', space=vmem, size = 0x800, scoped, tag = 'scratch operand']
  #allocation4 [shape = 'f32[8,32]{1,0:T(8,128)}', space=vmem, size = 0x1000, scoped, tag = 'scratch operand']
  %s0 = inlined_call_operand.hbm [shape: f32[2,8,32], index: 0, kind: input, shape index: {}, may-alias: {0,13}]
  %s1 = inlined_call_operand.vmem [shape: f32[1,32], index: 1, kind: input, shape index: {}]
  %s2 = inlined_call_operand.vmem [shape: f32[1,32], index: 2, kind: input, shape index: {}]
  %s3 = inlined_call_operand.vmem [shape: bf16[32,96], index: 3, kind: input, shape index: {}]
  %s4 = inlined_call_operand.vmem [shape: f32[1,96], index: 4, kind: input, shape index: {}]
  %s5 = inlined_call_operand.vmem [shape: bf16[4,8,32], index: 5, kind: input, shape index: {}]
  %s6 = inlined_call_operand.vmem [shape: f32[1,32], index: 6, kind: input, shape index: {}]
  %s7 = inlined_call_operand.vmem [shape: f32[1,32], index: 7, kind: input, shape index: {}]
  %s8 = inlined_call_operand.vmem [shape: f32[1,32], index: 8, kind: input, shape index: {}]
  %s9 = inlined_call_operand.vmem [shape: bf16[32,64], index: 9, kind: input, shape index: {}]
  %s10 = inlined_call_operand.vmem [shape: f32[1,64], index: 10, kind: input, shape index: {}]
  %s11 = inlined_call_operand.vmem [shape: bf16[64,32], index: 11, kind: input, shape index: {}]
  %s12 = inlined_call_operand.vmem [shape: f32[1,32], index: 12, kind: input, shape index: {}]
  %s13 = inlined_call_operand.hbm [shape: f32[2,8,32], index: 13, kind: output, shape index: {}, may-alias: {0,13}]
  %s14 = sld [smem:[#allocation0]]
  $region97: #{self_attention_module.3} parent=0
    _
  %s16 = ssub.s32 1, %s14
  %s17 = scalar_select 0, %s16, %s14
  $region1: #{self_attention_module.3} parent=0
    #allocation5 [shape = 'u8[8192]{0}', space=vmem, size = 0x2000, scoped, tag = 'input window, operand 0']
    #allocation6 [shape = 's32[2]{0}', space=sflag, size = 0x8, scoped, tag = 'scoped memory for self_attention_module.3']
    #allocation7 [shape = 's32[2]{0}', space=sflag, size = 0x8, scoped, tag = 'scoped memory for self_attention_module.3']
    #allocation8 [shape = 'u8[8192]{0}', space=vmem, size = 0x2000, scoped, tag = 'output window, operand 0']
    %18 = vsyncpa [#allocation6], 0
    %s19 = scalar_lea.sflag [#allocation6], 1
    %20 = vsyncpa %s19, 0
    %21 = vsyncpa [#allocation7], 0
    %s22 = scalar_lea.sflag [#allocation7], 1
    %23 = vsyncpa %s22, 0
    loop: start=0, step=1, limit=4
    $region2: #{self_attention_module.3} parent=1 // loop_pre_header
      _
    $region3: #{self_attention_module.3} parent=1 // loop_header
      %s25 = sphi 0, %s29
      %p26 = scmp.ge.s32.totalorder %s25, 4
      %s32 = sphi 0, %s44
      %s33 = sphi 0, %s40
      %s34 = sphi 0, %s32
      %s35 = sphi 0, %s33
      %s36 = sphi 0, %s34
      %s37 = sphi 0, %s35
      %s47 = sphi 0, %s49
      %s50 = sphi 0, %s47
      %s51 = sphi 0, %s50
      %s67 = sphi 0, %s51
      %s71 = sphi 0, %s71
      %s73 = sphi 0, %s71
      %s74 = sphi 0, %s73
      %s88 = sphi 0, %s74
      %s92 = sphi 0, %s92
      %s94 = sphi 0, %s92
      %s95 = sphi 0, %s94
      %s109 = sphi 0, %s95
      %s113 = sphi 0, %s113
      %s115 = sphi 0, %s113
      %s116 = sphi 0, %s115
      %s130 = sphi 0, %s116
      %s134 = sphi 0, %s134
      %s136 = sphi 0, %s134
      %s137 = sphi 0, %s136
      %s151 = sphi 0, %s137
      %s155 = sphi 0, %s155
      %s157 = sphi 0, %s155
      %s158 = sphi 0, %s157
      %s172 = sphi 0, %s158
      %s176 = sphi 0, %s176
      %s178 = sphi 0, %s176
      %s179 = sphi 0, %s178
      %s193 = sphi 0, %s179
      %s197 = sphi 0, %s197
      %s199 = sphi 0, %s197
      %s200 = sphi 0, %s199
      %s214 = sphi 0, %s200
      %s218 = sphi 0, %s218
      %s220 = sphi 0, %s218
      %s221 = sphi 0, %s220
      %s235 = sphi 0, %s221
      %s241 = sphi 0, %s243
      %s244 = sphi 0, %s241
      %s245 = sphi 0, %s244
      %s261 = sphi 0, %s245
      %s267 = sphi 0, %s269
      %s270 = sphi 0, %s267
      %s271 = sphi 0, %s270
      %s287 = sphi 0, %s271
      %s293 = sphi 0, %s295
      %s296 = sphi 0, %s293
      %s297 = sphi 0, %s296
      %s313 = sphi 0, %s297
      %s317 = sphi 0, %s317
      %s319 = sphi 0, %s317
      %s320 = sphi 0, %s319
      %s334 = sphi 0, %s320
      %s340 = sphi 0, %s342
      %s343 = sphi 0, %s340
      %s344 = sphi 0, %s343
      %s360 = sphi 0, %s344
    $region4: #{self_attention_module.3} parent=1 // loop_header_branch
      %28 = sbr.rel (%p26) target = $region8
    $region5: #{self_attention_module.3} parent=1 // loop_body
      %s30 = ssub.s32 %s25, 1
      %s31 = ssub.s32 %s25, 2
      %s38 = sadd.s32 1, %s33
      %p39 = scmp.ge.s32.totalorder %s38, 1
      %s40 = scalar_select %p39, 0, %s38
      %s41 = sadd.s32 1, %s32
      %s42 = scalar_select %p39, %s41, %s32
      %p43 = scmp.ge.s32.totalorder %s42, 2
      %s44 = scalar_select %p43, 0, %s42
      %s45 = ssub.s32 %s32, %s44
      %p46 = scmp.eq.s32.totalorder %s45, 0
      %s48 = sadd.s32 %s47, 1
      %s49 = scalar_select %p46, %s47, %s48
      %p52 = pneg %p46
      %p53 = scmp.eq.s32.totalorder %s25, 1
      %p54 = por %p52, %p53
      %p55 = scmp.ne.s32.totalorder %s47, %s50
      %p56 = scmp.eq.s32.totalorder %s25, 0
      %p57 = por %p55, %p56
      %p58 = scmp.ne.s32.totalorder %s47, %s50
      %p59 = scmp.eq.s32.totalorder %s30, 1
      %p60 = por %p58, %p59
      %p61 = scmp.ne.s32.totalorder %s50, %s51
      %p62 = scmp.eq.s32.totalorder %s30, 0
      %p63 = por %p61, %p62
      %p64 = scmp.ne.s32.totalorder %s50, %s51
      %p65 = scmp.eq.s32.totalorder %s31, 1
      %p66 = por %p64, %p65
      %p68 = scmp.ne.s32.totalorder %s51, %s67
      %p69 = scmp.eq.s32.totalorder %s31, 0
      %p70 = por %p68, %p69
      %s72 = sadd.s32 %s71, 1
      %p75 = scmp.eq.s32.totalorder %s25, 1
      %p76 = scmp.ne.s32.totalorder %s71, %s73
      %p77 = scmp.eq.s32.totalorder %s25, 0
      %p78 = por %p76, %p77
      %p79 = scmp.ne.s32.totalorder %s71, %s73
      %p80 = scmp.eq.s32.totalorder %s30, 1
      %p81 = por %p79, %p80
      %p82 = scmp.ne.s32.totalorder %s73, %s74
      %p83 = scmp.eq.s32.totalorder %s30, 0
      %p84 = por %p82, %p83
      %p85 = scmp.ne.s32.totalorder %s73, %s74
      %p86 = scmp.eq.s32.totalorder %s31, 1
      %p87 = por %p85, %p86
      %p89 = scmp.ne.s32.totalorder %s74, %s88
      %p90 = scmp.eq.s32.totalorder %s31, 0
      %p91 = por %p89, %p90
      %s93 = sadd.s32 %s92, 1
      %p96 = scmp.eq.s32.totalorder %s25, 1
      %p97 = scmp.ne.s32.totalorder %s92, %s94
      %p98 = scmp.eq.s32.totalorder %s25, 0
      %p99 = por %p97, %p98
      %p100 = scmp.ne.s32.totalorder %s92, %s94
      %p101 = scmp.eq.s32.totalorder %s30, 1
      %p102 = por %p100, %p101
      %p103 = scmp.ne.s32.totalorder %s94, %s95
      %p104 = scmp.eq.s32.totalorder %s30, 0
      %p105 = por %p103, %p104
      %p106 = scmp.ne.s32.totalorder %s94, %s95
      %p107 = scmp.eq.s32.totalorder %s31, 1
      %p108 = por %p106, %p107
      %p110 = scmp.ne.s32.totalorder %s95, %s109
      %p111 = scmp.eq.s32.totalorder %s31, 0
      %p112 = por %p110, %p111
      %s114 = sadd.s32 %s113, 1
      %p117 = scmp.eq.s32.totalorder %s25, 1
      %p118 = scmp.ne.s32.totalorder %s113, %s115
      %p119 = scmp.eq.s32.totalorder %s25, 0
      %p120 = por %p118, %p119
      %p121 = scmp.ne.s32.totalorder %s113, %s115
      %p122 = scmp.eq.s32.totalorder %s30, 1
      %p123 = por %p121, %p122
      %p124 = scmp.ne.s32.totalorder %s115, %s116
      %p125 = scmp.eq.s32.totalorder %s30, 0
      %p126 = por %p124, %p125
      %p127 = scmp.ne.s32.totalorder %s115, %s116
      %p128 = scmp.eq.s32.totalorder %s31, 1
      %p129 = por %p127, %p128
      %p131 = scmp.ne.s32.totalorder %s116, %s130
      %p132 = scmp.eq.s32.totalorder %s31, 0
      %p133 = por %p131, %p132
      %s135 = sadd.s32 %s134, 1
      %p138 = scmp.eq.s32.totalorder %s25, 1
      %p139 = scmp.ne.s32.totalorder %s134, %s136
      %p140 = scmp.eq.s32.totalorder %s25, 0
      %p141 = por %p139, %p140
      %p142 = scmp.ne.s32.totalorder %s134, %s136
      %p143 = scmp.eq.s32.totalorder %s30, 1
      %p144 = por %p142, %p143
      %p145 = scmp.ne.s32.totalorder %s136, %s137
      %p146 = scmp.eq.s32.totalorder %s30, 0
      %p147 = por %p145, %p146
      %p148 = scmp.ne.s32.totalorder %s136, %s137
      %p149 = scmp.eq.s32.totalorder %s31, 1
      %p150 = por %p148, %p149
      %p152 = scmp.ne.s32.totalorder %s137, %s151
      %p153 = scmp.eq.s32.totalorder %s31, 0
      %p154 = por %p152, %p153
      %s156 = sadd.s32 %s155, 1
      %p159 = scmp.eq.s32.totalorder %s25, 1
      %p160 = scmp.ne.s32.totalorder %s155, %s157
      %p161 = scmp.eq.s32.totalorder %s25, 0
      %p162 = por %p160, %p161
      %p163 = scmp.ne.s32.totalorder %s155, %s157
      %p164 = scmp.eq.s32.totalorder %s30, 1
      %p165 = por %p163, %p164
      %p166 = scmp.ne.s32.totalorder %s157, %s158
      %p167 = scmp.eq.s32.totalorder %s30, 0
      %p168 = por %p166, %p167
      %p169 = scmp.ne.s32.totalorder %s157, %s158
      %p170 = scmp.eq.s32.totalorder %s31, 1
      %p171 = por %p169, %p170
      %p173 = scmp.ne.s32.totalorder %s158, %s172
      %p174 = scmp.eq.s32.totalorder %s31, 0
      %p175 = por %p173, %p174
      %s177 = sadd.s32 %s176, 1
      %p180 = scmp.eq.s32.totalorder %s25, 1
      %p181 = scmp.ne.s32.totalorder %s176, %s178
      %p182 = scmp.eq.s32.totalorder %s25, 0
      %p183 = por %p181, %p182
      %p184 = scmp.ne.s32.totalorder %s176, %s178
      %p185 = scmp.eq.s32.totalorder %s30, 1
      %p186 = por %p184, %p185
      %p187 = scmp.ne.s32.totalorder %s178, %s179
      %p188 = scmp.eq.s32.totalorder %s30, 0
      %p189 = por %p187, %p188
      %p190 = scmp.ne.s32.totalorder %s178, %s179
      %p191 = scmp.eq.s32.totalorder %s31, 1
      %p192 = por %p190, %p191
      %p194 = scmp.ne.s32.totalorder %s179, %s193
      %p195 = scmp.eq.s32.totalorder %s31, 0
      %p196 = por %p194, %p195
      %s198 = sadd.s32 %s197, 1
      %p201 = scmp.eq.s32.totalorder %s25, 1
      %p202 = scmp.ne.s32.totalorder %s197, %s199
      %p203 = scmp.eq.s32.totalorder %s25, 0
      %p204 = por %p202, %p203
      %p205 = scmp.ne.s32.totalorder %s197, %s199
      %p206 = scmp.eq.s32.totalorder %s30, 1
      %p207 = por %p205, %p206
      %p208 = scmp.ne.s32.totalorder %s199, %s200
      %p209 = scmp.eq.s32.totalorder %s30, 0
      %p210 = por %p208, %p209
      %p211 = scmp.ne.s32.totalorder %s199, %s200
      %p212 = scmp.eq.s32.totalorder %s31, 1
      %p213 = por %p211, %p212
      %p215 = scmp.ne.s32.totalorder %s200, %s214
      %p216 = scmp.eq.s32.totalorder %s31, 0
      %p217 = por %p215, %p216
      %s219 = sadd.s32 %s218, 1
      %p222 = scmp.eq.s32.totalorder %s25, 1
      %p223 = scmp.ne.s32.totalorder %s218, %s220
      %p224 = scmp.eq.s32.totalorder %s25, 0
      %p225 = por %p223, %p224
      %p226 = scmp.ne.s32.totalorder %s218, %s220
      %p227 = scmp.eq.s32.totalorder %s30, 1
      %p228 = por %p226, %p227
      %p229 = scmp.ne.s32.totalorder %s220, %s221
      %p230 = scmp.eq.s32.totalorder %s30, 0
      %p231 = por %p229, %p230
      %p232 = scmp.ne.s32.totalorder %s220, %s221
      %p233 = scmp.eq.s32.totalorder %s31, 1
      %p234 = por %p232, %p233
      %p236 = scmp.ne.s32.totalorder %s221, %s235
      %p237 = scmp.eq.s32.totalorder %s31, 0
      %p238 = por %p236, %p237
      %s239 = ssub.s32 %s33, %s40
      %p240 = scmp.eq.s32.totalorder %s239, 0
      %s242 = sadd.s32 %s241, 1
      %s243 = scalar_select %p240, %s241, %s242
      %p246 = pneg %p240
      %p247 = scmp.eq.s32.totalorder %s25, 1
      %p248 = por %p246, %p247
      %p249 = scmp.ne.s32.totalorder %s241, %s244
      %p250 = scmp.eq.s32.totalorder %s25, 0
      %p251 = por %p249, %p250
      %p252 = scmp.ne.s32.totalorder %s241, %s244
      %p253 = scmp.eq.s32.totalorder %s30, 1
      %p254 = por %p252, %p253
      %p255 = scmp.ne.s32.totalorder %s244, %s245
      %p256 = scmp.eq.s32.totalorder %s30, 0
      %p257 = por %p255, %p256
      %p258 = scmp.ne.s32.totalorder %s244, %s245
      %p259 = scmp.eq.s32.totalorder %s31, 1
      %p260 = por %p258, %p259
      %p262 = scmp.ne.s32.totalorder %s245, %s261
      %p263 = scmp.eq.s32.totalorder %s31, 0
      %p264 = por %p262, %p263
      %s265 = ssub.s32 %s33, %s40
      %p266 = scmp.eq.s32.totalorder %s265, 0
      %s268 = sadd.s32 %s267, 1
      %s269 = scalar_select %p266, %s267, %s268
      %p272 = pneg %p266
      %p273 = scmp.eq.s32.totalorder %s25, 1
      %p274 = por %p272, %p273
      %p275 = scmp.ne.s32.totalorder %s267, %s270
      %p276 = scmp.eq.s32.totalorder %s25, 0
      %p277 = por %p275, %p276
      %p278 = scmp.ne.s32.totalorder %s267, %s270
      %p279 = scmp.eq.s32.totalorder %s30, 1
      %p280 = por %p278, %p279
      %p281 = scmp.ne.s32.totalorder %s270, %s271
      %p282 = scmp.eq.s32.totalorder %s30, 0
      %p283 = por %p281, %p282
      %p284 = scmp.ne.s32.totalorder %s270, %s271
      %p285 = scmp.eq.s32.totalorder %s31, 1
      %p286 = por %p284, %p285
      %p288 = scmp.ne.s32.totalorder %s271, %s287
      %p289 = scmp.eq.s32.totalorder %s31, 0
      %p290 = por %p288, %p289
      %s291 = ssub.s32 %s33, %s40
      %p292 = scmp.eq.s32.totalorder %s291, 0
      %s294 = sadd.s32 %s293, 1
      %s295 = scalar_select %p292, %s293, %s294
      %p298 = pneg %p292
      %p299 = scmp.eq.s32.totalorder %s25, 1
      %p300 = por %p298, %p299
      %p301 = scmp.ne.s32.totalorder %s293, %s296
      %p302 = scmp.eq.s32.totalorder %s25, 0
      %p303 = por %p301, %p302
      %p304 = scmp.ne.s32.totalorder %s293, %s296
      %p305 = scmp.eq.s32.totalorder %s30, 1
      %p306 = por %p304, %p305
      %p307 = scmp.ne.s32.totalorder %s296, %s297
      %p308 = scmp.eq.s32.totalorder %s30, 0
      %p309 = por %p307, %p308
      %p310 = scmp.ne.s32.totalorder %s296, %s297
      %p311 = scmp.eq.s32.totalorder %s31, 1
      %p312 = por %p310, %p311
      %p314 = scmp.ne.s32.totalorder %s297, %s313
      %p315 = scmp.eq.s32.totalorder %s31, 0
      %p316 = por %p314, %p315
      %s318 = sadd.s32 %s317, 1
      %p321 = scmp.eq.s32.totalorder %s25, 1
      %p322 = scmp.ne.s32.totalorder %s317, %s319
      %p323 = scmp.eq.s32.totalorder %s25, 0
      %p324 = por %p322, %p323
      %p325 = scmp.ne.s32.totalorder %s317, %s319
      %p326 = scmp.eq.s32.totalorder %s30, 1
      %p327 = por %p325, %p326
      %p328 = scmp.ne.s32.totalorder %s319, %s320
      %p329 = scmp.eq.s32.totalorder %s30, 0
      %p330 = por %p328, %p329
      %p331 = scmp.ne.s32.totalorder %s319, %s320
      %p332 = scmp.eq.s32.totalorder %s31, 1
      %p333 = por %p331, %p332
      %p335 = scmp.ne.s32.totalorder %s320, %s334
      %p336 = scmp.eq.s32.totalorder %s31, 0
      %p337 = por %p335, %p336
      %s338 = ssub.s32 %s32, %s44
      %p339 = scmp.eq.s32.totalorder %s338, 0
      %s341 = sadd.s32 %s340, 1
      %s342 = scalar_select %p339, %s340, %s341
      %p345 = pneg %p339
      %p346 = scmp.eq.s32.totalorder %s25, 1
      %p347 = por %p345, %p346
      %p348 = scmp.ne.s32.totalorder %s340, %s343
      %p349 = scmp.eq.s32.totalorder %s25, 0
      %p350 = por %p348, %p349
      %p351 = scmp.ne.s32.totalorder %s340, %s343
      %p352 = scmp.eq.s32.totalorder %s30, 1
      %p353 = por %p351, %p352
      %p354 = scmp.ne.s32.totalorder %s343, %s344
      %p355 = scmp.eq.s32.totalorder %s30, 0
      %p356 = por %p354, %p355
      %p357 = scmp.ne.s32.totalorder %s343, %s344
      %p358 = scmp.eq.s32.totalorder %s31, 1
      %p359 = por %p357, %p358
      %p361 = scmp.ne.s32.totalorder %s344, %s360
      %p362 = scmp.eq.s32.totalorder %s31, 0
      %p363 = por %p361, %p362
      %p364 = scmp.le.s32.totalorder 1, %s25
      %p365 = scmp.lt.s32.totalorder %s25, 3
      %p366 = pnand %p364, %p365
      %p367 = pneg %p366
      // Predicated region
      $region9: #{self_attention_module.3} parent=5 // pred_check
        _
      $region10: #{self_attention_module.3} parent=5 // pred_check_branch
        %369 = sbr.rel (%p366) target = $region12
      $region11: #{self_attention_module.3} parent=5 // pred_region
        %s370 = ssub.s32 %s25, 1
        // Predicated region
        $region13: #{self_attention_module.3} parent=11 // pred_check
          %p371 = pneg %p84
        $region14: #{self_attention_module.3} parent=11 // pred_check_branch
          %373 = sbr.rel (%p371) target = $region16
        $region15: #{self_attention_module.3} parent=11 // pred_region
          _
        $region16: #{self_attention_module.3} parent=11 // pred_fallthru
          _
        // Predicated region
        $region17: #{self_attention_module.3} parent=11 // pred_check
          %p374 = pneg %p105
        $region18: #{self_attention_module.3} parent=11 // pred_check_branch
          %376 = sbr.rel (%p374) target = $region20
        $region19: #{self_attention_module.3} parent=11 // pred_region
          _
        $region20: #{self_attention_module.3} parent=11 // pred_fallthru
          _
        // Predicated region
        $region21: #{self_attention_module.3} parent=11 // pred_check
          %p377 = pneg %p126
        $region22: #{self_attention_module.3} parent=11 // pred_check_branch
          %379 = sbr.rel (%p377) target = $region24
        $region23: #{self_attention_module.3} parent=11 // pred_region
          _
        $region24: #{self_attention_module.3} parent=11 // pred_fallthru
          _
        // Predicated region
        $region25: #{self_attention_module.3} parent=11 // pred_check
          %p380 = pneg %p147
        $region26: #{self_attention_module.3} parent=11 // pred_check_branch
          %382 = sbr.rel (%p380) target = $region28
        $region27: #{self_attention_module.3} parent=11 // pred_region
          _
        $region28: #{self_attention_module.3} parent=11 // pred_fallthru
          _
        // Predicated region
        $region29: #{self_attention_module.3} parent=11 // pred_check
          %p383 = pneg %p168
        $region30: #{self_attention_module.3} parent=11 // pred_check_branch
          %385 = sbr.rel (%p383) target = $region32
        $region31: #{self_attention_module.3} parent=11 // pred_region
          _
        $region32: #{self_attention_module.3} parent=11 // pred_fallthru
          _
        // Predicated region
        $region33: #{self_attention_module.3} parent=11 // pred_check
          %p386 = pneg %p189
        $region34: #{self_attention_module.3} parent=11 // pred_check_branch
          %388 = sbr.rel (%p386) target = $region36
        $region35: #{self_attention_module.3} parent=11 // pred_region
          _
        $region36: #{self_attention_module.3} parent=11 // pred_fallthru
          _
        // Predicated region
        $region37: #{self_attention_module.3} parent=11 // pred_check
          %p389 = pneg %p210
        $region38: #{self_attention_module.3} parent=11 // pred_check_branch
          %391 = sbr.rel (%p389) target = $region40
        $region39: #{self_attention_module.3} parent=11 // pred_region
          _
        $region40: #{self_attention_module.3} parent=11 // pred_fallthru
          _
        // Predicated region
        $region41: #{self_attention_module.3} parent=11 // pred_check
          %p392 = pneg %p231
        $region42: #{self_attention_module.3} parent=11 // pred_check_branch
          %394 = sbr.rel (%p392) target = $region44
        $region43: #{self_attention_module.3} parent=11 // pred_region
          _
        $region44: #{self_attention_module.3} parent=11 // pred_fallthru
          _
        // Predicated region
        $region45: #{self_attention_module.3} parent=11 // pred_check
          %p395 = pneg %p257
        $region46: #{self_attention_module.3} parent=11 // pred_check_branch
          %397 = sbr.rel (%p395) target = $region48
        $region47: #{self_attention_module.3} parent=11 // pred_region
          %p398 = scmp.lt.s32.totalorder %s35, 0
          %s399 = scalar_select %p398, %s35, 0
          %s400 = smul.addr %s399, 4
          %s401 = scalar_lea.vmem %s9, %s400
        $region48: #{self_attention_module.3} parent=11 // pred_fallthru
          _
        // Predicated region
        $region49: #{self_attention_module.3} parent=11 // pred_check
          %p402 = pneg %p283
        $region50: #{self_attention_module.3} parent=11 // pred_check_branch
          %404 = sbr.rel (%p402) target = $region52
        $region51: #{self_attention_module.3} parent=11 // pred_region
          %p405 = scmp.lt.s32.totalorder %s35, 0
          %s406 = scalar_select %p405, %s35, 0
          %s407 = scalar_lea.vmem %s10, %s406
        $region52: #{self_attention_module.3} parent=11 // pred_fallthru
          _
        // Predicated region
        $region53: #{self_attention_module.3} parent=11 // pred_check
          %p408 = pneg %p309
        $region54: #{self_attention_module.3} parent=11 // pred_check_branch
          %410 = sbr.rel (%p408) target = $region56
        $region55: #{self_attention_module.3} parent=11 // pred_region
          %s411 = smul.u32 8, %s35
          %p412 = scmp.lt.s32.totalorder %s411, 7
          %s413 = scalar_select %p412, %s411, 7
          %s414 = smul.addr %s413, 4
          %s415 = scalar_lea.vmem %s11, %s414
          %s416 = smul.u32 8, %s35
        $region56: #{self_attention_module.3} parent=11 // pred_fallthru
          _
        // Predicated region
        $region57: #{self_attention_module.3} parent=11 // pred_check
          %p417 = pneg %p330
        $region58: #{self_attention_module.3} parent=11 // pred_check_branch
          %419 = sbr.rel (%p417) target = $region60
        $region59: #{self_attention_module.3} parent=11 // pred_region
          _
        $region60: #{self_attention_module.3} parent=11 // pred_fallthru
          _
      $region12: #{self_attention_module.3} parent=5 // pred_fallthru
        _
      %p420 = scmp.lt.s32.totalorder %s25, 2
      // Predicated region
      $region61: #{self_attention_module.3} parent=5 // pred_check
        %p421 = pneg %p420
      $region62: #{self_attention_module.3} parent=5 // pred_check_branch
        %423 = sbr.rel (%p421) target = $region64
      $region63: #{self_attention_module.3} parent=5 // pred_region
        // Predicated region
        $region65: #{self_attention_module.3} parent=63 // pred_check
          %p424 = pneg %p57
        $region66: #{self_attention_module.3} parent=63 // pred_check_branch
          %426 = sbr.rel (%p424) target = $region68
        $region67: #{self_attention_module.3} parent=63 // pred_region
          %s427 = sand.u32 %s47, 1
          %s428 = scalar_lea.sflag [#allocation6], %s427
          %s429 = sand.u32 %s47, 1
          %s430 = smul.addr %s429, 8
          %s431 = scalar_lea.vmem [#allocation5], %s430
          %s433 = ssub.s32 128, 128
          %434 = vsyncadd %s428, %s433
          %s435 = smul.addr %s32, 128
          %s436 = scalar_lea.hbm %s0, %s435
          %s438 = sshll.u32 %s431, 4
          %s439 = int_to_ptr.vmem [resolvable:$true] %s438
          %441 = dma.hbm_to_vmem [thread:$0]  %s436, 128, %s439, %s428
        $region68: #{self_attention_module.3} parent=63 // pred_fallthru
          _
      $region64: #{self_attention_module.3} parent=5 // pred_fallthru
        _
      %p442 = scmp.le.s32.totalorder 1, %s25
      %p443 = scmp.lt.s32.totalorder %s25, 3
      %p444 = pnand %p442, %p443
      %p445 = pneg %p444
      // Predicated region
      $region69: #{self_attention_module.3} parent=5 // pred_check
        _
      $region70: #{self_attention_module.3} parent=5 // pred_check_branch
        %447 = sbr.rel (%p444) target = $region72
      $region71: #{self_attention_module.3} parent=5 // pred_region
        %s448 = ssub.s32 %s25, 1
        %s449 = sand.u32 %s50, 1
        %s450 = scalar_lea.sflag [#allocation6], %s449
        %s451 = sand.u32 %s50, 1
        %s452 = smul.addr %s451, 8
        %s453 = scalar_lea.vmem [#allocation5], %s452
        // Predicated region
        $region73: #{self_attention_module.3} parent=71 // pred_check
          %p454 = pneg %p63
        $region74: #{self_attention_module.3} parent=71 // pred_check_branch
          %456 = sbr.rel (%p454) target = $region76
        $region75: #{self_attention_module.3} parent=71 // pred_region
          %457 = dma.done %s450, 128
        $region76: #{self_attention_module.3} parent=71 // pred_fallthru
          _
        %s458 = sand.u32 %s50, 1
        %s459 = scalar_lea.sflag [#allocation6], %s458
        %s460 = sand.u32 %s50, 1
        %s461 = smul.addr %s460, 8
        %s462 = scalar_lea.vmem [#allocation5], %s461
        %p463 = pneg %p63
        %p464 = pneg %p60
        %p465 = pneg %p84
        %p466 = pneg %p81
        %p467 = pneg %p105
        %p468 = pneg %p102
        %p469 = pneg %p126
        %p470 = pneg %p123
        %p471 = pneg %p147
        %p472 = pneg %p144
        %p473 = pneg %p168
        %p474 = pneg %p165
        %p475 = pneg %p189
        %p476 = pneg %p186
        %p477 = pneg %p210
        %p478 = pneg %p207
        %p479 = pneg %p231
        %p480 = pneg %p228
        %p481 = scmp.lt.s32.totalorder %s35, 0
        %s482 = scalar_select %p481, %s35, 0
        %s483 = smul.addr %s482, 4
        %s484 = scalar_lea.vmem %s9, %s483
        %p485 = pneg %p257
        %p486 = pneg %p254
        %p487 = scmp.lt.s32.totalorder %s35, 0
        %s488 = scalar_select %p487, %s35, 0
        %s489 = scalar_lea.vmem %s10, %s488
        %p490 = pneg %p283
        %p491 = pneg %p280
        %s492 = smul.u32 8, %s35
        %p493 = scmp.lt.s32.totalorder %s492, 7
        %s494 = scalar_select %p493, %s492, 7
        %s495 = smul.addr %s494, 4
        %s496 = scalar_lea.vmem %s11, %s495
        %p497 = pneg %p309
        %p498 = pneg %p306
        %p499 = pneg %p330
        %p500 = pneg %p327
        %p501 = pneg %p356
        %p502 = pneg %p353
        %s503 = sand.u32 %s343, 1
        %s504 = scalar_lea.sflag [#allocation7], %s503
        %s505 = sand.u32 %s343, 1
        %s506 = smul.addr %s505, 8
        %s507 = scalar_lea.vmem [#allocation8], %s506
        %p508 = scmp.lt.s32.totalorder %s35, 0
        %s509 = scalar_select %p508, %s35, 0
        %s510 = smul.addr %s509, 4
        %s511 = scalar_lea.vmem %s9, %s510
        %p512 = scmp.lt.s32.totalorder %s35, 0
        %s513 = scalar_select %p512, %s35, 0
        %s514 = scalar_lea.vmem %s10, %s513
        %s515 = smul.u32 8, %s35
        %p516 = scmp.lt.s32.totalorder %s515, 7
        %s517 = scalar_select %p516, %s515, 7
        %s518 = smul.addr %s517, 4
        %s519 = scalar_lea.vmem %s11, %s518
        %s520 = smul.u32 8, %s35
        %p522 = scmp.eq.s32.totalorder %s35, 0
        // Predicated region
        $region77: #{self_attention_module.3} parent=71 // pred_check
          %p523 = pneg %p522
        $region78: #{self_attention_module.3} parent=71 // pred_check_branch
          %525 = sbr.rel (%p523) target = $region80
        $region79: #{self_attention_module.3} parent=71 // pred_region
          %v526 = vld [vmem:[%s453] sm:$0xff]
          %v527 = vld [vmem:[%s1] sm:$0x1]
          %v528 = vld [vmem:[%s2] sm:$0x1]
          %vm529 = vcmask 261120
          %v530 = vsel %vm529, %v526, 0.0
          %531 = vadd.xlane.f32.xlu0 %v530
          %v532 = vpop.xlane.xlu0 %531
          %v533 = vrcp.pop 32.0
          %v534 = vmul.f32 %v532, %v533
          %v535 = vsub.f32 %v526, %v534
          %v536 = vmul.f32 %v535, %v535
          %v537 = vsel %vm529, %v536, 0.0
          %538 = vadd.xlane.f32.xlu0 %v537
          %v539 = vpop.xlane.xlu0 %538
          %v540 = vmul.f32 %v539, %v533
          %v541 = vadd.f32 %v540, 1e-05
          %v542 = vrsqrt.pop %v541
          %v543 = vmul.f32 %v535, %v542
          %v545 = vlaneseq
          %v546 = vshrl.u32 %v545, 7
          %v547 = vsub.s32 0, %v546
          %v548 = vrot.slane %v527, %v547
          %v550 = vmul.f32 %v543, %v548
          %v552 = vlaneseq
          %v553 = vshrl.u32 %v552, 7
          %v554 = vsub.s32 0, %v553
          %v555 = vrot.slane %v528, %v554
          %v557 = vadd.f32 %v550, %v555
          %v558 = vpack.c.bf16 %v557, %v557
          %v559 = vld [vmem:[%s3] sm:$0xf]
          %v560 = vld [vmem:[%s3 + $0x4] sm:$0xf]
          %v561 = vld [vmem:[%s3 + $0x8] sm:$0xf]
          %v562 = vld [vmem:[%s3 + $0xc] sm:$0xf]
          %v563 = vld [vmem:[%s4] sm:$0x1]
          %v565 = vlaneseq
          %v566 = vshrl.u32 %v565, 7
          %v567 = vsub.s32 0, %v566
          %v568 = vrot.slane %v563, %v567
          %v574 = vunpack.c.l.b16 %v559
          %v575 = vunpack.c.l.b16 %v560
          %v576 = vunpack.c.l.b16 %v561
          %v577 = vunpack.c.l.b16 %v562
          %v578 = vpack.c.b16 %v575, %v574
          %v579 = vpack.c.b16 %v577, %v576
          %v583 = vsel %vm529, %v558, 0
          %585 = vmatprep.subr.bf16.mxu0 0
          %586 = vmatpush1.bf16.msra.mxu0 0
          %587 = vmatprep.subr.bf16.mxu0 0
          %588 = vmatpush1.bf16.msra.mxu0 0
          %589 = vmatprep.subr.bf16.mxu0 0
          %590 = vmatpush1.bf16.msra.mxu0 0
          %591 = vmatprep.subr.bf16.mxu0 0
          %592 = vmatpush1.bf16.msra.mxu0 0
          %593 = vmatprep.subr.bf16.mxu0 0
          %594 = vmatpush1.bf16.msra.mxu0 0
          %595 = vmatprep.subr.bf16.mxu0 0
          %596 = vmatpush1.bf16.msra.mxu0 0
          %597 = vmatprep.subr.bf16.mxu0 0
          %598 = vmatpush1.bf16.msra.mxu0 %v579
          %599 = vmatprep.subr.bf16.mxu0 0
          %600 = vmatpush1.bf16.msra.mxu0 %v578
          %601 = vmatprep.subr.bf16.mxu0 0
          %602 = vmatpush2.bf16.msra.mxu0 0
          %603 = vmatprep.subr.bf16.mxu0 0
          %604 = vmatpush2.bf16.msra.mxu0 0
          %605 = vmatprep.subr.bf16.mxu0 0
          %606 = vmatpush2.bf16.msra.mxu0 0
          %607 = vmatprep.subr.bf16.mxu0 0
          %608 = vmatpush2.bf16.msra.mxu0 0
          %609 = vmatprep.subr.bf16.mxu0 0
          %610 = vmatpush2.bf16.msra.mxu0 0
          %611 = vmatprep.subr.bf16.mxu0 0
          %612 = vmatpush2.bf16.msra.mxu0 0
          %613 = vmatprep.subr.bf16.mxu0 0
          %614 = vmatpush2.bf16.msra.mxu0 0
          %615 = vmatprep.subr.bf16.mxu0 0
          %616 = vmatpush2.bf16.msra.mxu0 0
          %617 = vmatprep.mubr.bf16.mxu0 0
          %618 = vmatmul.mubr.bf16.gmra.mxu0 %v583
          %v619 = vpop.f32.mrf.mxu0
          %v620 = vadd.f32 %v568, %v619
          %v621 = vpop.f32.mrf.mxu0
          %v622 = vpop.f32.mrf.mxu0
          %v623 = vpop.f32.mrf.mxu0
          %624 = vdwg.mxu0
          %626 = vrot.lane.b32.xlu0 %v620, 120
          %v627 = vpop.permute.xlu0 %626
          %629 = vrot.lane.b32.xlu0 %v620, 112
          %v630 = vpop.permute.xlu0 %629
          %632 = vrot.lane.b32.xlu0 %v620, 104
          %v633 = vpop.permute.xlu0 %632
          %v635 = vpack.c.bf16 %v620, %v620
          %v636 = vpack.c.bf16 %v627, %v627
          %v637 = vpack.c.bf16 %v630, %v630
          %v638 = vpack.c.bf16 %v633, %v633
          %640 = vrot.lane.b32.xlu0 %v635, 96
          %v641 = vpop.permute.xlu0 %640
          %vm642 = vcmask 64512
          %v644 = vsel %vm642, %v635, 0
          %v647 = vsel %vm642, %v641, 0
          %649 = vmatprep.subr.bf16.mxu0 0
          %650 = vmatpush1.bf16.xpose.msra.mxu0 0
          %651 = vmatprep.subr.bf16.mxu0 0
          %652 = vmatpush1.bf16.xpose.msra.mxu0 0
          %653 = vmatprep.subr.bf16.mxu0 0
          %654 = vmatpush1.bf16.xpose.msra.mxu0 0
          %655 = vmatprep.subr.bf16.mxu0 0
          %656 = vmatpush1.bf16.xpose.msra.mxu0 0
          %657 = vmatprep.subr.bf16.mxu0 0
          %658 = vmatpush1.bf16.xpose.msra.mxu0 0
          %659 = vmatprep.subr.bf16.mxu0 0
          %660 = vmatpush1.bf16.xpose.msra.mxu0 0
          %661 = vmatprep.subr.bf16.mxu0 0
          %662 = vmatpush1.bf16.xpose.msra.mxu0 0
          %663 = vmatprep.subr.bf16.mxu0 0
          %664 = vmatpush1.bf16.xpose.msra.mxu0 %v647
          %665 = vmatprep.subr.bf16.mxu0 0
          %666 = vmatpush2.bf16.xpose.msra.mxu0 0
          %667 = vmatprep.subr.bf16.mxu0 0
          %668 = vmatpush2.bf16.xpose.msra.mxu0 0
          %669 = vmatprep.subr.bf16.mxu0 0
          %670 = vmatpush2.bf16.xpose.msra.mxu0 0
          %671 = vmatprep.subr.bf16.mxu0 0
          %672 = vmatpush2.bf16.xpose.msra.mxu0 0
          %673 = vmatprep.subr.bf16.mxu0 0
          %674 = vmatpush2.bf16.xpose.msra.mxu0 0
          %675 = vmatprep.subr.bf16.mxu0 0
          %676 = vmatpush2.bf16.xpose.msra.mxu0 0
          %677 = vmatprep.subr.bf16.mxu0 0
          %678 = vmatpush2.bf16.xpose.msra.mxu0 0
          %679 = vmatprep.subr.bf16.mxu0 0
          %680 = vmatpush2.bf16.xpose.msra.mxu0 0
          %681 = vmatprep.mubr.bf16.mxu0 0
          %682 = vmatmul.mubr.bf16.gmra.mxu0 %v644
          %v683 = vpop.f32.mrf.mxu0
          %v684 = vadd.f32 0.0, %v683
          %v685 = vpop.f32.mrf.mxu0
          %v686 = vpop.f32.mrf.mxu0
          %v687 = vpop.f32.mrf.mxu0
          %688 = vdwg.mxu0
          %690 = vrot.lane.b32.xlu0 %v636, 96
          %v691 = vpop.permute.xlu0 %690
          %v693 = vsel %vm642, %v636, 0
          %v696 = vsel %vm642, %v691, 0
          %698 = vmatprep.subr.bf16.mxu0 0
          %699 = vmatpush1.bf16.xpose.msra.mxu0 0
          %700 = vmatprep.subr.bf16.mxu0 0
          %701 = vmatpush1.bf16.xpose.msra.mxu0 0
          %702 = vmatprep.subr.bf16.mxu0 0
          %703 = vmatpush1.bf16.xpose.msra.mxu0 0
          %704 = vmatprep.subr.bf16.mxu0 0
          %705 = vmatpush1.bf16.xpose.msra.mxu0 0
          %706 = vmatprep.subr.bf16.mxu0 0
          %707 = vmatpush1.bf16.xpose.msra.mxu0 0
          %708 = vmatprep.subr.bf16.mxu0 0
          %709 = vmatpush1.bf16.xpose.msra.mxu0 0
          %710 = vmatprep.subr.bf16.mxu0 0
          %711 = vmatpush1.bf16.xpose.msra.mxu0 0
          %712 = vmatprep.subr.bf16.mxu0 0
          %713 = vmatpush1.bf16.xpose.msra.mxu0 %v696
          %714 = vmatprep.subr.bf16.mxu0 0
          %715 = vmatpush2.bf16.xpose.msra.mxu0 0
          %716 = vmatprep.subr.bf16.mxu0 0
          %717 = vmatpush2.bf16.xpose.msra.mxu0 0
          %718 = vmatprep.subr.bf16.mxu0 0
          %719 = vmatpush2.bf16.xpose.msra.mxu0 0
          %720 = vmatprep.subr.bf16.mxu0 0
          %721 = vmatpush2.bf16.xpose.msra.mxu0 0
          %722 = vmatprep.subr.bf16.mxu0 0
          %723 = vmatpush2.bf16.xpose.msra.mxu0 0
          %724 = vmatprep.subr.bf16.mxu0 0
          %725 = vmatpush2.bf16.xpose.msra.mxu0 0
          %726 = vmatprep.subr.bf16.mxu0 0
          %727 = vmatpush2.bf16.xpose.msra.mxu0 0
          %728 = vmatprep.subr.bf16.mxu0 0
          %729 = vmatpush2.bf16.xpose.msra.mxu0 0
          %730 = vmatprep.mubr.bf16.mxu0 0
          %731 = vmatmul.mubr.bf16.gmra.mxu0 %v693
          %v732 = vpop.f32.mrf.mxu0
          %v733 = vadd.f32 0.0, %v732
          %v734 = vpop.f32.mrf.mxu0
          %v735 = vpop.f32.mrf.mxu0
          %v736 = vpop.f32.mrf.mxu0
          %737 = vdwg.mxu0
          %739 = vrot.lane.b32.xlu0 %v637, 96
          %v740 = vpop.permute.xlu0 %739
          %v742 = vsel %vm642, %v637, 0
          %v745 = vsel %vm642, %v740, 0
          %747 = vmatprep.subr.bf16.mxu0 0
          %748 = vmatpush1.bf16.xpose.msra.mxu0 0
          %749 = vmatprep.subr.bf16.mxu0 0
          %750 = vmatpush1.bf16.xpose.msra.mxu0 0
          %751 = vmatprep.subr.bf16.mxu0 0
          %752 = vmatpush1.bf16.xpose.msra.mxu0 0
          %753 = vmatprep.subr.bf16.mxu0 0
          %754 = vmatpush1.bf16.xpose.msra.mxu0 0
          %755 = vmatprep.subr.bf16.mxu0 0
          %756 = vmatpush1.bf16.xpose.msra.mxu0 0
          %757 = vmatprep.subr.bf16.mxu0 0
          %758 = vmatpush1.bf16.xpose.msra.mxu0 0
          %759 = vmatprep.subr.bf16.mxu0 0
          %760 = vmatpush1.bf16.xpose.msra.mxu0 0
          %761 = vmatprep.subr.bf16.mxu0 0
          %762 = vmatpush1.bf16.xpose.msra.mxu0 %v745
          %763 = vmatprep.subr.bf16.mxu0 0
          %764 = vmatpush2.bf16.xpose.msra.mxu0 0
          %765 = vmatprep.subr.bf16.mxu0 0
          %766 = vmatpush2.bf16.xpose.msra.mxu0 0
          %767 = vmatprep.subr.bf16.mxu0 0
          %768 = vmatpush2.bf16.xpose.msra.mxu0 0
          %769 = vmatprep.subr.bf16.mxu0 0
          %770 = vmatpush2.bf16.xpose.msra.mxu0 0
          %771 = vmatprep.subr.bf16.mxu0 0
          %772 = vmatpush2.bf16.xpose.msra.mxu0 0
          %773 = vmatprep.subr.bf16.mxu0 0
          %774 = vmatpush2.bf16.xpose.msra.mxu0 0
          %775 = vmatprep.subr.bf16.mxu0 0
          %776 = vmatpush2.bf16.xpose.msra.mxu0 0
          %777 = vmatprep.subr.bf16.mxu0 0
          %778 = vmatpush2.bf16.xpose.msra.mxu0 0
          %779 = vmatprep.mubr.bf16.mxu0 0
          %780 = vmatmul.mubr.bf16.gmra.mxu0 %v742
          %v781 = vpop.f32.mrf.mxu0
          %v782 = vadd.f32 0.0, %v781
          %v783 = vpop.f32.mrf.mxu0
          %v784 = vpop.f32.mrf.mxu0
          %v785 = vpop.f32.mrf.mxu0
          %786 = vdwg.mxu0
          %788 = vrot.lane.b32.xlu0 %v638, 96
          %v789 = vpop.permute.xlu0 %788
          %v791 = vsel %vm642, %v638, 0
          %v794 = vsel %vm642, %v789, 0
          %796 = vmatprep.subr.bf16.mxu0 0
          %797 = vmatpush1.bf16.xpose.msra.mxu0 0
          %798 = vmatprep.subr.bf16.mxu0 0
          %799 = vmatpush1.bf16.xpose.msra.mxu0 0
          %800 = vmatprep.subr.bf16.mxu0 0
          %801 = vmatpush1.bf16.xpose.msra.mxu0 0
          %802 = vmatprep.subr.bf16.mxu0 0
          %803 = vmatpush1.bf16.xpose.msra.mxu0 0
          %804 = vmatprep.subr.bf16.mxu0 0
          %805 = vmatpush1.bf16.xpose.msra.mxu0 0
          %806 = vmatprep.subr.bf16.mxu0 0
          %807 = vmatpush1.bf16.xpose.msra.mxu0 0
          %808 = vmatprep.subr.bf16.mxu0 0
          %809 = vmatpush1.bf16.xpose.msra.mxu0 0
          %810 = vmatprep.subr.bf16.mxu0 0
          %811 = vmatpush1.bf16.xpose.msra.mxu0 %v794
          %812 = vmatprep.subr.bf16.mxu0 0
          %813 = vmatpush2.bf16.xpose.msra.mxu0 0
          %814 = vmatprep.subr.bf16.mxu0 0
          %815 = vmatpush2.bf16.xpose.msra.mxu0 0
          %816 = vmatprep.subr.bf16.mxu0 0
          %817 = vmatpush2.bf16.xpose.msra.mxu0 0
          %818 = vmatprep.subr.bf16.mxu0 0
          %819 = vmatpush2.bf16.xpose.msra.mxu0 0
          %820 = vmatprep.subr.bf16.mxu0 0
          %821 = vmatpush2.bf16.xpose.msra.mxu0 0
          %822 = vmatprep.subr.bf16.mxu0 0
          %823 = vmatpush2.bf16.xpose.msra.mxu0 0
          %824 = vmatprep.subr.bf16.mxu0 0
          %825 = vmatpush2.bf16.xpose.msra.mxu0 0
          %826 = vmatprep.subr.bf16.mxu0 0
          %827 = vmatpush2.bf16.xpose.msra.mxu0 0
          %828 = vmatprep.mubr.bf16.mxu0 0
          %829 = vmatmul.mubr.bf16.gmra.mxu0 %v791
          %v830 = vpop.f32.mrf.mxu0
          %v831 = vadd.f32 0.0, %v830
          %v832 = vpop.f32.mrf.mxu0
          %v833 = vpop.f32.mrf.mxu0
          %v834 = vpop.f32.mrf.mxu0
          %835 = vdwg.mxu0
          %v836 = vsel %vm642, %v684, -inf
          %837 = vmax.xlane.f32.xlu0 %v836
          %v838 = vpop.xlane.xlu0 %837
          %v839 = vsel %vm642, %v733, -inf
          %840 = vmax.xlane.f32.xlu0 %v839
          %v841 = vpop.xlane.xlu0 %840
          %v842 = vsel %vm642, %v782, -inf
          %843 = vmax.xlane.f32.xlu0 %v842
          %v844 = vpop.xlane.xlu0 %843
          %v845 = vsel %vm642, %v831, -inf
          %846 = vmax.xlane.f32.xlu0 %v845
          %v847 = vpop.xlane.xlu0 %846
          %v848 = vsub.f32 %v684, %v838
          %v849 = vsub.f32 %v733, %v841
          %v850 = vsub.f32 %v782, %v844
          %v851 = vsub.f32 %v831, %v847
          %v852 = vmul.f32 %v848, 1.442695
          %v853 = vpow.pop %v852
          %v854 = vmul.f32 %v849, 1.442695
          %v855 = vpow.pop %v854
          %v856 = vmul.f32 %v850, 1.442695
          %v857 = vpow.pop %v856
          %v858 = vmul.f32 %v851, 1.442695
          %v859 = vpow.pop %v858
          %v860 = vsel %vm642, %v853, 0.0
          %861 = vadd.xlane.f32.xlu0 %v860
          %v862 = vpop.xlane.xlu0 %861
          %v863 = vsel %vm642, %v855, 0.0
          %864 = vadd.xlane.f32.xlu0 %v863
          %v865 = vpop.xlane.xlu0 %864
          %v866 = vsel %vm642, %v857, 0.0
          %867 = vadd.xlane.f32.xlu0 %v866
          %v868 = vpop.xlane.xlu0 %867
          %v869 = vsel %vm642, %v859, 0.0
          %870 = vadd.xlane.f32.xlu0 %v869
          %v871 = vpop.xlane.xlu0 %870
          %v872 = vpack.c.bf16 %v853, %v853
          %v873 = vpack.c.bf16 %v855, %v855
          %v874 = vpack.c.bf16 %v857, %v857
          %v875 = vpack.c.bf16 %v859, %v859
          %876 = vrot.lane.b32.xlu0 %v635, 64
          %v877 = vpop.permute.xlu0 %876
          %v879 = vsel %vm642, %v872, 0
          %vm881 = vcmask 1043456
          %v883 = vsel %vm881, %v877, 0
          %885 = vmatprep.subr.bf16.mxu0 0
          %886 = vmatpush1.bf16.msra.mxu0 0
          %887 = vmatprep.subr.bf16.mxu0 0
          %888 = vmatpush1.bf16.msra.mxu0 0
          %889 = vmatprep.subr.bf16.mxu0 0
          %890 = vmatpush1.bf16.msra.mxu0 0
          %891 = vmatprep.subr.bf16.mxu0 0
          %892 = vmatpush1.bf16.msra.mxu0 0
          %893 = vmatprep.subr.bf16.mxu0 0
          %894 = vmatpush1.bf16.msra.mxu0 0
          %895 = vmatprep.subr.bf16.mxu0 0
          %896 = vmatpush1.bf16.msra.mxu0 0
          %897 = vmatprep.subr.bf16.mxu0 0
          %898 = vmatpush1.bf16.msra.mxu0 0
          %899 = vmatprep.subr.bf16.mxu0 0
          %900 = vmatpush1.bf16.msra.mxu0 %v883
          %901 = vmatprep.subr.bf16.mxu0 0
          %902 = vmatpush2.bf16.msra.mxu0 0
          %903 = vmatprep.subr.bf16.mxu0 0
          %904 = vmatpush2.bf16.msra.mxu0 0
          %905 = vmatprep.subr.bf16.mxu0 0
          %906 = vmatpush2.bf16.msra.mxu0 0
          %907 = vmatprep.subr.bf16.mxu0 0
          %908 = vmatpush2.bf16.msra.mxu0 0
          %909 = vmatprep.subr.bf16.mxu0 0
          %910 = vmatpush2.bf16.msra.mxu0 0
          %911 = vmatprep.subr.bf16.mxu0 0
          %912 = vmatpush2.bf16.msra.mxu0 0
          %913 = vmatprep.subr.bf16.mxu0 0
          %914 = vmatpush2.bf16.msra.mxu0 0
          %915 = vmatprep.subr.bf16.mxu0 0
          %916 = vmatpush2.bf16.msra.mxu0 0
          %917 = vmatprep.mubr.bf16.mxu0 0
          %918 = vmatmul.mubr.bf16.gmra.mxu0 %v879
          %v919 = vpop.f32.mrf.mxu0
          %v920 = vadd.f32 0.0, %v919
          %v921 = vpop.f32.mrf.mxu0
          %v922 = vpop.f32.mrf.mxu0
          %v923 = vpop.f32.mrf.mxu0
          %924 = vdwg.mxu0
          %925 = vrot.lane.b32.xlu0 %v636, 64
          %v926 = vpop.permute.xlu0 %925
          %v928 = vsel %vm642, %v873, 0
          %v931 = vsel %vm881, %v926, 0
          %933 = vmatprep.subr.bf16.mxu0 0
          %934 = vmatpush1.bf16.msra.mxu0 0
          %935 = vmatprep.subr.bf16.mxu0 0
          %936 = vmatpush1.bf16.msra.mxu0 0
          %937 = vmatprep.subr.bf16.mxu0 0
          %938 = vmatpush1.bf16.msra.mxu0 0
          %939 = vmatprep.subr.bf16.mxu0 0
          %940 = vmatpush1.bf16.msra.mxu0 0
          %941 = vmatprep.subr.bf16.mxu0 0
          %942 = vmatpush1.bf16.msra.mxu0 0
          %943 = vmatprep.subr.bf16.mxu0 0
          %944 = vmatpush1.bf16.msra.mxu0 0
          %945 = vmatprep.subr.bf16.mxu0 0
          %946 = vmatpush1.bf16.msra.mxu0 0
          %947 = vmatprep.subr.bf16.mxu0 0
          %948 = vmatpush1.bf16.msra.mxu0 %v931
          %949 = vmatprep.subr.bf16.mxu0 0
          %950 = vmatpush2.bf16.msra.mxu0 0
          %951 = vmatprep.subr.bf16.mxu0 0
          %952 = vmatpush2.bf16.msra.mxu0 0
          %953 = vmatprep.subr.bf16.mxu0 0
          %954 = vmatpush2.bf16.msra.mxu0 0
          %955 = vmatprep.subr.bf16.mxu0 0
          %956 = vmatpush2.bf16.msra.mxu0 0
          %957 = vmatprep.subr.bf16.mxu0 0
          %958 = vmatpush2.bf16.msra.mxu0 0
          %959 = vmatprep.subr.bf16.mxu0 0
          %960 = vmatpush2.bf16.msra.mxu0 0
          %961 = vmatprep.subr.bf16.mxu0 0
          %962 = vmatpush2.bf16.msra.mxu0 0
          %963 = vmatprep.subr.bf16.mxu0 0
          %964 = vmatpush2.bf16.msra.mxu0 0
          %965 = vmatprep.mubr.bf16.mxu0 0
          %966 = vmatmul.mubr.bf16.gmra.mxu0 %v928
          %v967 = vpop.f32.mrf.mxu0
          %v968 = vadd.f32 0.0, %v967
          %v969 = vpop.f32.mrf.mxu0
          %v970 = vpop.f32.mrf.mxu0
          %v971 = vpop.f32.mrf.mxu0
          %972 = vdwg.mxu0
          %973 = vrot.lane.b32.xlu0 %v637, 64
          %v974 = vpop.permute.xlu0 %973
          %v976 = vsel %vm642, %v874, 0
          %v979 = vsel %vm881, %v974, 0
          %981 = vmatprep.subr.bf16.mxu0 0
          %982 = vmatpush1.bf16.msra.mxu0 0
          %983 = vmatprep.subr.bf16.mxu0 0
          %984 = vmatpush1.bf16.msra.mxu0 0
          %985 = vmatprep.subr.bf16.mxu0 0
          %986 = vmatpush1.bf16.msra.mxu0 0
          %987 = vmatprep.subr.bf16.mxu0 0
          %988 = vmatpush1.bf16.msra.mxu0 0
          %989 = vmatprep.subr.bf16.mxu0 0
          %990 = vmatpush1.bf16.msra.mxu0 0
          %991 = vmatprep.subr.bf16.mxu0 0
          %992 = vmatpush1.bf16.msra.mxu0 0
          %993 = vmatprep.subr.bf16.mxu0 0
          %994 = vmatpush1.bf16.msra.mxu0 0
          %995 = vmatprep.subr.bf16.mxu0 0
          %996 = vmatpush1.bf16.msra.mxu0 %v979
          %997 = vmatprep.subr.bf16.mxu0 0
          %998 = vmatpush2.bf16.msra.mxu0 0
          %999 = vmatprep.subr.bf16.mxu0 0
          %1000 = vmatpush2.bf16.msra.mxu0 0
          %1001 = vmatprep.subr.bf16.mxu0 0
          %1002 = vmatpush2.bf16.msra.mxu0 0
          %1003 = vmatprep.subr.bf16.mxu0 0
          %1004 = vmatpush2.bf16.msra.mxu0 0
          %1005 = vmatprep.subr.bf16.mxu0 0
          %1006 = vmatpush2.bf16.msra.mxu0 0
          %1007 = vmatprep.subr.bf16.mxu0 0
          %1008 = vmatpush2.bf16.msra.mxu0 0
          %1009 = vmatprep.subr.bf16.mxu0 0
          %1010 = vmatpush2.bf16.msra.mxu0 0
          %1011 = vmatprep.subr.bf16.mxu0 0
          %1012 = vmatpush2.bf16.msra.mxu0 0
          %1013 = vmatprep.mubr.bf16.mxu0 0
          %1014 = vmatmul.mubr.bf16.gmra.mxu0 %v976
          %v1015 = vpop.f32.mrf.mxu0
          %v1016 = vadd.f32 0.0, %v1015
          %v1017 = vpop.f32.mrf.mxu0
          %v1018 = vpop.f32.mrf.mxu0
          %v1019 = vpop.f32.mrf.mxu0
          %1020 = vdwg.mxu0
          %1021 = vrot.lane.b32.xlu0 %v638, 64
          %v1022 = vpop.permute.xlu0 %1021
          %v1024 = vsel %vm642, %v875, 0
          %v1027 = vsel %vm881, %v1022, 0
          %1029 = vmatprep.subr.bf16.mxu0 0
          %1030 = vmatpush1.bf16.msra.mxu0 0
          %1031 = vmatprep.subr.bf16.mxu0 0
          %1032 = vmatpush1.bf16.msra.mxu0 0
          %1033 = vmatprep.subr.bf16.mxu0 0
          %1034 = vmatpush1.bf16.msra.mxu0 0
          %1035 = vmatprep.subr.bf16.mxu0 0
          %1036 = vmatpush1.bf16.msra.mxu0 0
          %1037 = vmatprep.subr.bf16.mxu0 0
          %1038 = vmatpush1.bf16.msra.mxu0 0
          %1039 = vmatprep.subr.bf16.mxu0 0
          %1040 = vmatpush1.bf16.msra.mxu0 0
          %1041 = vmatprep.subr.bf16.mxu0 0
          %1042 = vmatpush1.bf16.msra.mxu0 0
          %1043 = vmatprep.subr.bf16.mxu0 0
          %1044 = vmatpush1.bf16.msra.mxu0 %v1027
          %1045 = vmatprep.subr.bf16.mxu0 0
          %1046 = vmatpush2.bf16.msra.mxu0 0
          %1047 = vmatprep.subr.bf16.mxu0 0
          %1048 = vmatpush2.bf16.msra.mxu0 0
          %1049 = vmatprep.subr.bf16.mxu0 0
          %1050 = vmatpush2.bf16.msra.mxu0 0
          %1051 = vmatprep.subr.bf16.mxu0 0
          %1052 = vmatpush2.bf16.msra.mxu0 0
          %1053 = vmatprep.subr.bf16.mxu0 0
          %1054 = vmatpush2.bf16.msra.mxu0 0
          %1055 = vmatprep.subr.bf16.mxu0 0
          %1056 = vmatpush2.bf16.msra.mxu0 0
          %1057 = vmatprep.subr.bf16.mxu0 0
          %1058 = vmatpush2.bf16.msra.mxu0 0
          %1059 = vmatprep.subr.bf16.mxu0 0
          %1060 = vmatpush2.bf16.msra.mxu0 0
          %1061 = vmatprep.mubr.bf16.mxu0 0
          %1062 = vmatmul.mubr.bf16.gmra.mxu0 %v1024
          %v1063 = vpop.f32.mrf.mxu0
          %v1064 = vadd.f32 0.0, %v1063
          %v1065 = vpop.f32.mrf.mxu0
          %v1066 = vpop.f32.mrf.mxu0
          %v1067 = vpop.f32.mrf.mxu0
          %1068 = vdwg.mxu0
          %v1069 = vrcp.pop %v862
          %v1070 = vrcp.pop %v865
          %v1071 = vrcp.pop %v868
          %v1072 = vrcp.pop %v871
          %v1073 = vmul.f32 %v920, %v1069
          %v1074 = vmul.f32 %v968, %v1070
          %v1075 = vmul.f32 %v1016, %v1071
          %v1076 = vmul.f32 %v1064, %v1072
          %v1077 = vpack.c.bf16 %v1073, %v1073
          %v1078 = vpack.c.bf16 %v1074, %v1074
          %v1079 = vpack.c.bf16 %v1075, %v1075
          %v1080 = vpack.c.bf16 %v1076, %v1076
          %v1081 = vld [vmem:[%s5] sm:$0xf]
          %v1082 = vld [vmem:[%s5 + $0x4] sm:$0xf]
          %v1083 = vld [vmem:[%s5 + $0x8] sm:$0xf]
          %v1084 = vld [vmem:[%s5 + $0xc] sm:$0xf]
          %v1086 = vsel %vm642, %v1077, 0
          %v1089 = vsel %vm881, %v1081, 0
          %1091 = vmatprep.subr.bf16.mxu0 0
          %1092 = vmatpush1.bf16.msra.mxu0 0
          %1093 = vmatprep.subr.bf16.mxu0 0
          %1094 = vmatpush1.bf16.msra.mxu0 0
          %1095 = vmatprep.subr.bf16.mxu0 0
          %1096 = vmatpush1.bf16.msra.mxu0 0
          %1097 = vmatprep.subr.bf16.mxu0 0
          %1098 = vmatpush1.bf16.msra.mxu0 0
          %1099 = vmatprep.subr.bf16.mxu0 0
          %1100 = vmatpush1.bf16.msra.mxu0 0
          %1101 = vmatprep.subr.bf16.mxu0 0
          %1102 = vmatpush1.bf16.msra.mxu0 0
          %1103 = vmatprep.subr.bf16.mxu0 0
          %1104 = vmatpush1.bf16.msra.mxu0 0
          %1105 = vmatprep.subr.bf16.mxu0 0
          %1106 = vmatpush1.bf16.msra.mxu0 %v1089
          %1107 = vmatprep.subr.bf16.mxu0 0
          %1108 = vmatpush2.bf16.msra.mxu0 0
          %1109 = vmatprep.subr.bf16.mxu0 0
          %1110 = vmatpush2.bf16.msra.mxu0 0
          %1111 = vmatprep.subr.bf16.mxu0 0
          %1112 = vmatpush2.bf16.msra.mxu0 0
          %1113 = vmatprep.subr.bf16.mxu0 0
          %1114 = vmatpush2.bf16.msra.mxu0 0
          %1115 = vmatprep.subr.bf16.mxu0 0
          %1116 = vmatpush2.bf16.msra.mxu0 0
          %1117 = vmatprep.subr.bf16.mxu0 0
          %1118 = vmatpush2.bf16.msra.mxu0 0
          %1119 = vmatprep.subr.bf16.mxu0 0
          %1120 = vmatpush2.bf16.msra.mxu0 0
          %1121 = vmatprep.subr.bf16.mxu0 0
          %1122 = vmatpush2.bf16.msra.mxu0 0
          %1123 = vmatprep.mubr.bf16.mxu0 0
          %1124 = vmatmul.mubr.bf16.gmra.mxu0 %v1086
          %v1125 = vpop.f32.mrf.mxu0
          %v1126 = vadd.f32 0.0, %v1125
          %v1127 = vpop.f32.mrf.mxu0
          %v1128 = vpop.f32.mrf.mxu0
          %v1129 = vpop.f32.mrf.mxu0
          %1130 = vdwg.mxu0
          %v1132 = vsel %vm642, %v1078, 0
          %v1135 = vsel %vm881, %v1082, 0
          %1137 = vmatprep.subr.bf16.mxu0 0
          %1138 = vmatpush1.bf16.msra.mxu0 0
          %1139 = vmatprep.subr.bf16.mxu0 0
          %1140 = vmatpush1.bf16.msra.mxu0 0
          %1141 = vmatprep.subr.bf16.mxu0 0
          %1142 = vmatpush1.bf16.msra.mxu0 0
          %1143 = vmatprep.subr.bf16.mxu0 0
          %1144 = vmatpush1.bf16.msra.mxu0 0
          %1145 = vmatprep.subr.bf16.mxu0 0
          %1146 = vmatpush1.bf16.msra.mxu0 0
          %1147 = vmatprep.subr.bf16.mxu0 0
          %1148 = vmatpush1.bf16.msra.mxu0 0
          %1149 = vmatprep.subr.bf16.mxu0 0
          %1150 = vmatpush1.bf16.msra.mxu0 0
          %1151 = vmatprep.subr.bf16.mxu0 0
          %1152 = vmatpush1.bf16.msra.mxu0 %v1135
          %1153 = vmatprep.subr.bf16.mxu0 0
          %1154 = vmatpush2.bf16.msra.mxu0 0
          %1155 = vmatprep.subr.bf16.mxu0 0
          %1156 = vmatpush2.bf16.msra.mxu0 0
          %1157 = vmatprep.subr.bf16.mxu0 0
          %1158 = vmatpush2.bf16.msra.mxu0 0
          %1159 = vmatprep.subr.bf16.mxu0 0
          %1160 = vmatpush2.bf16.msra.mxu0 0
          %1161 = vmatprep.subr.bf16.mxu0 0
          %1162 = vmatpush2.bf16.msra.mxu0 0
          %1163 = vmatprep.subr.bf16.mxu0 0
          %1164 = vmatpush2.bf16.msra.mxu0 0
          %1165 = vmatprep.subr.bf16.mxu0 0
          %1166 = vmatpush2.bf16.msra.mxu0 0
          %1167 = vmatprep.subr.bf16.mxu0 0
          %1168 = vmatpush2.bf16.msra.mxu0 0
          %1169 = vmatprep.mubr.bf16.mxu0 0
          %1170 = vmatmul.mubr.bf16.gmra.mxu0 %v1132
          %v1171 = vpop.f32.mrf.mxu0
          %v1172 = vadd.f32 0.0, %v1171
          %v1173 = vpop.f32.mrf.mxu0
          %v1174 = vpop.f32.mrf.mxu0
          %v1175 = vpop.f32.mrf.mxu0
          %1176 = vdwg.mxu0
          %v1178 = vsel %vm642, %v1079, 0
          %v1181 = vsel %vm881, %v1083, 0
          %1183 = vmatprep.subr.bf16.mxu0 0
          %1184 = vmatpush1.bf16.msra.mxu0 0
          %1185 = vmatprep.subr.bf16.mxu0 0
          %1186 = vmatpush1.bf16.msra.mxu0 0
          %1187 = vmatprep.subr.bf16.mxu0 0
          %1188 = vmatpush1.bf16.msra.mxu0 0
          %1189 = vmatprep.subr.bf16.mxu0 0
          %1190 = vmatpush1.bf16.msra.mxu0 0
          %1191 = vmatprep.subr.bf16.mxu0 0
          %1192 = vmatpush1.bf16.msra.mxu0 0
          %1193 = vmatprep.subr.bf16.mxu0 0
          %1194 = vmatpush1.bf16.msra.mxu0 0
          %1195 = vmatprep.subr.bf16.mxu0 0
          %1196 = vmatpush1.bf16.msra.mxu0 0
          %1197 = vmatprep.subr.bf16.mxu0 0
          %1198 = vmatpush1.bf16.msra.mxu0 %v1181
          %1199 = vmatprep.subr.bf16.mxu0 0
          %1200 = vmatpush2.bf16.msra.mxu0 0
          %1201 = vmatprep.subr.bf16.mxu0 0
          %1202 = vmatpush2.bf16.msra.mxu0 0
          %1203 = vmatprep.subr.bf16.mxu0 0
          %1204 = vmatpush2.bf16.msra.mxu0 0
          %1205 = vmatprep.subr.bf16.mxu0 0
          %1206 = vmatpush2.bf16.msra.mxu0 0
          %1207 = vmatprep.subr.bf16.mxu0 0
          %1208 = vmatpush2.bf16.msra.mxu0 0
          %1209 = vmatprep.subr.bf16.mxu0 0
          %1210 = vmatpush2.bf16.msra.mxu0 0
          %1211 = vmatprep.subr.bf16.mxu0 0
          %1212 = vmatpush2.bf16.msra.mxu0 0
          %1213 = vmatprep.subr.bf16.mxu0 0
          %1214 = vmatpush2.bf16.msra.mxu0 0
          %1215 = vmatprep.mubr.bf16.mxu0 0
          %1216 = vmatmul.mubr.bf16.gmra.mxu0 %v1178
          %v1217 = vpop.f32.mrf.mxu0
          %v1218 = vadd.f32 0.0, %v1217
          %v1219 = vpop.f32.mrf.mxu0
          %v1220 = vpop.f32.mrf.mxu0
          %v1221 = vpop.f32.mrf.mxu0
          %1222 = vdwg.mxu0
          %v1224 = vsel %vm642, %v1080, 0
          %v1227 = vsel %vm881, %v1084, 0
          %1229 = vmatprep.subr.bf16.mxu0 0
          %1230 = vmatpush1.bf16.msra.mxu0 0
          %1231 = vmatprep.subr.bf16.mxu0 0
          %1232 = vmatpush1.bf16.msra.mxu0 0
          %1233 = vmatprep.subr.bf16.mxu0 0
          %1234 = vmatpush1.bf16.msra.mxu0 0
          %1235 = vmatprep.subr.bf16.mxu0 0
          %1236 = vmatpush1.bf16.msra.mxu0 0
          %1237 = vmatprep.subr.bf16.mxu0 0
          %1238 = vmatpush1.bf16.msra.mxu0 0
          %1239 = vmatprep.subr.bf16.mxu0 0
          %1240 = vmatpush1.bf16.msra.mxu0 0
          %1241 = vmatprep.subr.bf16.mxu0 0
          %1242 = vmatpush1.bf16.msra.mxu0 0
          %1243 = vmatprep.subr.bf16.mxu0 0
          %1244 = vmatpush1.bf16.msra.mxu0 %v1227
          %1245 = vmatprep.subr.bf16.mxu0 0
          %1246 = vmatpush2.bf16.msra.mxu0 0
          %1247 = vmatprep.subr.bf16.mxu0 0
          %1248 = vmatpush2.bf16.msra.mxu0 0
          %1249 = vmatprep.subr.bf16.mxu0 0
          %1250 = vmatpush2.bf16.msra.mxu0 0
          %1251 = vmatprep.subr.bf16.mxu0 0
          %1252 = vmatpush2.bf16.msra.mxu0 0
          %1253 = vmatprep.subr.bf16.mxu0 0
          %1254 = vmatpush2.bf16.msra.mxu0 0
          %1255 = vmatprep.subr.bf16.mxu0 0
          %1256 = vmatpush2.bf16.msra.mxu0 0
          %1257 = vmatprep.subr.bf16.mxu0 0
          %1258 = vmatpush2.bf16.msra.mxu0 0
          %1259 = vmatprep.subr.bf16.mxu0 0
          %1260 = vmatpush2.bf16.msra.mxu0 0
          %1261 = vmatprep.mubr.bf16.mxu0 0
          %1262 = vmatmul.mubr.bf16.gmra.mxu0 %v1224
          %v1263 = vpop.f32.mrf.mxu0
          %v1264 = vadd.f32 0.0, %v1263
          %v1265 = vpop.f32.mrf.mxu0
          %v1266 = vpop.f32.mrf.mxu0
          %v1267 = vpop.f32.mrf.mxu0
          %1268 = vdwg.mxu0
          %v1269 = vsel %vm529, %v1126, 0.0
          %v1270 = vsel %vm529, %v1172, 0.0
          %v1271 = vadd.f32 %v1269, %v1270
          %v1272 = vsel %vm529, %v1218, 0.0
          %v1273 = vadd.f32 %v1271, %v1272
          %v1274 = vsel %vm529, %v1264, 0.0
          %v1275 = vadd.f32 %v1273, %v1274
          %v1276 = vld [vmem:[%s6] sm:$0x1]
          %v1278 = vlaneseq
          %v1279 = vshrl.u32 %v1278, 7
          %v1280 = vsub.s32 0, %v1279
          %v1281 = vrot.slane %v1276, %v1280
          %v1283 = vadd.f32 %v1275, %v1281
          %v1284 = vadd.f32 %v526, %v1283
          %1285 = vst.msk [vmem:[#allocation2] sm:$0xff] %vm529, %v1284
          %v1286 = vld [vmem:[%s7] sm:$0x1]
          %v1287 = vld [vmem:[%s8] sm:$0x1]
          %v1288 = vsel %vm529, %v1284, 0.0
          %1289 = vadd.xlane.f32.xlu0 %v1288
          %v1290 = vpop.xlane.xlu0 %1289
          %v1291 = vmul.f32 %v1290, %v533
          %v1292 = vsub.f32 %v1284, %v1291
          %v1293 = vmul.f32 %v1292, %v1292
          %v1294 = vsel %vm529, %v1293, 0.0
          %1295 = vadd.xlane.f32.xlu0 %v1294
          %v1296 = vpop.xlane.xlu0 %1295
          %v1297 = vmul.f32 %v1296, %v533
          %v1298 = vadd.f32 %v1297, 1e-05
          %v1299 = vrsqrt.pop %v1298
          %v1300 = vmul.f32 %v1292, %v1299
          %v1302 = vlaneseq
          %v1303 = vshrl.u32 %v1302, 7
          %v1304 = vsub.s32 0, %v1303
          %v1305 = vrot.slane %v1286, %v1304
          %v1307 = vmul.f32 %v1300, %v1305
          %v1309 = vlaneseq
          %v1310 = vshrl.u32 %v1309, 7
          %v1311 = vsub.s32 0, %v1310
          %v1312 = vrot.slane %v1287, %v1311
          %v1314 = vadd.f32 %v1307, %v1312
          %v1315 = vpack.c.bf16 %v1314, %v1314
          %vm1316 = vcmask 257024
          %1317 = vst.msk [vmem:[#allocation3] sm:$0xf] %vm1316, %v1315
          %1318 = vst.msk [vmem:[#allocation4] sm:$0xff] %vm529, 0.0
        $region80: #{self_attention_module.3} parent=71 // pred_fallthru
          _
        %v1319 = vld [vmem:[#allocation3] sm:$0xf]
        %v1320 = vld [vmem:[%s511] sm:$0xf]
        %v1321 = vld [vmem:[%s511 + $0x4] sm:$0xf]
        %v1322 = vld [vmem:[%s511 + $0x8] sm:$0xf]
        %v1323 = vld [vmem:[%s511 + $0xc] sm:$0xf]
        %v1324 = vld [vmem:[%s514] sm:$0x1]
        %v1326 = vlaneseq
        %v1327 = vshrl.u32 %v1326, 7
        %v1328 = vsub.s32 0, %v1327
        %v1329 = vrot.slane %v1324, %v1328
        %v1335 = vunpack.c.l.b16 %v1320
        %v1336 = vunpack.c.l.b16 %v1321
        %v1337 = vunpack.c.l.b16 %v1322
        %v1338 = vunpack.c.l.b16 %v1323
        %v1339 = vpack.c.b16 %v1336, %v1335
        %v1340 = vpack.c.b16 %v1338, %v1337
        %vm1343 = vcmask 261120
        %v1345 = vsel %vm1343, %v1319, 0
        %1347 = vmatprep.subr.bf16.mxu0 0
        %1348 = vmatpush1.bf16.msra.mxu0 0
        %1349 = vmatprep.subr.bf16.mxu0 0
        %1350 = vmatpush1.bf16.msra.mxu0 0
        %1351 = vmatprep.subr.bf16.mxu0 0
        %1352 = vmatpush1.bf16.msra.mxu0 0
        %1353 = vmatprep.subr.bf16.mxu0 0
        %1354 = vmatpush1.bf16.msra.mxu0 0
        %1355 = vmatprep.subr.bf16.mxu0 0
        %1356 = vmatpush1.bf16.msra.mxu0 0
        %1357 = vmatprep.subr.bf16.mxu0 0
        %1358 = vmatpush1.bf16.msra.mxu0 0
        %1359 = vmatprep.subr.bf16.mxu0 0
        %1360 = vmatpush1.bf16.msra.mxu0 %v1340
        %1361 = vmatprep.subr.bf16.mxu0 0
        %1362 = vmatpush1.bf16.msra.mxu0 %v1339
        %1363 = vmatprep.subr.bf16.mxu0 0
        %1364 = vmatpush2.bf16.msra.mxu0 0
        %1365 = vmatprep.subr.bf16.mxu0 0
        %1366 = vmatpush2.bf16.msra.mxu0 0
        %1367 = vmatprep.subr.bf16.mxu0 0
        %1368 = vmatpush2.bf16.msra.mxu0 0
        %1369 = vmatprep.subr.bf16.mxu0 0
        %1370 = vmatpush2.bf16.msra.mxu0 0
        %1371 = vmatprep.subr.bf16.mxu0 0
        %1372 = vmatpush2.bf16.msra.mxu0 0
        %1373 = vmatprep.subr.bf16.mxu0 0
        %1374 = vmatpush2.bf16.msra.mxu0 0
        %1375 = vmatprep.subr.bf16.mxu0 0
        %1376 = vmatpush2.bf16.msra.mxu0 0
        %1377 = vmatprep.subr.bf16.mxu0 0
        %1378 = vmatpush2.bf16.msra.mxu0 0
        %1379 = vmatprep.mubr.bf16.mxu0 0
        %1380 = vmatmul.mubr.bf16.gmra.mxu0 %v1345
        %v1381 = vpop.f32.mrf.mxu0
        %v1382 = vadd.f32 %v1329, %v1381
        %v1383 = vpop.f32.mrf.mxu0
        %v1384 = vpop.f32.mrf.mxu0
        %v1385 = vpop.f32.mrf.mxu0
        %1386 = vdwg.mxu0
        %v1387 = vmul.f32 %v1382, 0.5
        %v1388 = vmul.f32 %v1382, 0.044715
        %v1389 = vmul.f32 %v1388, %v1382
        %v1390 = vmul.f32 %v1389, %v1382
        %v1391 = vadd.f32 %v1382, %v1390
        %v1392 = vmul.f32 %v1391, 0.7978846
        %v1393 = vtanh.pop %v1392
        %v1394 = vadd.f32 %v1393, 1.0
        %v1395 = vmul.f32 %v1387, %v1394
        %v1396 = vld [vmem:[#allocation4] sm:$0xff]
        %v1397 = vpack.c.bf16 %v1395, %v1395
        %v1398 = vld [vmem:[%s519] sm:$0xf]
        %v1399 = vld [vmem:[%s519 + $0x4] sm:$0xf]
        %v1400 = vld [vmem:[%s519 + $0x8] sm:$0xf]
        %v1401 = vld [vmem:[%s519 + $0xc] sm:$0xf]
        %v1402 = vld [vmem:[%s519 + $0x10] sm:$0xf]
        %v1403 = vld [vmem:[%s519 + $0x14] sm:$0xf]
        %v1404 = vld [vmem:[%s519 + $0x18] sm:$0xf]
        %v1405 = vld [vmem:[%s519 + $0x1c] sm:$0xf]
        %v1414 = vunpack.c.l.b16 %v1398
        %v1415 = vunpack.c.l.b16 %v1399
        %v1416 = vunpack.c.l.b16 %v1400
        %v1417 = vunpack.c.l.b16 %v1401
        %v1418 = vunpack.c.l.b16 %v1402
        %v1419 = vunpack.c.l.b16 %v1403
        %v1420 = vunpack.c.l.b16 %v1404
        %v1421 = vunpack.c.l.b16 %v1405
        %v1422 = vpack.c.b16 %v1415, %v1414
        %v1423 = vpack.c.b16 %v1417, %v1416
        %v1424 = vpack.c.b16 %v1419, %v1418
        %v1425 = vpack.c.b16 %v1421, %v1420
        %vm1430 = vcmask 523264
        %v1432 = vsel %vm1430, %v1397, 0
        %1434 = vmatprep.subr.bf16.mxu0 0
        %1435 = vmatpush1.bf16.msra.mxu0 0
        %1436 = vmatprep.subr.bf16.mxu0 0
        %1437 = vmatpush1.bf16.msra.mxu0 0
        %1438 = vmatprep.subr.bf16.mxu0 0
        %1439 = vmatpush1.bf16.msra.mxu0 0
        %1440 = vmatprep.subr.bf16.mxu0 0
        %1441 = vmatpush1.bf16.msra.mxu0 0
        %1442 = vmatprep.subr.bf16.mxu0 0
        %1443 = vmatpush1.bf16.msra.mxu0 %v1425
        %1444 = vmatprep.subr.bf16.mxu0 0
        %1445 = vmatpush1.bf16.msra.mxu0 %v1424
        %1446 = vmatprep.subr.bf16.mxu0 0
        %1447 = vmatpush1.bf16.msra.mxu0 %v1423
        %1448 = vmatprep.subr.bf16.mxu0 0
        %1449 = vmatpush1.bf16.msra.mxu0 %v1422
        %1450 = vmatprep.subr.bf16.mxu0 0
        %1451 = vmatpush2.bf16.msra.mxu0 0
        %1452 = vmatprep.subr.bf16.mxu0 0
        %1453 = vmatpush2.bf16.msra.mxu0 0
        %1454 = vmatprep.subr.bf16.mxu0 0
        %1455 = vmatpush2.bf16.msra.mxu0 0
        %1456 = vmatprep.subr.bf16.mxu0 0
        %1457 = vmatpush2.bf16.msra.mxu0 0
        %1458 = vmatprep.subr.bf16.mxu0 0
        %1459 = vmatpush2.bf16.msra.mxu0 0
        %1460 = vmatprep.subr.bf16.mxu0 0
        %1461 = vmatpush2.bf16.msra.mxu0 0
        %1462 = vmatprep.subr.bf16.mxu0 0
        %1463 = vmatpush2.bf16.msra.mxu0 0
        %1464 = vmatprep.subr.bf16.mxu0 0
        %1465 = vmatpush2.bf16.msra.mxu0 0
        %1466 = vmatprep.mubr.bf16.mxu0 0
        %1467 = vmatmul.mubr.bf16.gmra.mxu0 %v1432
        %v1468 = vpop.f32.mrf.mxu0
        %v1469 = vadd.f32 0.0, %v1468
        %v1470 = vpop.f32.mrf.mxu0
        %v1471 = vpop.f32.mrf.mxu0
        %v1472 = vpop.f32.mrf.mxu0
        %1473 = vdwg.mxu0
        %v1474 = vadd.f32 %v1396, %v1469
        %1475 = vst.msk [vmem:[#allocation4] sm:$0xff] %vm1343, %v1474
        // Predicated region
        $region81: #{self_attention_module.3} parent=71 // pred_check
          %p1476 = pneg %p522
        $region82: #{self_attention_module.3} parent=71 // pred_check_branch
          %1478 = sbr.rel (%p1476) target = $region84
        $region83: #{self_attention_module.3} parent=71 // pred_region
          %v1479 = vld [vmem:[#allocation2] sm:$0xff]
          %v1480 = vld [vmem:[#allocation4] sm:$0xff]
          %v1481 = vadd.f32 %v1479, %v1480
          %v1482 = vld [vmem:[%s12] sm:$0x1]
          %v1484 = vlaneseq
          %v1485 = vshrl.u32 %v1484, 7
          %v1486 = vsub.s32 0, %v1485
          %v1487 = vrot.slane %v1482, %v1486
          %v1489 = vadd.f32 %v1481, %v1487
          %1490 = vst.msk [vmem:[%s507] sm:$0xff] %vm1343, %v1489
        $region84: #{self_attention_module.3} parent=71 // pred_fallthru
          _
        %s1491 = sand.u32 %s343, 1
        %s1492 = scalar_lea.sflag [#allocation7], %s1491
        %s1493 = sand.u32 %s343, 1
        %s1494 = smul.addr %s1493, 8
        %s1495 = scalar_lea.vmem [#allocation8], %s1494
        // Predicated region
        $region85: #{self_attention_module.3} parent=71 // pred_check
          %p1496 = pneg %p353
        $region86: #{self_attention_module.3} parent=71 // pred_check_branch
          %1498 = sbr.rel (%p1496) target = $region88
        $region87: #{self_attention_module.3} parent=71 // pred_region
          %s1500 = ssub.s32 128, 128
          %1501 = vsyncadd %s1492, %s1500
          %s1502 = smul.addr %s34, 128
          %s1503 = scalar_lea.hbm %s13, %s1502
          %s1505 = sshll.u32 %s1495, 4
          %s1506 = int_to_ptr.vmem [resolvable:$true] %s1505
          %1508 = dma.vmem_to_hbm [thread:$0]  %s1506, 128, %s1503, %s1492
        $region88: #{self_attention_module.3} parent=71 // pred_fallthru
          _
      $region72: #{self_attention_module.3} parent=5 // pred_fallthru
        _
      %p1509 = scmp.le.s32.totalorder 2, %s25
      // Predicated region
      $region89: #{self_attention_module.3} parent=5 // pred_check
        %p1510 = pneg %p1509
      $region90: #{self_attention_module.3} parent=5 // pred_check_branch
        %1512 = sbr.rel (%p1510) target = $region92
      $region91: #{self_attention_module.3} parent=5 // pred_region
        %s1513 = ssub.s32 %s25, 2
        // Predicated region
        $region93: #{self_attention_module.3} parent=91 // pred_check
          %p1514 = pneg %p359
        $region94: #{self_attention_module.3} parent=91 // pred_check_branch
          %1516 = sbr.rel (%p1514) target = $region96
        $region95: #{self_attention_module.3} parent=91 // pred_region
          %s1517 = sand.u32 %s344, 1
          %s1518 = scalar_lea.sflag [#allocation7], %s1517
          %s1519 = sand.u32 %s344, 1
          %s1520 = smul.addr %s1519, 8
          %s1521 = scalar_lea.vmem [#allocation8], %s1520
          %1522 = dma.done %s1518, 128
        $region96: #{self_attention_module.3} parent=91 // pred_fallthru
          _
      $region92: #{self_attention_module.3} parent=5 // pred_fallthru
        _
    $region6: #{self_attention_module.3} parent=1 // loop_footer
      %s29 = sadd.s32 1, %s25
    $region7: #{self_attention_module.3} parent=1 // loop_footer_branch
      %24 = sbr.rel target = $region3
    $region8: #{self_attention_module.3} parent=1 // loop_exit
      _
    %1523 = vsyncpa [#allocation6], 1
    %s1524 = scalar_lea.sflag [#allocation6], 1
    %1525 = vsyncpa %s1524, 1
    %1526 = vsyncpa [#allocation7], 1
    %s1527 = scalar_lea.sflag [#allocation7], 1
    %1528 = vsyncpa %s1527, 1

// kernel: self_attention_module.2
$region0: #{self_attention_module.2}
  #allocation0 [shape = 'u32[]', space=smem, size = 0x4, offset = 0x4, fixed_abs, tag = 'smem constant byte address 0x4 - core index']
  #allocation1 [shape = 'u32[144,128]{1,0:T(1,128)}', space=vmem, size = 0x12000, scoped, tag = 'internal scratch']
  #allocation2 [shape = 'f32[8,32]{1,0:T(8,128)}', space=vmem, size = 0x1000, scoped, tag = 'scratch operand']
  #allocation3 [shape = 'bf16[8,32]{1,0:T(8,128)(2,1)}', space=vmem, size = 0x800, scoped, tag = 'scratch operand']
  #allocation4 [shape = 'f32[8,32]{1,0:T(8,128)}', space=vmem, size = 0x1000, scoped, tag = 'scratch operand']
  %s0 = inlined_call_operand.vmem [shape: f32[2,8,32], index: 0, kind: input, shape index: {}, may-alias: {0,13}]
  %s1 = inlined_call_operand.vmem [shape: f32[1,32], index: 1, kind: input, shape index: {}]
  %s2 = inlined_call_operand.vmem [shape: f32[1,32], index: 2, kind: input, shape index: {}]
  %s3 = inlined_call_operand.vmem [shape: bf16[32,96], index: 3, kind: input, shape index: {}]
  %s4 = inlined_call_operand.vmem [shape: f32[1,96], index: 4, kind: input, shape index: {}]
  %s5 = inlined_call_operand.vmem [shape: bf16[4,8,32], index: 5, kind: input, shape index: {}]
  %s6 = inlined_call_operand.vmem [shape: f32[1,32], index: 6, kind: input, shape index: {}]
  %s7 = inlined_call_operand.vmem [shape: f32[1,32], index: 7, kind: input, shape index: {}]
  %s8 = inlined_call_operand.vmem [shape: f32[1,32], index: 8, kind: input, shape index: {}]
  %s9 = inlined_call_operand.vmem [shape: bf16[32,64], index: 9, kind: input, shape index: {}]
  %s10 = inlined_call_operand.vmem [shape: f32[1,64], index: 10, kind: input, shape index: {}]
  %s11 = inlined_call_operand.vmem [shape: bf16[64,32], index: 11, kind: input, shape index: {}]
  %s12 = inlined_call_operand.vmem [shape: f32[1,32], index: 12, kind: input, shape index: {}]
  %s13 = inlined_call_operand.vmem [shape: f32[2,8,32], index: 13, kind: output, shape index: {}, may-alias: {0,13}]
  %s14 = sld [smem:[#allocation0]]
  $region93: #{self_attention_module.2} parent=0
    _
  %s16 = ssub.s32 1, %s14
  %s17 = scalar_select 0, %s16, %s14
  loop: start=0, step=1, limit=4
  $region2: #{self_attention_module.2} parent=0 // loop_pre_header
    _
  $region3: #{self_attention_module.2} parent=0 // loop_header
    %s19 = sphi 0, %s23
    %p20 = scmp.ge.s32.totalorder %s19, 4
    %s26 = sphi 0, %s38
    %s27 = sphi 0, %s34
    %s28 = sphi 0, %s26
    %s29 = sphi 0, %s27
    %s30 = sphi 0, %s28
    %s31 = sphi 0, %s29
    %s41 = sphi 0, %s43
    %s44 = sphi 0, %s41
    %s45 = sphi 0, %s44
    %s61 = sphi 0, %s45
    %s65 = sphi 0, %s65
    %s67 = sphi 0, %s65
    %s68 = sphi 0, %s67
    %s82 = sphi 0, %s68
    %s86 = sphi 0, %s86
    %s88 = sphi 0, %s86
    %s89 = sphi 0, %s88
    %s103 = sphi 0, %s89
    %s107 = sphi 0, %s107
    %s109 = sphi 0, %s107
    %s110 = sphi 0, %s109
    %s124 = sphi 0, %s110
    %s128 = sphi 0, %s128
    %s130 = sphi 0, %s128
    %s131 = sphi 0, %s130
    %s145 = sphi 0, %s131
    %s149 = sphi 0, %s149
    %s151 = sphi 0, %s149
    %s152 = sphi 0, %s151
    %s166 = sphi 0, %s152
    %s170 = sphi 0, %s170
    %s172 = sphi 0, %s170
    %s173 = sphi 0, %s172
    %s187 = sphi 0, %s173
    %s191 = sphi 0, %s191
    %s193 = sphi 0, %s191
    %s194 = sphi 0, %s193
    %s208 = sphi 0, %s194
    %s212 = sphi 0, %s212
    %s214 = sphi 0, %s212
    %s215 = sphi 0, %s214
    %s229 = sphi 0, %s215
    %s235 = sphi 0, %s237
    %s238 = sphi 0, %s235
    %s239 = sphi 0, %s238
    %s255 = sphi 0, %s239
    %s261 = sphi 0, %s263
    %s264 = sphi 0, %s261
    %s265 = sphi 0, %s264
    %s281 = sphi 0, %s265
    %s287 = sphi 0, %s289
    %s290 = sphi 0, %s287
    %s291 = sphi 0, %s290
    %s307 = sphi 0, %s291
    %s311 = sphi 0, %s311
    %s313 = sphi 0, %s311
    %s314 = sphi 0, %s313
    %s328 = sphi 0, %s314
    %s334 = sphi 0, %s336
    %s337 = sphi 0, %s334
    %s338 = sphi 0, %s337
    %s354 = sphi 0, %s338
  $region4: #{self_attention_module.2} parent=0 // loop_header_branch
    %22 = sbr.rel (%p20) target = $region8
  $region5: #{self_attention_module.2} parent=0 // loop_body
    %s24 = ssub.s32 %s19, 1
    %s25 = ssub.s32 %s19, 2
    %s32 = sadd.s32 1, %s27
    %p33 = scmp.ge.s32.totalorder %s32, 1
    %s34 = scalar_select %p33, 0, %s32
    %s35 = sadd.s32 1, %s26
    %s36 = scalar_select %p33, %s35, %s26
    %p37 = scmp.ge.s32.totalorder %s36, 2
    %s38 = scalar_select %p37, 0, %s36
    %s39 = ssub.s32 %s26, %s38
    %p40 = scmp.eq.s32.totalorder %s39, 0
    %s42 = sadd.s32 %s41, 1
    %s43 = scalar_select %p40, %s41, %s42
    %p46 = pneg %p40
    %p47 = scmp.eq.s32.totalorder %s19, 1
    %p48 = por %p46, %p47
    %p49 = scmp.ne.s32.totalorder %s41, %s44
    %p50 = scmp.eq.s32.totalorder %s19, 0
    %p51 = por %p49, %p50
    %p52 = scmp.ne.s32.totalorder %s41, %s44
    %p53 = scmp.eq.s32.totalorder %s24, 1
    %p54 = por %p52, %p53
    %p55 = scmp.ne.s32.totalorder %s44, %s45
    %p56 = scmp.eq.s32.totalorder %s24, 0
    %p57 = por %p55, %p56
    %p58 = scmp.ne.s32.totalorder %s44, %s45
    %p59 = scmp.eq.s32.totalorder %s25, 1
    %p60 = por %p58, %p59
    %p62 = scmp.ne.s32.totalorder %s45, %s61
    %p63 = scmp.eq.s32.totalorder %s25, 0
    %p64 = por %p62, %p63
    %s66 = sadd.s32 %s65, 1
    %p69 = scmp.eq.s32.totalorder %s19, 1
    %p70 = scmp.ne.s32.totalorder %s65, %s67
    %p71 = scmp.eq.s32.totalorder %s19, 0
    %p72 = por %p70, %p71
    %p73 = scmp.ne.s32.totalorder %s65, %s67
    %p74 = scmp.eq.s32.totalorder %s24, 1
    %p75 = por %p73, %p74
    %p76 = scmp.ne.s32.totalorder %s67, %s68
    %p77 = scmp.eq.s32.totalorder %s24, 0
    %p78 = por %p76, %p77
    %p79 = scmp.ne.s32.totalorder %s67, %s68
    %p80 = scmp.eq.s32.totalorder %s25, 1
    %p81 = por %p79, %p80
    %p83 = scmp.ne.s32.totalorder %s68, %s82
    %p84 = scmp.eq.s32.totalorder %s25, 0
    %p85 = por %p83, %p84
    %s87 = sadd.s32 %s86, 1
    %p90 = scmp.eq.s32.totalorder %s19, 1
    %p91 = scmp.ne.s32.totalorder %s86, %s88
    %p92 = scmp.eq.s32.totalorder %s19, 0
    %p93 = por %p91, %p92
    %p94 = scmp.ne.s32.totalorder %s86, %s88
    %p95 = scmp.eq.s32.totalorder %s24, 1
    %p96 = por %p94, %p95
    %p97 = scmp.ne.s32.totalorder %s88, %s89
    %p98 = scmp.eq.s32.totalorder %s24, 0
    %p99 = por %p97, %p98
    %p100 = scmp.ne.s32.totalorder %s88, %s89
    %p101 = scmp.eq.s32.totalorder %s25, 1
    %p102 = por %p100, %p101
    %p104 = scmp.ne.s32.totalorder %s89, %s103
    %p105 = scmp.eq.s32.totalorder %s25, 0
    %p106 = por %p104, %p105
    %s108 = sadd.s32 %s107, 1
    %p111 = scmp.eq.s32.totalorder %s19, 1
    %p112 = scmp.ne.s32.totalorder %s107, %s109
    %p113 = scmp.eq.s32.totalorder %s19, 0
    %p114 = por %p112, %p113
    %p115 = scmp.ne.s32.totalorder %s107, %s109
    %p116 = scmp.eq.s32.totalorder %s24, 1
    %p117 = por %p115, %p116
    %p118 = scmp.ne.s32.totalorder %s109, %s110
    %p119 = scmp.eq.s32.totalorder %s24, 0
    %p120 = por %p118, %p119
    %p121 = scmp.ne.s32.totalorder %s109, %s110
    %p122 = scmp.eq.s32.totalorder %s25, 1
    %p123 = por %p121, %p122
    %p125 = scmp.ne.s32.totalorder %s110, %s124
    %p126 = scmp.eq.s32.totalorder %s25, 0
    %p127 = por %p125, %p126
    %s129 = sadd.s32 %s128, 1
    %p132 = scmp.eq.s32.totalorder %s19, 1
    %p133 = scmp.ne.s32.totalorder %s128, %s130
    %p134 = scmp.eq.s32.totalorder %s19, 0
    %p135 = por %p133, %p134
    %p136 = scmp.ne.s32.totalorder %s128, %s130
    %p137 = scmp.eq.s32.totalorder %s24, 1
    %p138 = por %p136, %p137
    %p139 = scmp.ne.s32.totalorder %s130, %s131
    %p140 = scmp.eq.s32.totalorder %s24, 0
    %p141 = por %p139, %p140
    %p142 = scmp.ne.s32.totalorder %s130, %s131
    %p143 = scmp.eq.s32.totalorder %s25, 1
    %p144 = por %p142, %p143
    %p146 = scmp.ne.s32.totalorder %s131, %s145
    %p147 = scmp.eq.s32.totalorder %s25, 0
    %p148 = por %p146, %p147
    %s150 = sadd.s32 %s149, 1
    %p153 = scmp.eq.s32.totalorder %s19, 1
    %p154 = scmp.ne.s32.totalorder %s149, %s151
    %p155 = scmp.eq.s32.totalorder %s19, 0
    %p156 = por %p154, %p155
    %p157 = scmp.ne.s32.totalorder %s149, %s151
    %p158 = scmp.eq.s32.totalorder %s24, 1
    %p159 = por %p157, %p158
    %p160 = scmp.ne.s32.totalorder %s151, %s152
    %p161 = scmp.eq.s32.totalorder %s24, 0
    %p162 = por %p160, %p161
    %p163 = scmp.ne.s32.totalorder %s151, %s152
    %p164 = scmp.eq.s32.totalorder %s25, 1
    %p165 = por %p163, %p164
    %p167 = scmp.ne.s32.totalorder %s152, %s166
    %p168 = scmp.eq.s32.totalorder %s25, 0
    %p169 = por %p167, %p168
    %s171 = sadd.s32 %s170, 1
    %p174 = scmp.eq.s32.totalorder %s19, 1
    %p175 = scmp.ne.s32.totalorder %s170, %s172
    %p176 = scmp.eq.s32.totalorder %s19, 0
    %p177 = por %p175, %p176
    %p178 = scmp.ne.s32.totalorder %s170, %s172
    %p179 = scmp.eq.s32.totalorder %s24, 1
    %p180 = por %p178, %p179
    %p181 = scmp.ne.s32.totalorder %s172, %s173
    %p182 = scmp.eq.s32.totalorder %s24, 0
    %p183 = por %p181, %p182
    %p184 = scmp.ne.s32.totalorder %s172, %s173
    %p185 = scmp.eq.s32.totalorder %s25, 1
    %p186 = por %p184, %p185
    %p188 = scmp.ne.s32.totalorder %s173, %s187
    %p189 = scmp.eq.s32.totalorder %s25, 0
    %p190 = por %p188, %p189
    %s192 = sadd.s32 %s191, 1
    %p195 = scmp.eq.s32.totalorder %s19, 1
    %p196 = scmp.ne.s32.totalorder %s191, %s193
    %p197 = scmp.eq.s32.totalorder %s19, 0
    %p198 = por %p196, %p197
    %p199 = scmp.ne.s32.totalorder %s191, %s193
    %p200 = scmp.eq.s32.totalorder %s24, 1
    %p201 = por %p199, %p200
    %p202 = scmp.ne.s32.totalorder %s193, %s194
    %p203 = scmp.eq.s32.totalorder %s24, 0
    %p204 = por %p202, %p203
    %p205 = scmp.ne.s32.totalorder %s193, %s194
    %p206 = scmp.eq.s32.totalorder %s25, 1
    %p207 = por %p205, %p206
    %p209 = scmp.ne.s32.totalorder %s194, %s208
    %p210 = scmp.eq.s32.totalorder %s25, 0
    %p211 = por %p209, %p210
    %s213 = sadd.s32 %s212, 1
    %p216 = scmp.eq.s32.totalorder %s19, 1
    %p217 = scmp.ne.s32.totalorder %s212, %s214
    %p218 = scmp.eq.s32.totalorder %s19, 0
    %p219 = por %p217, %p218
    %p220 = scmp.ne.s32.totalorder %s212, %s214
    %p221 = scmp.eq.s32.totalorder %s24, 1
    %p222 = por %p220, %p221
    %p223 = scmp.ne.s32.totalorder %s214, %s215
    %p224 = scmp.eq.s32.totalorder %s24, 0
    %p225 = por %p223, %p224
    %p226 = scmp.ne.s32.totalorder %s214, %s215
    %p227 = scmp.eq.s32.totalorder %s25, 1
    %p228 = por %p226, %p227
    %p230 = scmp.ne.s32.totalorder %s215, %s229
    %p231 = scmp.eq.s32.totalorder %s25, 0
    %p232 = por %p230, %p231
    %s233 = ssub.s32 %s27, %s34
    %p234 = scmp.eq.s32.totalorder %s233, 0
    %s236 = sadd.s32 %s235, 1
    %s237 = scalar_select %p234, %s235, %s236
    %p240 = pneg %p234
    %p241 = scmp.eq.s32.totalorder %s19, 1
    %p242 = por %p240, %p241
    %p243 = scmp.ne.s32.totalorder %s235, %s238
    %p244 = scmp.eq.s32.totalorder %s19, 0
    %p245 = por %p243, %p244
    %p246 = scmp.ne.s32.totalorder %s235, %s238
    %p247 = scmp.eq.s32.totalorder %s24, 1
    %p248 = por %p246, %p247
    %p249 = scmp.ne.s32.totalorder %s238, %s239
    %p250 = scmp.eq.s32.totalorder %s24, 0
    %p251 = por %p249, %p250
    %p252 = scmp.ne.s32.totalorder %s238, %s239
    %p253 = scmp.eq.s32.totalorder %s25, 1
    %p254 = por %p252, %p253
    %p256 = scmp.ne.s32.totalorder %s239, %s255
    %p257 = scmp.eq.s32.totalorder %s25, 0
    %p258 = por %p256, %p257
    %s259 = ssub.s32 %s27, %s34
    %p260 = scmp.eq.s32.totalorder %s259, 0
    %s262 = sadd.s32 %s261, 1
    %s263 = scalar_select %p260, %s261, %s262
    %p266 = pneg %p260
    %p267 = scmp.eq.s32.totalorder %s19, 1
    %p268 = por %p266, %p267
    %p269 = scmp.ne.s32.totalorder %s261, %s264
    %p270 = scmp.eq.s32.totalorder %s19, 0
    %p271 = por %p269, %p270
    %p272 = scmp.ne.s32.totalorder %s261, %s264
    %p273 = scmp.eq.s32.totalorder %s24, 1
    %p274 = por %p272, %p273
    %p275 = scmp.ne.s32.totalorder %s264, %s265
    %p276 = scmp.eq.s32.totalorder %s24, 0
    %p277 = por %p275, %p276
    %p278 = scmp.ne.s32.totalorder %s264, %s265
    %p279 = scmp.eq.s32.totalorder %s25, 1
    %p280 = por %p278, %p279
    %p282 = scmp.ne.s32.totalorder %s265, %s281
    %p283 = scmp.eq.s32.totalorder %s25, 0
    %p284 = por %p282, %p283
    %s285 = ssub.s32 %s27, %s34
    %p286 = scmp.eq.s32.totalorder %s285, 0
    %s288 = sadd.s32 %s287, 1
    %s289 = scalar_select %p286, %s287, %s288
    %p292 = pneg %p286
    %p293 = scmp.eq.s32.totalorder %s19, 1
    %p294 = por %p292, %p293
    %p295 = scmp.ne.s32.totalorder %s287, %s290
    %p296 = scmp.eq.s32.totalorder %s19, 0
    %p297 = por %p295, %p296
    %p298 = scmp.ne.s32.totalorder %s287, %s290
    %p299 = scmp.eq.s32.totalorder %s24, 1
    %p300 = por %p298, %p299
    %p301 = scmp.ne.s32.totalorder %s290, %s291
    %p302 = scmp.eq.s32.totalorder %s24, 0
    %p303 = por %p301, %p302
    %p304 = scmp.ne.s32.totalorder %s290, %s291
    %p305 = scmp.eq.s32.totalorder %s25, 1
    %p306 = por %p304, %p305
    %p308 = scmp.ne.s32.totalorder %s291, %s307
    %p309 = scmp.eq.s32.totalorder %s25, 0
    %p310 = por %p308, %p309
    %s312 = sadd.s32 %s311, 1
    %p315 = scmp.eq.s32.totalorder %s19, 1
    %p316 = scmp.ne.s32.totalorder %s311, %s313
    %p317 = scmp.eq.s32.totalorder %s19, 0
    %p318 = por %p316, %p317
    %p319 = scmp.ne.s32.totalorder %s311, %s313
    %p320 = scmp.eq.s32.totalorder %s24, 1
    %p321 = por %p319, %p320
    %p322 = scmp.ne.s32.totalorder %s313, %s314
    %p323 = scmp.eq.s32.totalorder %s24, 0
    %p324 = por %p322, %p323
    %p325 = scmp.ne.s32.totalorder %s313, %s314
    %p326 = scmp.eq.s32.totalorder %s25, 1
    %p327 = por %p325, %p326
    %p329 = scmp.ne.s32.totalorder %s314, %s328
    %p330 = scmp.eq.s32.totalorder %s25, 0
    %p331 = por %p329, %p330
    %s332 = ssub.s32 %s26, %s38
    %p333 = scmp.eq.s32.totalorder %s332, 0
    %s335 = sadd.s32 %s334, 1
    %s336 = scalar_select %p333, %s334, %s335
    %p339 = pneg %p333
    %p340 = scmp.eq.s32.totalorder %s19, 1
    %p341 = por %p339, %p340
    %p342 = scmp.ne.s32.totalorder %s334, %s337
    %p343 = scmp.eq.s32.totalorder %s19, 0
    %p344 = por %p342, %p343
    %p345 = scmp.ne.s32.totalorder %s334, %s337
    %p346 = scmp.eq.s32.totalorder %s24, 1
    %p347 = por %p345, %p346
    %p348 = scmp.ne.s32.totalorder %s337, %s338
    %p349 = scmp.eq.s32.totalorder %s24, 0
    %p350 = por %p348, %p349
    %p351 = scmp.ne.s32.totalorder %s337, %s338
    %p352 = scmp.eq.s32.totalorder %s25, 1
    %p353 = por %p351, %p352
    %p355 = scmp.ne.s32.totalorder %s338, %s354
    %p356 = scmp.eq.s32.totalorder %s25, 0
    %p357 = por %p355, %p356
    %p358 = scmp.le.s32.totalorder 1, %s19
    %p359 = scmp.lt.s32.totalorder %s19, 3
    %p360 = pnand %p358, %p359
    %p361 = pneg %p360
    // Predicated region
    $region9: #{self_attention_module.2} parent=5 // pred_check
      _
    $region10: #{self_attention_module.2} parent=5 // pred_check_branch
      %363 = sbr.rel (%p360) target = $region12
    $region11: #{self_attention_module.2} parent=5 // pred_region
      %s364 = ssub.s32 %s19, 1
      // Predicated region
      $region13: #{self_attention_module.2} parent=11 // pred_check
        %p365 = pneg %p78
      $region14: #{self_attention_module.2} parent=11 // pred_check_branch
        %367 = sbr.rel (%p365) target = $region16
      $region15: #{self_attention_module.2} parent=11 // pred_region
        _
      $region16: #{self_attention_module.2} parent=11 // pred_fallthru
        _
      // Predicated region
      $region17: #{self_attention_module.2} parent=11 // pred_check
        %p368 = pneg %p99
      $region18: #{self_attention_module.2} parent=11 // pred_check_branch
        %370 = sbr.rel (%p368) target = $region20
      $region19: #{self_attention_module.2} parent=11 // pred_region
        _
      $region20: #{self_attention_module.2} parent=11 // pred_fallthru
        _
      // Predicated region
      $region21: #{self_attention_module.2} parent=11 // pred_check
        %p371 = pneg %p120
      $region22: #{self_attention_module.2} parent=11 // pred_check_branch
        %373 = sbr.rel (%p371) target = $region24
      $region23: #{self_attention_module.2} parent=11 // pred_region
        _
      $region24: #{self_attention_module.2} parent=11 // pred_fallthru
        _
      // Predicated region
      $region25: #{self_attention_module.2} parent=11 // pred_check
        %p374 = pneg %p141
      $region26: #{self_attention_module.2} parent=11 // pred_check_branch
        %376 = sbr.rel (%p374) target = $region28
      $region27: #{self_attention_module.2} parent=11 // pred_region
        _
      $region28: #{self_attention_module.2} parent=11 // pred_fallthru
        _
      // Predicated region
      $region29: #{self_attention_module.2} parent=11 // pred_check
        %p377 = pneg %p162
      $region30: #{self_attention_module.2} parent=11 // pred_check_branch
        %379 = sbr.rel (%p377) target = $region32
      $region31: #{self_attention_module.2} parent=11 // pred_region
        _
      $region32: #{self_attention_module.2} parent=11 // pred_fallthru
        _
      // Predicated region
      $region33: #{self_attention_module.2} parent=11 // pred_check
        %p380 = pneg %p183
      $region34: #{self_attention_module.2} parent=11 // pred_check_branch
        %382 = sbr.rel (%p380) target = $region36
      $region35: #{self_attention_module.2} parent=11 // pred_region
        _
      $region36: #{self_attention_module.2} parent=11 // pred_fallthru
        _
      // Predicated region
      $region37: #{self_attention_module.2} parent=11 // pred_check
        %p383 = pneg %p204
      $region38: #{self_attention_module.2} parent=11 // pred_check_branch
        %385 = sbr.rel (%p383) target = $region40
      $region39: #{self_attention_module.2} parent=11 // pred_region
        _
      $region40: #{self_attention_module.2} parent=11 // pred_fallthru
        _
      // Predicated region
      $region41: #{self_attention_module.2} parent=11 // pred_check
        %p386 = pneg %p225
      $region42: #{self_attention_module.2} parent=11 // pred_check_branch
        %388 = sbr.rel (%p386) target = $region44
      $region43: #{self_attention_module.2} parent=11 // pred_region
        _
      $region44: #{self_attention_module.2} parent=11 // pred_fallthru
        _
      // Predicated region
      $region45: #{self_attention_module.2} parent=11 // pred_check
        %p389 = pneg %p251
      $region46: #{self_attention_module.2} parent=11 // pred_check_branch
        %391 = sbr.rel (%p389) target = $region48
      $region47: #{self_attention_module.2} parent=11 // pred_region
        %p392 = scmp.lt.s32.totalorder %s29, 0
        %s393 = scalar_select %p392, %s29, 0
        %s394 = smul.addr %s393, 4
        %s395 = scalar_lea.vmem %s9, %s394
      $region48: #{self_attention_module.2} parent=11 // pred_fallthru
        _
      // Predicated region
      $region49: #{self_attention_module.2} parent=11 // pred_check
        %p396 = pneg %p277
      $region50: #{self_attention_module.2} parent=11 // pred_check_branch
        %398 = sbr.rel (%p396) target = $region52
      $region51: #{self_attention_module.2} parent=11 // pred_region
        %p399 = scmp.lt.s32.totalorder %s29, 0
        %s400 = scalar_select %p399, %s29, 0
        %s401 = scalar_lea.vmem %s10, %s400
      $region52: #{self_attention_module.2} parent=11 // pred_fallthru
        _
      // Predicated region
      $region53: #{self_attention_module.2} parent=11 // pred_check
        %p402 = pneg %p303
      $region54: #{self_attention_module.2} parent=11 // pred_check_branch
        %404 = sbr.rel (%p402) target = $region56
      $region55: #{self_attention_module.2} parent=11 // pred_region
        %s405 = smul.u32 8, %s29
        %p406 = scmp.lt.s32.totalorder %s405, 7
        %s407 = scalar_select %p406, %s405, 7
        %s408 = smul.addr %s407, 4
        %s409 = scalar_lea.vmem %s11, %s408
        %s410 = smul.u32 8, %s29
      $region56: #{self_attention_module.2} parent=11 // pred_fallthru
        _
      // Predicated region
      $region57: #{self_attention_module.2} parent=11 // pred_check
        %p411 = pneg %p324
      $region58: #{self_attention_module.2} parent=11 // pred_check_branch
        %413 = sbr.rel (%p411) target = $region60
      $region59: #{self_attention_module.2} parent=11 // pred_region
        _
      $region60: #{self_attention_module.2} parent=11 // pred_fallthru
        _
    $region12: #{self_attention_module.2} parent=5 // pred_fallthru
      _
    %p414 = scmp.lt.s32.totalorder %s19, 2
    // Predicated region
    $region61: #{self_attention_module.2} parent=5 // pred_check
      %p415 = pneg %p414
    $region62: #{self_attention_module.2} parent=5 // pred_check_branch
      %417 = sbr.rel (%p415) target = $region64
    $region63: #{self_attention_module.2} parent=5 // pred_region
      // Predicated region
      $region65: #{self_attention_module.2} parent=63 // pred_check
        %p418 = pneg %p51
      $region66: #{self_attention_module.2} parent=63 // pred_check_branch
        %420 = sbr.rel (%p418) target = $region68
      $region67: #{self_attention_module.2} parent=63 // pred_region
        %p421 = scmp.lt.s32.totalorder %s26, 1
        %s422 = scalar_select %p421, %s26, 1
        %s423 = smul.addr %s422, 8
        %s424 = scalar_lea.vmem %s0, %s423
      $region68: #{self_attention_module.2} parent=63 // pred_fallthru
        _
    $region64: #{self_attention_module.2} parent=5 // pred_fallthru
      _
    %p425 = scmp.le.s32.totalorder 1, %s19
    %p426 = scmp.lt.s32.totalorder %s19, 3
    %p427 = pnand %p425, %p426
    %p428 = pneg %p427
    // Predicated region
    $region69: #{self_attention_module.2} parent=5 // pred_check
      _
    $region70: #{self_attention_module.2} parent=5 // pred_check_branch
      %430 = sbr.rel (%p427) target = $region72
    $region71: #{self_attention_module.2} parent=5 // pred_region
      %s431 = ssub.s32 %s19, 1
      %p432 = scmp.lt.s32.totalorder %s28, 1
      %s433 = scalar_select %p432, %s28, 1
      %s434 = smul.addr %s433, 8
      %s435 = scalar_lea.vmem %s0, %s434
      %p436 = pneg %p57
      %p437 = pneg %p54
      %p438 = pneg %p78
      %p439 = pneg %p75
      %p440 = pneg %p99
      %p441 = pneg %p96
      %p442 = pneg %p120
      %p443 = pneg %p117
      %p444 = pneg %p141
      %p445 = pneg %p138
      %p446 = pneg %p162
      %p447 = pneg %p159
      %p448 = pneg %p183
      %p449 = pneg %p180
      %p450 = pneg %p204
      %p451 = pneg %p201
      %p452 = pneg %p225
      %p453 = pneg %p222
      %p454 = scmp.lt.s32.totalorder %s29, 0
      %s455 = scalar_select %p454, %s29, 0
      %s456 = smul.addr %s455, 4
      %s457 = scalar_lea.vmem %s9, %s456
      %p458 = pneg %p251
      %p459 = pneg %p248
      %p460 = scmp.lt.s32.totalorder %s29, 0
      %s461 = scalar_select %p460, %s29, 0
      %s462 = scalar_lea.vmem %s10, %s461
      %p463 = pneg %p277
      %p464 = pneg %p274
      %s465 = smul.u32 8, %s29
      %p466 = scmp.lt.s32.totalorder %s465, 7
      %s467 = scalar_select %p466, %s465, 7
      %s468 = smul.addr %s467, 4
      %s469 = scalar_lea.vmem %s11, %s468
      %p470 = pneg %p303
      %p471 = pneg %p300
      %p472 = pneg %p324
      %p473 = pneg %p321
      %p474 = pneg %p350
      %p475 = pneg %p347
      %p476 = scmp.lt.s32.totalorder %s28, 1
      %s477 = scalar_select %p476, %s28, 1
      %s478 = smul.addr %s477, 8
      %s479 = scalar_lea.vmem %s13, %s478
      %p480 = scmp.lt.s32.totalorder %s28, 1
      %s481 = scalar_select %p480, %s28, 1
      %s482 = smul.addr %s481, 8
      %s483 = scalar_lea.vmem %s0, %s482
      %p484 = scmp.lt.s32.totalorder %s29, 0
      %s485 = scalar_select %p484, %s29, 0
      %s486 = smul.addr %s485, 4
      %s487 = scalar_lea.vmem %s9, %s486
      %p488 = scmp.lt.s32.totalorder %s29, 0
      %s489 = scalar_select %p488, %s29, 0
      %s490 = scalar_lea.vmem %s10, %s489
      %s491 = smul.u32 8, %s29
      %p492 = scmp.lt.s32.totalorder %s491, 7
      %s493 = scalar_select %p492, %s491, 7
      %s494 = smul.addr %s493, 4
      %s495 = scalar_lea.vmem %s11, %s494
      %s496 = smul.u32 8, %s29
      %p497 = scmp.lt.s32.totalorder %s28, 1
      %s498 = scalar_select %p497, %s28, 1
      %s499 = smul.addr %s498, 8
      %s500 = scalar_lea.vmem %s13, %s499
      %p502 = scmp.eq.s32.totalorder %s29, 0
      // Predicated region
      $region73: #{self_attention_module.2} parent=71 // pred_check
        %p503 = pneg %p502
      $region74: #{self_attention_module.2} parent=71 // pred_check_branch
        %505 = sbr.rel (%p503) target = $region76
      $region75: #{self_attention_module.2} parent=71 // pred_region
        %v506 = vld [vmem:[%s483] sm:$0xff]
        %v507 = vld [vmem:[%s1] sm:$0x1]
        %v508 = vld [vmem:[%s2] sm:$0x1]
        %vm509 = vcmask 261120
        %v510 = vsel %vm509, %v506, 0.0
        %511 = vadd.xlane.f32.xlu0 %v510
        %v512 = vpop.xlane.xlu0 %511
        %v513 = vrcp.pop 32.0
        %v514 = vmul.f32 %v512, %v513
        %v515 = vsub.f32 %v506, %v514
        %v516 = vmul.f32 %v515, %v515
        %v517 = vsel %vm509, %v516, 0.0
        %518 = vadd.xlane.f32.xlu0 %v517
        %v519 = vpop.xlane.xlu0 %518
        %v520 = vmul.f32 %v519, %v513
        %v521 = vadd.f32 %v520, 1e-05
        %v522 = vrsqrt.pop %v521
        %v523 = vmul.f32 %v515, %v522
        %v525 = vlaneseq
        %v526 = vshrl.u32 %v525, 7
        %v527 = vsub.s32 0, %v526
        %v528 = vrot.slane %v507, %v527
        %v530 = vmul.f32 %v523, %v528
        %v532 = vlaneseq
        %v533 = vshrl.u32 %v532, 7
        %v534 = vsub.s32 0, %v533
        %v535 = vrot.slane %v508, %v534
        %v537 = vadd.f32 %v530, %v535
        %v538 = vpack.c.bf16 %v537, %v537
        %v539 = vld [vmem:[%s3] sm:$0xf]
        %v540 = vld [vmem:[%s3 + $0x4] sm:$0xf]
        %v541 = vld [vmem:[%s3 + $0x8] sm:$0xf]
        %v542 = vld [vmem:[%s3 + $0xc] sm:$0xf]
        %v543 = vld [vmem:[%s4] sm:$0x1]
        %v545 = vlaneseq
        %v546 = vshrl.u32 %v545, 7
        %v547 = vsub.s32 0, %v546
        %v548 = vrot.slane %v543, %v547
        %v554 = vunpack.c.l.b16 %v539
        %v555 = vunpack.c.l.b16 %v540
        %v556 = vunpack.c.l.b16 %v541
        %v557 = vunpack.c.l.b16 %v542
        %v558 = vpack.c.b16 %v555, %v554
        %v559 = vpack.c.b16 %v557, %v556
        %v563 = vsel %vm509, %v538, 0
        %565 = vmatprep.subr.bf16.mxu0 0
        %566 = vmatpush1.bf16.msra.mxu0 0
        %567 = vmatprep.subr.bf16.mxu0 0
        %568 = vmatpush1.bf16.msra.mxu0 0
        %569 = vmatprep.subr.bf16.mxu0 0
        %570 = vmatpush1.bf16.msra.mxu0 0
        %571 = vmatprep.subr.bf16.mxu0 0
        %572 = vmatpush1.bf16.msra.mxu0 0
        %573 = vmatprep.subr.bf16.mxu0 0
        %574 = vmatpush1.bf16.msra.mxu0 0
        %575 = vmatprep.subr.bf16.mxu0 0
        %576 = vmatpush1.bf16.msra.mxu0 0
        %577 = vmatprep.subr.bf16.mxu0 0
        %578 = vmatpush1.bf16.msra.mxu0 %v559
        %579 = vmatprep.subr.bf16.mxu0 0
        %580 = vmatpush1.bf16.msra.mxu0 %v558
        %581 = vmatprep.subr.bf16.mxu0 0
        %582 = vmatpush2.bf16.msra.mxu0 0
        %583 = vmatprep.subr.bf16.mxu0 0
        %584 = vmatpush2.bf16.msra.mxu0 0
        %585 = vmatprep.subr.bf16.mxu0 0
        %586 = vmatpush2.bf16.msra.mxu0 0
        %587 = vmatprep.subr.bf16.mxu0 0
        %588 = vmatpush2.bf16.msra.mxu0 0
        %589 = vmatprep.subr.bf16.mxu0 0
        %590 = vmatpush2.bf16.msra.mxu0 0
        %591 = vmatprep.subr.bf16.mxu0 0
        %592 = vmatpush2.bf16.msra.mxu0 0
        %593 = vmatprep.subr.bf16.mxu0 0
        %594 = vmatpush2.bf16.msra.mxu0 0
        %595 = vmatprep.subr.bf16.mxu0 0
        %596 = vmatpush2.bf16.msra.mxu0 0
        %597 = vmatprep.mubr.bf16.mxu0 0
        %598 = vmatmul.mubr.bf16.gmra.mxu0 %v563
        %v599 = vpop.f32.mrf.mxu0
        %v600 = vadd.f32 %v548, %v599
        %v601 = vpop.f32.mrf.mxu0
        %v602 = vpop.f32.mrf.mxu0
        %v603 = vpop.f32.mrf.mxu0
        %604 = vdwg.mxu0
        %606 = vrot.lane.b32.xlu0 %v600, 120
        %v607 = vpop.permute.xlu0 %606
        %609 = vrot.lane.b32.xlu0 %v600, 112
        %v610 = vpop.permute.xlu0 %609
        %612 = vrot.lane.b32.xlu0 %v600, 104
        %v613 = vpop.permute.xlu0 %612
        %v615 = vpack.c.bf16 %v600, %v600
        %v616 = vpack.c.bf16 %v607, %v607
        %v617 = vpack.c.bf16 %v610, %v610
        %v618 = vpack.c.bf16 %v613, %v613
        %620 = vrot.lane.b32.xlu0 %v615, 96
        %v621 = vpop.permute.xlu0 %620
        %vm622 = vcmask 64512
        %v624 = vsel %vm622, %v615, 0
        %v627 = vsel %vm622, %v621, 0
        %629 = vmatprep.subr.bf16.mxu0 0
        %630 = vmatpush1.bf16.xpose.msra.mxu0 0
        %631 = vmatprep.subr.bf16.mxu0 0
        %632 = vmatpush1.bf16.xpose.msra.mxu0 0
        %633 = vmatprep.subr.bf16.mxu0 0
        %634 = vmatpush1.bf16.xpose.msra.mxu0 0
        %635 = vmatprep.subr.bf16.mxu0 0
        %636 = vmatpush1.bf16.xpose.msra.mxu0 0
        %637 = vmatprep.subr.bf16.mxu0 0
        %638 = vmatpush1.bf16.xpose.msra.mxu0 0
        %639 = vmatprep.subr.bf16.mxu0 0
        %640 = vmatpush1.bf16.xpose.msra.mxu0 0
        %641 = vmatprep.subr.bf16.mxu0 0
        %642 = vmatpush1.bf16.xpose.msra.mxu0 0
        %643 = vmatprep.subr.bf16.mxu0 0
        %644 = vmatpush1.bf16.xpose.msra.mxu0 %v627
        %645 = vmatprep.subr.bf16.mxu0 0
        %646 = vmatpush2.bf16.xpose.msra.mxu0 0
        %647 = vmatprep.subr.bf16.mxu0 0
        %648 = vmatpush2.bf16.xpose.msra.mxu0 0
        %649 = vmatprep.subr.bf16.mxu0 0
        %650 = vmatpush2.bf16.xpose.msra.mxu0 0
        %651 = vmatprep.subr.bf16.mxu0 0
        %652 = vmatpush2.bf16.xpose.msra.mxu0 0
        %653 = vmatprep.subr.bf16.mxu0 0
        %654 = vmatpush2.bf16.xpose.msra.mxu0 0
        %655 = vmatprep.subr.bf16.mxu0 0
        %656 = vmatpush2.bf16.xpose.msra.mxu0 0
        %657 = vmatprep.subr.bf16.mxu0 0
        %658 = vmatpush2.bf16.xpose.msra.mxu0 0
        %659 = vmatprep.subr.bf16.mxu0 0
        %660 = vmatpush2.bf16.xpose.msra.mxu0 0
        %661 = vmatprep.mubr.bf16.mxu0 0
        %662 = vmatmul.mubr.bf16.gmra.mxu0 %v624
        %v663 = vpop.f32.mrf.mxu0
        %v664 = vadd.f32 0.0, %v663
        %v665 = vpop.f32.mrf.mxu0
        %v666 = vpop.f32.mrf.mxu0
        %v667 = vpop.f32.mrf.mxu0
        %668 = vdwg.mxu0
        %670 = vrot.lane.b32.xlu0 %v616, 96
        %v671 = vpop.permute.xlu0 %670
        %v673 = vsel %vm622, %v616, 0
        %v676 = vsel %vm622, %v671, 0
        %678 = vmatprep.subr.bf16.mxu0 0
        %679 = vmatpush1.bf16.xpose.msra.mxu0 0
        %680 = vmatprep.subr.bf16.mxu0 0
        %681 = vmatpush1.bf16.xpose.msra.mxu0 0
        %682 = vmatprep.subr.bf16.mxu0 0
        %683 = vmatpush1.bf16.xpose.msra.mxu0 0
        %684 = vmatprep.subr.bf16.mxu0 0
        %685 = vmatpush1.bf16.xpose.msra.mxu0 0
        %686 = vmatprep.subr.bf16.mxu0 0
        %687 = vmatpush1.bf16.xpose.msra.mxu0 0
        %688 = vmatprep.subr.bf16.mxu0 0
        %689 = vmatpush1.bf16.xpose.msra.mxu0 0
        %690 = vmatprep.subr.bf16.mxu0 0
        %691 = vmatpush1.bf16.xpose.msra.mxu0 0
        %692 = vmatprep.subr.bf16.mxu0 0
        %693 = vmatpush1.bf16.xpose.msra.mxu0 %v676
        %694 = vmatprep.subr.bf16.mxu0 0
        %695 = vmatpush2.bf16.xpose.msra.mxu0 0
        %696 = vmatprep.subr.bf16.mxu0 0
        %697 = vmatpush2.bf16.xpose.msra.mxu0 0
        %698 = vmatprep.subr.bf16.mxu0 0
        %699 = vmatpush2.bf16.xpose.msra.mxu0 0
        %700 = vmatprep.subr.bf16.mxu0 0
        %701 = vmatpush2.bf16.xpose.msra.mxu0 0
        %702 = vmatprep.subr.bf16.mxu0 0
        %703 = vmatpush2.bf16.xpose.msra.mxu0 0
        %704 = vmatprep.subr.bf16.mxu0 0
        %705 = vmatpush2.bf16.xpose.msra.mxu0 0
        %706 = vmatprep.subr.bf16.mxu0 0
        %707 = vmatpush2.bf16.xpose.msra.mxu0 0
        %708 = vmatprep.subr.bf16.mxu0 0
        %709 = vmatpush2.bf16.xpose.msra.mxu0 0
        %710 = vmatprep.mubr.bf16.mxu0 0
        %711 = vmatmul.mubr.bf16.gmra.mxu0 %v673
        %v712 = vpop.f32.mrf.mxu0
        %v713 = vadd.f32 0.0, %v712
        %v714 = vpop.f32.mrf.mxu0
        %v715 = vpop.f32.mrf.mxu0
        %v716 = vpop.f32.mrf.mxu0
        %717 = vdwg.mxu0
        %719 = vrot.lane.b32.xlu0 %v617, 96
        %v720 = vpop.permute.xlu0 %719
        %v722 = vsel %vm622, %v617, 0
        %v725 = vsel %vm622, %v720, 0
        %727 = vmatprep.subr.bf16.mxu0 0
        %728 = vmatpush1.bf16.xpose.msra.mxu0 0
        %729 = vmatprep.subr.bf16.mxu0 0
        %730 = vmatpush1.bf16.xpose.msra.mxu0 0
        %731 = vmatprep.subr.bf16.mxu0 0
        %732 = vmatpush1.bf16.xpose.msra.mxu0 0
        %733 = vmatprep.subr.bf16.mxu0 0
        %734 = vmatpush1.bf16.xpose.msra.mxu0 0
        %735 = vmatprep.subr.bf16.mxu0 0
        %736 = vmatpush1.bf16.xpose.msra.mxu0 0
        %737 = vmatprep.subr.bf16.mxu0 0
        %738 = vmatpush1.bf16.xpose.msra.mxu0 0
        %739 = vmatprep.subr.bf16.mxu0 0
        %740 = vmatpush1.bf16.xpose.msra.mxu0 0
        %741 = vmatprep.subr.bf16.mxu0 0
        %742 = vmatpush1.bf16.xpose.msra.mxu0 %v725
        %743 = vmatprep.subr.bf16.mxu0 0
        %744 = vmatpush2.bf16.xpose.msra.mxu0 0
        %745 = vmatprep.subr.bf16.mxu0 0
        %746 = vmatpush2.bf16.xpose.msra.mxu0 0
        %747 = vmatprep.subr.bf16.mxu0 0
        %748 = vmatpush2.bf16.xpose.msra.mxu0 0
        %749 = vmatprep.subr.bf16.mxu0 0
        %750 = vmatpush2.bf16.xpose.msra.mxu0 0
        %751 = vmatprep.subr.bf16.mxu0 0
        %752 = vmatpush2.bf16.xpose.msra.mxu0 0
        %753 = vmatprep.subr.bf16.mxu0 0
        %754 = vmatpush2.bf16.xpose.msra.mxu0 0
        %755 = vmatprep.subr.bf16.mxu0 0
        %756 = vmatpush2.bf16.xpose.msra.mxu0 0
        %757 = vmatprep.subr.bf16.mxu0 0
        %758 = vmatpush2.bf16.xpose.msra.mxu0 0
        %759 = vmatprep.mubr.bf16.mxu0 0
        %760 = vmatmul.mubr.bf16.gmra.mxu0 %v722
        %v761 = vpop.f32.mrf.mxu0
        %v762 = vadd.f32 0.0, %v761
        %v763 = vpop.f32.mrf.mxu0
        %v764 = vpop.f32.mrf.mxu0
        %v765 = vpop.f32.mrf.mxu0
        %766 = vdwg.mxu0
        %768 = vrot.lane.b32.xlu0 %v618, 96
        %v769 = vpop.permute.xlu0 %768
        %v771 = vsel %vm622, %v618, 0
        %v774 = vsel %vm622, %v769, 0
        %776 = vmatprep.subr.bf16.mxu0 0
        %777 = vmatpush1.bf16.xpose.msra.mxu0 0
        %778 = vmatprep.subr.bf16.mxu0 0
        %779 = vmatpush1.bf16.xpose.msra.mxu0 0
        %780 = vmatprep.subr.bf16.mxu0 0
        %781 = vmatpush1.bf16.xpose.msra.mxu0 0
        %782 = vmatprep.subr.bf16.mxu0 0
        %783 = vmatpush1.bf16.xpose.msra.mxu0 0
        %784 = vmatprep.subr.bf16.mxu0 0
        %785 = vmatpush1.bf16.xpose.msra.mxu0 0
        %786 = vmatprep.subr.bf16.mxu0 0
        %787 = vmatpush1.bf16.xpose.msra.mxu0 0
        %788 = vmatprep.subr.bf16.mxu0 0
        %789 = vmatpush1.bf16.xpose.msra.mxu0 0
        %790 = vmatprep.subr.bf16.mxu0 0
        %791 = vmatpush1.bf16.xpose.msra.mxu0 %v774
        %792 = vmatprep.subr.bf16.mxu0 0
        %793 = vmatpush2.bf16.xpose.msra.mxu0 0
        %794 = vmatprep.subr.bf16.mxu0 0
        %795 = vmatpush2.bf16.xpose.msra.mxu0 0
        %796 = vmatprep.subr.bf16.mxu0 0
        %797 = vmatpush2.bf16.xpose.msra.mxu0 0
        %798 = vmatprep.subr.bf16.mxu0 0
        %799 = vmatpush2.bf16.xpose.msra.mxu0 0
        %800 = vmatprep.subr.bf16.mxu0 0
        %801 = vmatpush2.bf16.xpose.msra.mxu0 0
        %802 = vmatprep.subr.bf16.mxu0 0
        %803 = vmatpush2.bf16.xpose.msra.mxu0 0
        %804 = vmatprep.subr.bf16.mxu0 0
        %805 = vmatpush2.bf16.xpose.msra.mxu0 0
        %806 = vmatprep.subr.bf16.mxu0 0
        %807 = vmatpush2.bf16.xpose.msra.mxu0 0
        %808 = vmatprep.mubr.bf16.mxu0 0
        %809 = vmatmul.mubr.bf16.gmra.mxu0 %v771
        %v810 = vpop.f32.mrf.mxu0
        %v811 = vadd.f32 0.0, %v810
        %v812 = vpop.f32.mrf.mxu0
        %v813 = vpop.f32.mrf.mxu0
        %v814 = vpop.f32.mrf.mxu0
        %815 = vdwg.mxu0
        %v816 = vsel %vm622, %v664, -inf
        %817 = vmax.xlane.f32.xlu0 %v816
        %v818 = vpop.xlane.xlu0 %817
        %v819 = vsel %vm622, %v713, -inf
        %820 = vmax.xlane.f32.xlu0 %v819
        %v821 = vpop.xlane.xlu0 %820
        %v822 = vsel %vm622, %v762, -inf
        %823 = vmax.xlane.f32.xlu0 %v822
        %v824 = vpop.xlane.xlu0 %823
        %v825 = vsel %vm622, %v811, -inf
        %826 = vmax.xlane.f32.xlu0 %v825
        %v827 = vpop.xlane.xlu0 %826
        %v828 = vsub.f32 %v664, %v818
        %v829 = vsub.f32 %v713, %v821
        %v830 = vsub.f32 %v762, %v824
        %v831 = vsub.f32 %v811, %v827
        %v832 = vmul.f32 %v828, 1.442695
        %v833 = vpow.pop %v832
        %v834 = vmul.f32 %v829, 1.442695
        %v835 = vpow.pop %v834
        %v836 = vmul.f32 %v830, 1.442695
        %v837 = vpow.pop %v836
        %v838 = vmul.f32 %v831, 1.442695
        %v839 = vpow.pop %v838
        %v840 = vsel %vm622, %v833, 0.0
        %841 = vadd.xlane.f32.xlu0 %v840
        %v842 = vpop.xlane.xlu0 %841
        %v843 = vsel %vm622, %v835, 0.0
        %844 = vadd.xlane.f32.xlu0 %v843
        %v845 = vpop.xlane.xlu0 %844
        %v846 = vsel %vm622, %v837, 0.0
        %847 = vadd.xlane.f32.xlu0 %v846
        %v848 = vpop.xlane.xlu0 %847
        %v849 = vsel %vm622, %v839, 0.0
        %850 = vadd.xlane.f32.xlu0 %v849
        %v851 = vpop.xlane.xlu0 %850
        %v852 = vpack.c.bf16 %v833, %v833
        %v853 = vpack.c.bf16 %v835, %v835
        %v854 = vpack.c.bf16 %v837, %v837
        %v855 = vpack.c.bf16 %v839, %v839
        %856 = vrot.lane.b32.xlu0 %v615, 64
        %v857 = vpop.permute.xlu0 %856
        %v859 = vsel %vm622, %v852, 0
        %vm861 = vcmask 1043456
        %v863 = vsel %vm861, %v857, 0
        %865 = vmatprep.subr.bf16.mxu0 0
        %866 = vmatpush1.bf16.msra.mxu0 0
        %867 = vmatprep.subr.bf16.mxu0 0
        %868 = vmatpush1.bf16.msra.mxu0 0
        %869 = vmatprep.subr.bf16.mxu0 0
        %870 = vmatpush1.bf16.msra.mxu0 0
        %871 = vmatprep.subr.bf16.mxu0 0
        %872 = vmatpush1.bf16.msra.mxu0 0
        %873 = vmatprep.subr.bf16.mxu0 0
        %874 = vmatpush1.bf16.msra.mxu0 0
        %875 = vmatprep.subr.bf16.mxu0 0
        %876 = vmatpush1.bf16.msra.mxu0 0
        %877 = vmatprep.subr.bf16.mxu0 0
        %878 = vmatpush1.bf16.msra.mxu0 0
        %879 = vmatprep.subr.bf16.mxu0 0
        %880 = vmatpush1.bf16.msra.mxu0 %v863
        %881 = vmatprep.subr.bf16.mxu0 0
        %882 = vmatpush2.bf16.msra.mxu0 0
        %883 = vmatprep.subr.bf16.mxu0 0
        %884 = vmatpush2.bf16.msra.mxu0 0
        %885 = vmatprep.subr.bf16.mxu0 0
        %886 = vmatpush2.bf16.msra.mxu0 0
        %887 = vmatprep.subr.bf16.mxu0 0
        %888 = vmatpush2.bf16.msra.mxu0 0
        %889 = vmatprep.subr.bf16.mxu0 0
        %890 = vmatpush2.bf16.msra.mxu0 0
        %891 = vmatprep.subr.bf16.mxu0 0
        %892 = vmatpush2.bf16.msra.mxu0 0
        %893 = vmatprep.subr.bf16.mxu0 0
        %894 = vmatpush2.bf16.msra.mxu0 0
        %895 = vmatprep.subr.bf16.mxu0 0
        %896 = vmatpush2.bf16.msra.mxu0 0
        %897 = vmatprep.mubr.bf16.mxu0 0
        %898 = vmatmul.mubr.bf16.gmra.mxu0 %v859
        %v899 = vpop.f32.mrf.mxu0
        %v900 = vadd.f32 0.0, %v899
        %v901 = vpop.f32.mrf.mxu0
        %v902 = vpop.f32.mrf.mxu0
        %v903 = vpop.f32.mrf.mxu0
        %904 = vdwg.mxu0
        %905 = vrot.lane.b32.xlu0 %v616, 64
        %v906 = vpop.permute.xlu0 %905
        %v908 = vsel %vm622, %v853, 0
        %v911 = vsel %vm861, %v906, 0
        %913 = vmatprep.subr.bf16.mxu0 0
        %914 = vmatpush1.bf16.msra.mxu0 0
        %915 = vmatprep.subr.bf16.mxu0 0
        %916 = vmatpush1.bf16.msra.mxu0 0
        %917 = vmatprep.subr.bf16.mxu0 0
        %918 = vmatpush1.bf16.msra.mxu0 0
        %919 = vmatprep.subr.bf16.mxu0 0
        %920 = vmatpush1.bf16.msra.mxu0 0
        %921 = vmatprep.subr.bf16.mxu0 0
        %922 = vmatpush1.bf16.msra.mxu0 0
        %923 = vmatprep.subr.bf16.mxu0 0
        %924 = vmatpush1.bf16.msra.mxu0 0
        %925 = vmatprep.subr.bf16.mxu0 0
        %926 = vmatpush1.bf16.msra.mxu0 0
        %927 = vmatprep.subr.bf16.mxu0 0
        %928 = vmatpush1.bf16.msra.mxu0 %v911
        %929 = vmatprep.subr.bf16.mxu0 0
        %930 = vmatpush2.bf16.msra.mxu0 0
        %931 = vmatprep.subr.bf16.mxu0 0
        %932 = vmatpush2.bf16.msra.mxu0 0
        %933 = vmatprep.subr.bf16.mxu0 0
        %934 = vmatpush2.bf16.msra.mxu0 0
        %935 = vmatprep.subr.bf16.mxu0 0
        %936 = vmatpush2.bf16.msra.mxu0 0
        %937 = vmatprep.subr.bf16.mxu0 0
        %938 = vmatpush2.bf16.msra.mxu0 0
        %939 = vmatprep.subr.bf16.mxu0 0
        %940 = vmatpush2.bf16.msra.mxu0 0
        %941 = vmatprep.subr.bf16.mxu0 0
        %942 = vmatpush2.bf16.msra.mxu0 0
        %943 = vmatprep.subr.bf16.mxu0 0
        %944 = vmatpush2.bf16.msra.mxu0 0
        %945 = vmatprep.mubr.bf16.mxu0 0
        %946 = vmatmul.mubr.bf16.gmra.mxu0 %v908
        %v947 = vpop.f32.mrf.mxu0
        %v948 = vadd.f32 0.0, %v947
        %v949 = vpop.f32.mrf.mxu0
        %v950 = vpop.f32.mrf.mxu0
        %v951 = vpop.f32.mrf.mxu0
        %952 = vdwg.mxu0
        %953 = vrot.lane.b32.xlu0 %v617, 64
        %v954 = vpop.permute.xlu0 %953
        %v956 = vsel %vm622, %v854, 0
        %v959 = vsel %vm861, %v954, 0
        %961 = vmatprep.subr.bf16.mxu0 0
        %962 = vmatpush1.bf16.msra.mxu0 0
        %963 = vmatprep.subr.bf16.mxu0 0
        %964 = vmatpush1.bf16.msra.mxu0 0
        %965 = vmatprep.subr.bf16.mxu0 0
        %966 = vmatpush1.bf16.msra.mxu0 0
        %967 = vmatprep.subr.bf16.mxu0 0
        %968 = vmatpush1.bf16.msra.mxu0 0
        %969 = vmatprep.subr.bf16.mxu0 0
        %970 = vmatpush1.bf16.msra.mxu0 0
        %971 = vmatprep.subr.bf16.mxu0 0
        %972 = vmatpush1.bf16.msra.mxu0 0
        %973 = vmatprep.subr.bf16.mxu0 0
        %974 = vmatpush1.bf16.msra.mxu0 0
        %975 = vmatprep.subr.bf16.mxu0 0
        %976 = vmatpush1.bf16.msra.mxu0 %v959
        %977 = vmatprep.subr.bf16.mxu0 0
        %978 = vmatpush2.bf16.msra.mxu0 0
        %979 = vmatprep.subr.bf16.mxu0 0
        %980 = vmatpush2.bf16.msra.mxu0 0
        %981 = vmatprep.subr.bf16.mxu0 0
        %982 = vmatpush2.bf16.msra.mxu0 0
        %983 = vmatprep.subr.bf16.mxu0 0
        %984 = vmatpush2.bf16.msra.mxu0 0
        %985 = vmatprep.subr.bf16.mxu0 0
        %986 = vmatpush2.bf16.msra.mxu0 0
        %987 = vmatprep.subr.bf16.mxu0 0
        %988 = vmatpush2.bf16.msra.mxu0 0
        %989 = vmatprep.subr.bf16.mxu0 0
        %990 = vmatpush2.bf16.msra.mxu0 0
        %991 = vmatprep.subr.bf16.mxu0 0
        %992 = vmatpush2.bf16.msra.mxu0 0
        %993 = vmatprep.mubr.bf16.mxu0 0
        %994 = vmatmul.mubr.bf16.gmra.mxu0 %v956
        %v995 = vpop.f32.mrf.mxu0
        %v996 = vadd.f32 0.0, %v995
        %v997 = vpop.f32.mrf.mxu0
        %v998 = vpop.f32.mrf.mxu0
        %v999 = vpop.f32.mrf.mxu0
        %1000 = vdwg.mxu0
        %1001 = vrot.lane.b32.xlu0 %v618, 64
        %v1002 = vpop.permute.xlu0 %1001
        %v1004 = vsel %vm622, %v855, 0
        %v1007 = vsel %vm861, %v1002, 0
        %1009 = vmatprep.subr.bf16.mxu0 0
        %1010 = vmatpush1.bf16.msra.mxu0 0
        %1011 = vmatprep.subr.bf16.mxu0 0
        %1012 = vmatpush1.bf16.msra.mxu0 0
        %1013 = vmatprep.subr.bf16.mxu0 0
        %1014 = vmatpush1.bf16.msra.mxu0 0
        %1015 = vmatprep.subr.bf16.mxu0 0
        %1016 = vmatpush1.bf16.msra.mxu0 0
        %1017 = vmatprep.subr.bf16.mxu0 0
        %1018 = vmatpush1.bf16.msra.mxu0 0
        %1019 = vmatprep.subr.bf16.mxu0 0
        %1020 = vmatpush1.bf16.msra.mxu0 0
        %1021 = vmatprep.subr.bf16.mxu0 0
        %1022 = vmatpush1.bf16.msra.mxu0 0
        %1023 = vmatprep.subr.bf16.mxu0 0
        %1024 = vmatpush1.bf16.msra.mxu0 %v1007
        %1025 = vmatprep.subr.bf16.mxu0 0
        %1026 = vmatpush2.bf16.msra.mxu0 0
        %1027 = vmatprep.subr.bf16.mxu0 0
        %1028 = vmatpush2.bf16.msra.mxu0 0
        %1029 = vmatprep.subr.bf16.mxu0 0
        %1030 = vmatpush2.bf16.msra.mxu0 0
        %1031 = vmatprep.subr.bf16.mxu0 0
        %1032 = vmatpush2.bf16.msra.mxu0 0
        %1033 = vmatprep.subr.bf16.mxu0 0
        %1034 = vmatpush2.bf16.msra.mxu0 0
        %1035 = vmatprep.subr.bf16.mxu0 0
        %1036 = vmatpush2.bf16.msra.mxu0 0
        %1037 = vmatprep.subr.bf16.mxu0 0
        %1038 = vmatpush2.bf16.msra.mxu0 0
        %1039 = vmatprep.subr.bf16.mxu0 0
        %1040 = vmatpush2.bf16.msra.mxu0 0
        %1041 = vmatprep.mubr.bf16.mxu0 0
        %1042 = vmatmul.mubr.bf16.gmra.mxu0 %v1004
        %v1043 = vpop.f32.mrf.mxu0
        %v1044 = vadd.f32 0.0, %v1043
        %v1045 = vpop.f32.mrf.mxu0
        %v1046 = vpop.f32.mrf.mxu0
        %v1047 = vpop.f32.mrf.mxu0
        %1048 = vdwg.mxu0
        %v1049 = vrcp.pop %v842
        %v1050 = vrcp.pop %v845
        %v1051 = vrcp.pop %v848
        %v1052 = vrcp.pop %v851
        %v1053 = vmul.f32 %v900, %v1049
        %v1054 = vmul.f32 %v948, %v1050
        %v1055 = vmul.f32 %v996, %v1051
        %v1056 = vmul.f32 %v1044, %v1052
        %v1057 = vpack.c.bf16 %v1053, %v1053
        %v1058 = vpack.c.bf16 %v1054, %v1054
        %v1059 = vpack.c.bf16 %v1055, %v1055
        %v1060 = vpack.c.bf16 %v1056, %v1056
        %v1061 = vld [vmem:[%s5] sm:$0xf]
        %v1062 = vld [vmem:[%s5 + $0x4] sm:$0xf]
        %v1063 = vld [vmem:[%s5 + $0x8] sm:$0xf]
        %v1064 = vld [vmem:[%s5 + $0xc] sm:$0xf]
        %v1066 = vsel %vm622, %v1057, 0
        %v1069 = vsel %vm861, %v1061, 0
        %1071 = vmatprep.subr.bf16.mxu0 0
        %1072 = vmatpush1.bf16.msra.mxu0 0
        %1073 = vmatprep.subr.bf16.mxu0 0
        %1074 = vmatpush1.bf16.msra.mxu0 0
        %1075 = vmatprep.subr.bf16.mxu0 0
        %1076 = vmatpush1.bf16.msra.mxu0 0
        %1077 = vmatprep.subr.bf16.mxu0 0
        %1078 = vmatpush1.bf16.msra.mxu0 0
        %1079 = vmatprep.subr.bf16.mxu0 0
        %1080 = vmatpush1.bf16.msra.mxu0 0
        %1081 = vmatprep.subr.bf16.mxu0 0
        %1082 = vmatpush1.bf16.msra.mxu0 0
        %1083 = vmatprep.subr.bf16.mxu0 0
        %1084 = vmatpush1.bf16.msra.mxu0 0
        %1085 = vmatprep.subr.bf16.mxu0 0
        %1086 = vmatpush1.bf16.msra.mxu0 %v1069
        %1087 = vmatprep.subr.bf16.mxu0 0
        %1088 = vmatpush2.bf16.msra.mxu0 0
        %1089 = vmatprep.subr.bf16.mxu0 0
        %1090 = vmatpush2.bf16.msra.mxu0 0
        %1091 = vmatprep.subr.bf16.mxu0 0
        %1092 = vmatpush2.bf16.msra.mxu0 0
        %1093 = vmatprep.subr.bf16.mxu0 0
        %1094 = vmatpush2.bf16.msra.mxu0 0
        %1095 = vmatprep.subr.bf16.mxu0 0
        %1096 = vmatpush2.bf16.msra.mxu0 0
        %1097 = vmatprep.subr.bf16.mxu0 0
        %1098 = vmatpush2.bf16.msra.mxu0 0
        %1099 = vmatprep.subr.bf16.mxu0 0
        %1100 = vmatpush2.bf16.msra.mxu0 0
        %1101 = vmatprep.subr.bf16.mxu0 0
        %1102 = vmatpush2.bf16.msra.mxu0 0
        %1103 = vmatprep.mubr.bf16.mxu0 0
        %1104 = vmatmul.mubr.bf16.gmra.mxu0 %v1066
        %v1105 = vpop.f32.mrf.mxu0
        %v1106 = vadd.f32 0.0, %v1105
        %v1107 = vpop.f32.mrf.mxu0
        %v1108 = vpop.f32.mrf.mxu0
        %v1109 = vpop.f32.mrf.mxu0
        %1110 = vdwg.mxu0
        %v1112 = vsel %vm622, %v1058, 0
        %v1115 = vsel %vm861, %v1062, 0
        %1117 = vmatprep.subr.bf16.mxu0 0
        %1118 = vmatpush1.bf16.msra.mxu0 0
        %1119 = vmatprep.subr.bf16.mxu0 0
        %1120 = vmatpush1.bf16.msra.mxu0 0
        %1121 = vmatprep.subr.bf16.mxu0 0
        %1122 = vmatpush1.bf16.msra.mxu0 0
        %1123 = vmatprep.subr.bf16.mxu0 0
        %1124 = vmatpush1.bf16.msra.mxu0 0
        %1125 = vmatprep.subr.bf16.mxu0 0
        %1126 = vmatpush1.bf16.msra.mxu0 0
        %1127 = vmatprep.subr.bf16.mxu0 0
        %1128 = vmatpush1.bf16.msra.mxu0 0
        %1129 = vmatprep.subr.bf16.mxu0 0
        %1130 = vmatpush1.bf16.msra.mxu0 0
        %1131 = vmatprep.subr.bf16.mxu0 0
        %1132 = vmatpush1.bf16.msra.mxu0 %v1115
        %1133 = vmatprep.subr.bf16.mxu0 0
        %1134 = vmatpush2.bf16.msra.mxu0 0
        %1135 = vmatprep.subr.bf16.mxu0 0
        %1136 = vmatpush2.bf16.msra.mxu0 0
        %1137 = vmatprep.subr.bf16.mxu0 0
        %1138 = vmatpush2.bf16.msra.mxu0 0
        %1139 = vmatprep.subr.bf16.mxu0 0
        %1140 = vmatpush2.bf16.msra.mxu0 0
        %1141 = vmatprep.subr.bf16.mxu0 0
        %1142 = vmatpush2.bf16.msra.mxu0 0
        %1143 = vmatprep.subr.bf16.mxu0 0
        %1144 = vmatpush2.bf16.msra.mxu0 0
        %1145 = vmatprep.subr.bf16.mxu0 0
        %1146 = vmatpush2.bf16.msra.mxu0 0
        %1147 = vmatprep.subr.bf16.mxu0 0
        %1148 = vmatpush2.bf16.msra.mxu0 0
        %1149 = vmatprep.mubr.bf16.mxu0 0
        %1150 = vmatmul.mubr.bf16.gmra.mxu0 %v1112
        %v1151 = vpop.f32.mrf.mxu0
        %v1152 = vadd.f32 0.0, %v1151
        %v1153 = vpop.f32.mrf.mxu0
        %v1154 = vpop.f32.mrf.mxu0
        %v1155 = vpop.f32.mrf.mxu0
        %1156 = vdwg.mxu0
        %v1158 = vsel %vm622, %v1059, 0
        %v1161 = vsel %vm861, %v1063, 0
        %1163 = vmatprep.subr.bf16.mxu0 0
        %1164 = vmatpush1.bf16.msra.mxu0 0
        %1165 = vmatprep.subr.bf16.mxu0 0
        %1166 = vmatpush1.bf16.msra.mxu0 0
        %1167 = vmatprep.subr.bf16.mxu0 0
        %1168 = vmatpush1.bf16.msra.mxu0 0
        %1169 = vmatprep.subr.bf16.mxu0 0
        %1170 = vmatpush1.bf16.msra.mxu0 0
        %1171 = vmatprep.subr.bf16.mxu0 0
        %1172 = vmatpush1.bf16.msra.mxu0 0
        %1173 = vmatprep.subr.bf16.mxu0 0
        %1174 = vmatpush1.bf16.msra.mxu0 0
        %1175 = vmatprep.subr.bf16.mxu0 0
        %1176 = vmatpush1.bf16.msra.mxu0 0
        %1177 = vmatprep.subr.bf16.mxu0 0
        %1178 = vmatpush1.bf16.msra.mxu0 %v1161
        %1179 = vmatprep.subr.bf16.mxu0 0
        %1180 = vmatpush2.bf16.msra.mxu0 0
        %1181 = vmatprep.subr.bf16.mxu0 0
        %1182 = vmatpush2.bf16.msra.mxu0 0
        %1183 = vmatprep.subr.bf16.mxu0 0
        %1184 = vmatpush2.bf16.msra.mxu0 0
        %1185 = vmatprep.subr.bf16.mxu0 0
        %1186 = vmatpush2.bf16.msra.mxu0 0
        %1187 = vmatprep.subr.bf16.mxu0 0
        %1188 = vmatpush2.bf16.msra.mxu0 0
        %1189 = vmatprep.subr.bf16.mxu0 0
        %1190 = vmatpush2.bf16.msra.mxu0 0
        %1191 = vmatprep.subr.bf16.mxu0 0
        %1192 = vmatpush2.bf16.msra.mxu0 0
        %1193 = vmatprep.subr.bf16.mxu0 0
        %1194 = vmatpush2.bf16.msra.mxu0 0
        %1195 = vmatprep.mubr.bf16.mxu0 0
        %1196 = vmatmul.mubr.bf16.gmra.mxu0 %v1158
        %v1197 = vpop.f32.mrf.mxu0
        %v1198 = vadd.f32 0.0, %v1197
        %v1199 = vpop.f32.mrf.mxu0
        %v1200 = vpop.f32.mrf.mxu0
        %v1201 = vpop.f32.mrf.mxu0
        %1202 = vdwg.mxu0
        %v1204 = vsel %vm622, %v1060, 0
        %v1207 = vsel %vm861, %v1064, 0
        %1209 = vmatprep.subr.bf16.mxu0 0
        %1210 = vmatpush1.bf16.msra.mxu0 0
        %1211 = vmatprep.subr.bf16.mxu0 0
        %1212 = vmatpush1.bf16.msra.mxu0 0
        %1213 = vmatprep.subr.bf16.mxu0 0
        %1214 = vmatpush1.bf16.msra.mxu0 0
        %1215 = vmatprep.subr.bf16.mxu0 0
        %1216 = vmatpush1.bf16.msra.mxu0 0
        %1217 = vmatprep.subr.bf16.mxu0 0
        %1218 = vmatpush1.bf16.msra.mxu0 0
        %1219 = vmatprep.subr.bf16.mxu0 0
        %1220 = vmatpush1.bf16.msra.mxu0 0
        %1221 = vmatprep.subr.bf16.mxu0 0
        %1222 = vmatpush1.bf16.msra.mxu0 0
        %1223 = vmatprep.subr.bf16.mxu0 0
        %1224 = vmatpush1.bf16.msra.mxu0 %v1207
        %1225 = vmatprep.subr.bf16.mxu0 0
        %1226 = vmatpush2.bf16.msra.mxu0 0
        %1227 = vmatprep.subr.bf16.mxu0 0
        %1228 = vmatpush2.bf16.msra.mxu0 0
        %1229 = vmatprep.subr.bf16.mxu0 0
        %1230 = vmatpush2.bf16.msra.mxu0 0
        %1231 = vmatprep.subr.bf16.mxu0 0
        %1232 = vmatpush2.bf16.msra.mxu0 0
        %1233 = vmatprep.subr.bf16.mxu0 0
        %1234 = vmatpush2.bf16.msra.mxu0 0
        %1235 = vmatprep.subr.bf16.mxu0 0
        %1236 = vmatpush2.bf16.msra.mxu0 0
        %1237 = vmatprep.subr.bf16.mxu0 0
        %1238 = vmatpush2.bf16.msra.mxu0 0
        %1239 = vmatprep.subr.bf16.mxu0 0
        %1240 = vmatpush2.bf16.msra.mxu0 0
        %1241 = vmatprep.mubr.bf16.mxu0 0
        %1242 = vmatmul.mubr.bf16.gmra.mxu0 %v1204
        %v1243 = vpop.f32.mrf.mxu0
        %v1244 = vadd.f32 0.0, %v1243
        %v1245 = vpop.f32.mrf.mxu0
        %v1246 = vpop.f32.mrf.mxu0
        %v1247 = vpop.f32.mrf.mxu0
        %1248 = vdwg.mxu0
        %v1249 = vsel %vm509, %v1106, 0.0
        %v1250 = vsel %vm509, %v1152, 0.0
        %v1251 = vadd.f32 %v1249, %v1250
        %v1252 = vsel %vm509, %v1198, 0.0
        %v1253 = vadd.f32 %v1251, %v1252
        %v1254 = vsel %vm509, %v1244, 0.0
        %v1255 = vadd.f32 %v1253, %v1254
        %v1256 = vld [vmem:[%s6] sm:$0x1]
        %v1258 = vlaneseq
        %v1259 = vshrl.u32 %v1258, 7
        %v1260 = vsub.s32 0, %v1259
        %v1261 = vrot.slane %v1256, %v1260
        %v1263 = vadd.f32 %v1255, %v1261
        %v1264 = vadd.f32 %v506, %v1263
        %1265 = vst.msk [vmem:[#allocation2] sm:$0xff] %vm509, %v1264
        %v1266 = vld [vmem:[%s7] sm:$0x1]
        %v1267 = vld [vmem:[%s8] sm:$0x1]
        %v1268 = vsel %vm509, %v1264, 0.0
        %1269 = vadd.xlane.f32.xlu0 %v1268
        %v1270 = vpop.xlane.xlu0 %1269
        %v1271 = vmul.f32 %v1270, %v513
        %v1272 = vsub.f32 %v1264, %v1271
        %v1273 = vmul.f32 %v1272, %v1272
        %v1274 = vsel %vm509, %v1273, 0.0
        %1275 = vadd.xlane.f32.xlu0 %v1274
        %v1276 = vpop.xlane.xlu0 %1275
        %v1277 = vmul.f32 %v1276, %v513
        %v1278 = vadd.f32 %v1277, 1e-05
        %v1279 = vrsqrt.pop %v1278
        %v1280 = vmul.f32 %v1272, %v1279
        %v1282 = vlaneseq
        %v1283 = vshrl.u32 %v1282, 7
        %v1284 = vsub.s32 0, %v1283
        %v1285 = vrot.slane %v1266, %v1284
        %v1287 = vmul.f32 %v1280, %v1285
        %v1289 = vlaneseq
        %v1290 = vshrl.u32 %v1289, 7
        %v1291 = vsub.s32 0, %v1290
        %v1292 = vrot.slane %v1267, %v1291
        %v1294 = vadd.f32 %v1287, %v1292
        %v1295 = vpack.c.bf16 %v1294, %v1294
        %vm1296 = vcmask 257024
        %1297 = vst.msk [vmem:[#allocation3] sm:$0xf] %vm1296, %v1295
        %1298 = vst.msk [vmem:[#allocation4] sm:$0xff] %vm509, 0.0
      $region76: #{self_attention_module.2} parent=71 // pred_fallthru
        _
      %v1299 = vld [vmem:[#allocation3] sm:$0xf]
      %v1300 = vld [vmem:[%s487] sm:$0xf]
      %v1301 = vld [vmem:[%s487 + $0x4] sm:$0xf]
      %v1302 = vld [vmem:[%s487 + $0x8] sm:$0xf]
      %v1303 = vld [vmem:[%s487 + $0xc] sm:$0xf]
      %v1304 = vld [vmem:[%s490] sm:$0x1]
      %v1306 = vlaneseq
      %v1307 = vshrl.u32 %v1306, 7
      %v1308 = vsub.s32 0, %v1307
      %v1309 = vrot.slane %v1304, %v1308
      %v1315 = vunpack.c.l.b16 %v1300
      %v1316 = vunpack.c.l.b16 %v1301
      %v1317 = vunpack.c.l.b16 %v1302
      %v1318 = vunpack.c.l.b16 %v1303
      %v1319 = vpack.c.b16 %v1316, %v1315
      %v1320 = vpack.c.b16 %v1318, %v1317
      %vm1323 = vcmask 261120
      %v1325 = vsel %vm1323, %v1299, 0
      %1327 = vmatprep.subr.bf16.mxu0 0
      %1328 = vmatpush1.bf16.msra.mxu0 0
      %1329 = vmatprep.subr.bf16.mxu0 0
      %1330 = vmatpush1.bf16.msra.mxu0 0
      %1331 = vmatprep.subr.bf16.mxu0 0
      %1332 = vmatpush1.bf16.msra.mxu0 0
      %1333 = vmatprep.subr.bf16.mxu0 0
      %1334 = vmatpush1.bf16.msra.mxu0 0
      %1335 = vmatprep.subr.bf16.mxu0 0
      %1336 = vmatpush1.bf16.msra.mxu0 0
      %1337 = vmatprep.subr.bf16.mxu0 0
      %1338 = vmatpush1.bf16.msra.mxu0 0
      %1339 = vmatprep.subr.bf16.mxu0 0
      %1340 = vmatpush1.bf16.msra.mxu0 %v1320
      %1341 = vmatprep.subr.bf16.mxu0 0
      %1342 = vmatpush1.bf16.msra.mxu0 %v1319
      %1343 = vmatprep.subr.bf16.mxu0 0
      %1344 = vmatpush2.bf16.msra.mxu0 0
      %1345 = vmatprep.subr.bf16.mxu0 0
      %1346 = vmatpush2.bf16.msra.mxu0 0
      %1347 = vmatprep.subr.bf16.mxu0 0
      %1348 = vmatpush2.bf16.msra.mxu0 0
      %1349 = vmatprep.subr.bf16.mxu0 0
      %1350 = vmatpush2.bf16.msra.mxu0 0
      %1351 = vmatprep.subr.bf16.mxu0 0
      %1352 = vmatpush2.bf16.msra.mxu0 0
      %1353 = vmatprep.subr.bf16.mxu0 0
      %1354 = vmatpush2.bf16.msra.mxu0 0
      %1355 = vmatprep.subr.bf16.mxu0 0
      %1356 = vmatpush2.bf16.msra.mxu0 0
      %1357 = vmatprep.subr.bf16.mxu0 0
      %1358 = vmatpush2.bf16.msra.mxu0 0
      %1359 = vmatprep.mubr.bf16.mxu0 0
      %1360 = vmatmul.mubr.bf16.gmra.mxu0 %v1325
      %v1361 = vpop.f32.mrf.mxu0
      %v1362 = vadd.f32 %v1309, %v1361
      %v1363 = vpop.f32.mrf.mxu0
      %v1364 = vpop.f32.mrf.mxu0
      %v1365 = vpop.f32.mrf.mxu0
      %1366 = vdwg.mxu0
      %v1367 = vmul.f32 %v1362, 0.5
      %v1368 = vmul.f32 %v1362, 0.044715
      %v1369 = vmul.f32 %v1368, %v1362
      %v1370 = vmul.f32 %v1369, %v1362
      %v1371 = vadd.f32 %v1362, %v1370
      %v1372 = vmul.f32 %v1371, 0.7978846
      %v1373 = vtanh.pop %v1372
      %v1374 = vadd.f32 %v1373, 1.0
      %v1375 = vmul.f32 %v1367, %v1374
      %v1376 = vld [vmem:[#allocation4] sm:$0xff]
      %v1377 = vpack.c.bf16 %v1375, %v1375
      %v1378 = vld [vmem:[%s495] sm:$0xf]
      %v1379 = vld [vmem:[%s495 + $0x4] sm:$0xf]
      %v1380 = vld [vmem:[%s495 + $0x8] sm:$0xf]
      %v1381 = vld [vmem:[%s495 + $0xc] sm:$0xf]
      %v1382 = vld [vmem:[%s495 + $0x10] sm:$0xf]
      %v1383 = vld [vmem:[%s495 + $0x14] sm:$0xf]
      %v1384 = vld [vmem:[%s495 + $0x18] sm:$0xf]
      %v1385 = vld [vmem:[%s495 + $0x1c] sm:$0xf]
      %v1394 = vunpack.c.l.b16 %v1378
      %v1395 = vunpack.c.l.b16 %v1379
      %v1396 = vunpack.c.l.b16 %v1380
      %v1397 = vunpack.c.l.b16 %v1381
      %v1398 = vunpack.c.l.b16 %v1382
      %v1399 = vunpack.c.l.b16 %v1383
      %v1400 = vunpack.c.l.b16 %v1384
      %v1401 = vunpack.c.l.b16 %v1385
      %v1402 = vpack.c.b16 %v1395, %v1394
      %v1403 = vpack.c.b16 %v1397, %v1396
      %v1404 = vpack.c.b16 %v1399, %v1398
      %v1405 = vpack.c.b16 %v1401, %v1400
      %vm1410 = vcmask 523264
      %v1412 = vsel %vm1410, %v1377, 0
      %1414 = vmatprep.subr.bf16.mxu0 0
      %1415 = vmatpush1.bf16.msra.mxu0 0
      %1416 = vmatprep.subr.bf16.mxu0 0
      %1417 = vmatpush1.bf16.msra.mxu0 0
      %1418 = vmatprep.subr.bf16.mxu0 0
      %1419 = vmatpush1.bf16.msra.mxu0 0
      %1420 = vmatprep.subr.bf16.mxu0 0
      %1421 = vmatpush1.bf16.msra.mxu0 0
      %1422 = vmatprep.subr.bf16.mxu0 0
      %1423 = vmatpush1.bf16.msra.mxu0 %v1405
      %1424 = vmatprep.subr.bf16.mxu0 0
      %1425 = vmatpush1.bf16.msra.mxu0 %v1404
      %1426 = vmatprep.subr.bf16.mxu0 0
      %1427 = vmatpush1.bf16.msra.mxu0 %v1403
      %1428 = vmatprep.subr.bf16.mxu0 0
      %1429 = vmatpush1.bf16.msra.mxu0 %v1402
      %1430 = vmatprep.subr.bf16.mxu0 0
      %1431 = vmatpush2.bf16.msra.mxu0 0
      %1432 = vmatprep.subr.bf16.mxu0 0
      %1433 = vmatpush2.bf16.msra.mxu0 0
      %1434 = vmatprep.subr.bf16.mxu0 0
      %1435 = vmatpush2.bf16.msra.mxu0 0
      %1436 = vmatprep.subr.bf16.mxu0 0
      %1437 = vmatpush2.bf16.msra.mxu0 0
      %1438 = vmatprep.subr.bf16.mxu0 0
      %1439 = vmatpush2.bf16.msra.mxu0 0
      %1440 = vmatprep.subr.bf16.mxu0 0
      %1441 = vmatpush2.bf16.msra.mxu0 0
      %1442 = vmatprep.subr.bf16.mxu0 0
      %1443 = vmatpush2.bf16.msra.mxu0 0
      %1444 = vmatprep.subr.bf16.mxu0 0
      %1445 = vmatpush2.bf16.msra.mxu0 0
      %1446 = vmatprep.mubr.bf16.mxu0 0
      %1447 = vmatmul.mubr.bf16.gmra.mxu0 %v1412
      %v1448 = vpop.f32.mrf.mxu0
      %v1449 = vadd.f32 0.0, %v1448
      %v1450 = vpop.f32.mrf.mxu0
      %v1451 = vpop.f32.mrf.mxu0
      %v1452 = vpop.f32.mrf.mxu0
      %1453 = vdwg.mxu0
      %v1454 = vadd.f32 %v1376, %v1449
      %1455 = vst.msk [vmem:[#allocation4] sm:$0xff] %vm1323, %v1454
      // Predicated region
      $region77: #{self_attention_module.2} parent=71 // pred_check
        %p1456 = pneg %p502
      $region78: #{self_attention_module.2} parent=71 // pred_check_branch
        %1458 = sbr.rel (%p1456) target = $region80
      $region79: #{self_attention_module.2} parent=71 // pred_region
        %v1459 = vld [vmem:[#allocation2] sm:$0xff]
        %v1460 = vld [vmem:[#allocation4] sm:$0xff]
        %v1461 = vadd.f32 %v1459, %v1460
        %v1462 = vld [vmem:[%s12] sm:$0x1]
        %v1464 = vlaneseq
        %v1465 = vshrl.u32 %v1464, 7
        %v1466 = vsub.s32 0, %v1465
        %v1467 = vrot.slane %v1462, %v1466
        %v1469 = vadd.f32 %v1461, %v1467
        %1470 = vst.msk [vmem:[%s500] sm:$0xff] %vm1323, %v1469
      $region80: #{self_attention_module.2} parent=71 // pred_fallthru
        _
      %p1471 = scmp.lt.s32.totalorder %s28, 1
      %s1472 = scalar_select %p1471, %s28, 1
      %s1473 = smul.addr %s1472, 8
      %s1474 = scalar_lea.vmem %s13, %s1473
      // Predicated region
      $region81: #{self_attention_module.2} parent=71 // pred_check
        %p1475 = pneg %p347
      $region82: #{self_attention_module.2} parent=71 // pred_check_branch
        %1477 = sbr.rel (%p1475) target = $region84
      $region83: #{self_attention_module.2} parent=71 // pred_region
        _
      $region84: #{self_attention_module.2} parent=71 // pred_fallthru
        _
    $region72: #{self_attention_module.2} parent=5 // pred_fallthru
      _
    %p1478 = scmp.le.s32.totalorder 2, %s19
    // Predicated region
    $region85: #{self_attention_module.2} parent=5 // pred_check
      %p1479 = pneg %p1478
    $region86: #{self_attention_module.2} parent=5 // pred_check_branch
      %1481 = sbr.rel (%p1479) target = $region88
    $region87: #{self_attention_module.2} parent=5 // pred_region
      %s1482 = ssub.s32 %s19, 2
      // Predicated region
      $region89: #{self_attention_module.2} parent=87 // pred_check
        %p1483 = pneg %p353
      $region90: #{self_attention_module.2} parent=87 // pred_check_branch
        %1485 = sbr.rel (%p1483) target = $region92
      $region91: #{self_attention_module.2} parent=87 // pred_region
        %p1486 = scmp.lt.s32.totalorder %s30, 1
        %s1487 = scalar_select %p1486, %s30, 1
        %s1488 = smul.addr %s1487, 8
        %s1489 = scalar_lea.vmem %s13, %s1488
      $region92: #{self_attention_module.2} parent=87 // pred_fallthru
        _
    $region88: #{self_attention_module.2} parent=5 // pred_fallthru
      _
  $region6: #{self_attention_module.2} parent=0 // loop_footer
    %s23 = sadd.s32 1, %s19
  $region7: #{self_attention_module.2} parent=0 // loop_footer_branch
    %18 = sbr.rel target = $region3
  $region8: #{self_attention_module.2} parent=0 // loop_exit
    _

</llo_original>
